<compile_context>
chip_gen: v7x
topology: tpu7x:2x2x1
jax: 0.10.0
libtpu: 0.0.40
codegen_flags: <defaults>
</compile_context>

<pallas_src>
import functools

import jax
import jax.numpy as jnp
import numpy as np
from jax.experimental import pallas as pl
from jax.experimental.pallas import tpu as pltpu

NUM_FILTERS = 64
LEAKY_SLOPE = 0.01   # nn.LeakyReLU default
BN_EPS = 1e-5        # nn.BatchNorm2d default
FC_HIDDEN = 20       # hidden width of the value MLP


def _leaky(z):
    return jnp.where(z > 0, z, LEAKY_SLOPE * z)


def _rup(n, m):
    return (n + m - 1) // m * m


def _layout(h, w, actions_n):
    """Row/lane offsets of the packed parameter arrays (shared by init & kernel)."""
    F = NUM_FILTERS
    pp = (h + 2) * (w + 2)
    lay = dict(
        # wconv (bf16, shape (wc_rows, F)):
        wc_c1=0,              # conv_1: tap t at rows [t*F, (t+1)*F), all F lanes
        wc_cin=9 * F,         # conv_in: rows [wc_cin, wc_cin+F), tap t at lanes [t*Cin,(t+1)*Cin)
        wc_head=10 * F,       # 1x1 heads: rows [wc_head, wc_head+3) = (value, policy0, policy1)
        wc_rows=10 * F + 8,
        # smalls (f32, shape (sm_rows, sm_cols)):
        #   rows [0,F): col0=b_in, col1=b_1, col2[0:3]=b_head, col3[0:20]=w_fc2, col4[0]=b_fc2
        sm_w1=F,                        # value fc1 weights on the padded grid (pp, 20)
        sm_row=F + _rup(pp, 8),         # 4 row vectors: w_fc1_y, b_fc1, w_policy_y, b_policy
        sm_wp=F + _rup(pp, 8) + 8,      # policy weights on the padded grid (2*pp, A)
        sm_cols=max(F, FC_HIDDEN, actions_n),
    )
    lay['sm_rows'] = lay['sm_wp'] + _rup(2 * pp, 8)
    return lay


# ---------------------------------------------------------------------------
# Fused kernel (built per static shape signature)
# ---------------------------------------------------------------------------
def _make_kernel(B, Cin, H, W, A):
    F = NUM_FILTERS
    HW = H * W
    Wp = W + 2
    PP = (H + 2) * (W + 2)      # pixels of one zero-padded board
    NP = B * PP                 # lane extent of the flat padded activations
    lay = _layout(H, W, A)
    f32, bf16 = jnp.float32, jnp.bfloat16

    def kernel(x_ref, y_ref, scat_ref, wconv_ref, smalls_ref, pol_ref, val_ref):
        # ---- x (NCHW) -> channels x (batch * board pixel), bf16 --------------
        # NCHW already has channels on a leading axis, so no 4-D transpose is
        # needed: just lane-concatenate the W-wide board rows (b-major, y-minor).
        xT = jnp.concatenate(
            [x_ref[b, :, row, :] for b in range(B) for row in range(H)],
            axis=1).astype(bf16)                                    # (Cin, B*HW)

        # ---- zero-pad every board with ONE scatter matmul (0/1 matrix) -------
        scat = scat_ref[0:B * HW, :]                                # (B*HW, NP)
        xpadT = jnp.dot(xT, scat, preferred_element_type=f32).astype(bf16)  # (Cin, NP)
        interior = scat_ref[B * HW:B * HW + 1, :].astype(f32)       # (1, NP) 0/1 mask

        # ---- shared 3x3 conv on the flat padded grid (channels x pixels) -----
        # A tap shift is a static lane shift of the padded-pixel axis; wrapped
        # lanes only ever land in border columns, which are masked / never read.
        def shift(a, delta):
            if delta == 0:
                return a
            d = delta % NP
            return jnp.concatenate([a[:, d:], a[:, :d]], axis=1)

        def conv3x3(inp_bf, tap_w):             # inp: (C, NP) bf16 -> (F, NP) f32
            acc = None
            for t in range(9):
                delta = (t // 3 - 1) * Wp + (t % 3 - 1)
                z = jnp.dot(tap_w(t), shift(inp_bf, delta),
                            preferred_element_type=f32)
                acc = z if acc is None else acc + z
            return acc

        # conv_in (3x3, Cin->F, folded BN bias, LeakyReLU); zero the border
        # columns so the next conv sees proper zero padding.
        b_in = smalls_ref[0:F, 0:1]
        v1 = conv3x3(xpadT, lambda t: wconv_ref[lay['wc_cin']:lay['wc_cin'] + F,
                                                t * Cin:(t + 1) * Cin])
        v1 = _leaky(v1 + b_in) * interior                            # (F, NP)

        # conv_1 (3x3, F->F) + residual:  v = v + conv_1(v)
        b_1 = smalls_ref[0:F, 1:2]
        c1 = conv3x3(v1.astype(bf16),
                     lambda t: wconv_ref[lay['wc_c1'] + t * F:
                                         lay['wc_c1'] + (t + 1) * F, :])
        v2 = v1 + _leaky(c1 + b_1)           # border cols: finite garbage, never used

        # conv_val & conv_policy (1x1 convs + folded BN + LeakyReLU), one matmul.
        heads = _leaky(
            jnp.dot(wconv_ref[lay['wc_head']:lay['wc_head'] + 3, :],
                    v2.astype(bf16), preferred_element_type=f32)
            + smalls_ref[0:3, 2:3])                                  # (3, NP)

        # Regroup (batch lives in the lane axis) into per-batch rows.
        def batch_rows(parts):                  # [(1, NP), ...] -> (B, len(parts)*PP)
            rows = []
            for b in range(B):
                segs = [p[:, b * PP:(b + 1) * PP] for p in parts]
                rows.append(segs[0] if len(segs) == 1
                            else jnp.concatenate(segs, axis=1))
            return jnp.concatenate(rows, axis=0)

        val_in = batch_rows([heads[0:1, :]])                         # (B, PP)
        pol_in = batch_rows([heads[1:2, :], heads[2:3, :]])          # (B, 2*PP)
        y = y_ref[...].astype(f32)                                   # (B, 1)

        # value head: Linear(HW+1, 20) + LeakyReLU + Linear(20, 1).  The NCHW
        # flatten / interior selection is folded into zero-padded FC weights.
        r = lay['sm_row']
        h1 = _leaky(
            jnp.dot(val_in, smalls_ref[lay['sm_w1']:lay['sm_w1'] + PP, 0:FC_HIDDEN],
                    preferred_element_type=f32)
            + y * smalls_ref[r:r + 1, 0:FC_HIDDEN]
            + smalls_ref[r + 1:r + 2, 0:FC_HIDDEN])                  # (B, 20)
        val_ref[...] = (jnp.dot(h1, smalls_ref[0:FC_HIDDEN, 3:4],
                                preferred_element_type=f32)
                        + smalls_ref[0:1, 4:5])                      # (B, 1)

        # policy head: Linear(2*HW+1, A) + softmax over actions (exact divide).
        logits = (jnp.dot(pol_in,
                          smalls_ref[lay['sm_wp']:lay['sm_wp'] + 2 * PP, 0:A],
                          preferred_element_type=f32)
                  + y * smalls_ref[r + 2:r + 3, 0:A]
                  + smalls_ref[r + 3:r + 4, 0:A])                    # (B, A)
        mx = jnp.max(logits, axis=1, keepdims=True)
        e = jnp.exp(logits - mx)
        pol_ref[...] = e / jnp.sum(e, axis=1, keepdims=True)

    return kernel


# ---------------------------------------------------------------------------
# Parameter init (synthetic, deterministic), eval-mode BN folding, packing
# ---------------------------------------------------------------------------
def _conv_bn(key, cout, cin, ksize):
    """Conv2d + eval-mode BatchNorm2d folded into one weight (OIHW) / bias."""
    k = jax.random.split(key, 6)
    w = 0.1 * jax.random.normal(k[0], (cout, cin, ksize, ksize), jnp.float32)
    b = 0.1 * jax.random.normal(k[1], (cout,), jnp.float32)
    gamma = 1.0 + 0.1 * jax.random.normal(k[2], (cout,), jnp.float32)
    beta = 0.1 * jax.random.normal(k[3], (cout,), jnp.float32)
    mean = 0.1 * jax.random.normal(k[4], (cout,), jnp.float32)
    var = 1.0 + 0.1 * jnp.abs(jax.random.normal(k[5], (cout,), jnp.float32))
    scale = gamma / jnp.sqrt(var + BN_EPS)
    return w * scale[:, None, None, None], (b - mean) * scale + beta


def _linear(key, din, dout):
    k1, k2 = jax.random.split(key)
    return (0.1 * jax.random.normal(k1, (dout, din), jnp.float32),   # PyTorch (out, in)
            0.1 * jax.random.normal(k2, (dout,), jnp.float32))


def init_params(key, c_in, h, w, actions_n):
    """Returns (packed params for the kernel, raw folded params for the reference)."""
    F = NUM_FILTERS
    hw = h * w
    wp = w + 2
    pp = (h + 2) * (w + 2)
    lay = _layout(h, w, actions_n)

    ks = jax.random.split(key, 7)
    w_in, b_in = _conv_bn(ks[0], F, c_in, 3)
    w_1, b_1 = _conv_bn(ks[1], F, F, 3)
    w_val, b_val = _conv_bn(ks[2], 1, F, 1)
    w_pc, b_pc = _conv_bn(ks[3], 2, F, 1)
    w_fc1, b_fc1 = _linear(ks[4], hw + 1, FC_HIDDEN)
    w_fc2, b_fc2 = _linear(ks[5], FC_HIDDEN, 1)
    w_policy, b_policy = _linear(ks[6], 2 * hw + 1, actions_n)

    # --- big bf16 matmul-weight pack (conv_1 taps, conv_in taps, 1x1 heads) ---
    wconv = np.zeros((lay['wc_rows'], F), np.float32)
    w1n, win = np.asarray(w_1), np.asarray(w_in)
    for t in range(9):
        ky, kx = t // 3, t % 3
        wconv[lay['wc_c1'] + t * F:lay['wc_c1'] + (t + 1) * F, :] = w1n[:, :, ky, kx]
        wconv[lay['wc_cin']:lay['wc_cin'] + F, t * c_in:(t + 1) * c_in] = win[:, :, ky, kx]
    wconv[lay['wc_head'] + 0, :] = np.asarray(w_val)[0, :, 0, 0]
    wconv[lay['wc_head'] + 1, :] = np.asarray(w_pc)[0, :, 0, 0]
    wconv[lay['wc_head'] + 2, :] = np.asarray(w_pc)[1, :, 0, 0]

    # --- small f32 pack: biases + FC weights (interior selection pre-folded) --
    sm = np.zeros((lay['sm_rows'], lay['sm_cols']), np.float32)
    sm[0:F, 0] = np.asarray(b_in)
    sm[0:F, 1] = np.asarray(b_1)
    sm[0, 2] = float(b_val[0]); sm[1, 2] = float(b_pc[0]); sm[2, 2] = float(b_pc[1])
    sm[0:FC_HIDDEN, 3] = np.asarray(w_fc2)[0, :]
    sm[0, 4] = float(b_fc2[0])
    w1f, wpf = np.asarray(w_fc1), np.asarray(w_policy)
    sm[lay['sm_row'] + 0, 0:FC_HIDDEN] = w1f[:, hw]            # fc1 y-weight
    sm[lay['sm_row'] + 1, 0:FC_HIDDEN] = np.asarray(b_fc1)
    sm[lay['sm_row'] + 2, 0:actions_n] = wpf[:, 2 * hw]        # policy y-weight
    sm[lay['sm_row'] + 3, 0:actions_n] = np.asarray(b_policy)
    for yy in range(h):
        for xx in range(w):
            q = yy * w + xx
            s = (yy + 1) * wp + (xx + 1)                        # interior padded index
            sm[lay['sm_w1'] + s, 0:FC_HIDDEN] = w1f[:, q]
            sm[lay['sm_wp'] + s, 0:actions_n] = wpf[:, q]                # policy ch 0
            sm[lay['sm_wp'] + pp + s, 0:actions_n] = wpf[:, hw + q]      # policy ch 1

    packed = dict(wconv=jnp.asarray(wconv, jnp.bfloat16),
                  smalls=jnp.asarray(sm, jnp.float32))
    raw = dict(w_in=w_in, b_in=b_in, w_1=w_1, b_1=b_1, w_val=w_val, b_val=b_val,
               w_pc=w_pc, b_pc=b_pc, w_fc1=w_fc1, b_fc1=b_fc1,
               w_fc2=w_fc2, b_fc2=b_fc2, w_policy=w_policy, b_policy=b_policy)
    return packed, raw


def _board_scatter(batch, h, w):
    """0/1 matrix scattering (b, y, x) board pixels to the flat zero-padded grid.
    Its last row is the interior mask of that grid."""
    hw, wp, pp = h * w, w + 2, (h + 2) * (w + 2)
    s = np.zeros((batch * hw + 1, batch * pp), np.float32)
    for b in range(batch):
        for y in range(h):
            for x in range(w):
                col = b * pp + (y + 1) * wp + (x + 1)
                s[b * hw + y * w + x, col] = 1.0
                s[batch * hw, col] = 1.0
    return s


# ---------------------------------------------------------------------------
# Forward pass (matches Net.forward(x, y) -> (pol, val))
# ---------------------------------------------------------------------------
@functools.partial(jax.jit, static_argnames=("actions_n",))
def net_forward(params, x_nchw, y, *, actions_n):
    B, Cin, H, W = x_nchw.shape
    scat = jnp.asarray(_board_scatter(B, H, W), jnp.bfloat16)   # trace-time constant
    vmem = pl.BlockSpec(memory_space=pltpu.MemorySpace.VMEM)
    pol, val = pl.pallas_call(
        _make_kernel(B, Cin, H, W, actions_n),
        out_shape=(jax.ShapeDtypeStruct((B, actions_n), jnp.float32),
                   jax.ShapeDtypeStruct((B, 1), jnp.float32)),
        in_specs=[vmem] * 5,
        out_specs=(vmem, vmem),
    )(x_nchw, y, scat, params['wconv'], params['smalls'])
    return pol, val


# ---------------------------------------------------------------------------
# Pure-JAX reference (f32) for a self-check in __main__
# ---------------------------------------------------------------------------
def reference_forward(raw, x, y):
    def conv(inp, wt, bias):
        out = jax.lax.conv_general_dilated(
            inp, wt, window_strides=(1, 1), padding='SAME',
            dimension_numbers=('NCHW', 'OIHW', 'NCHW'))
        return _leaky(out + bias[None, :, None, None])

    batch = x.shape[0]
    v = conv(x, raw['w_in'], raw['b_in'])
    v = v + conv(v, raw['w_1'], raw['b_1'])
    val_map = conv(v, raw['w_val'], raw['b_val']).reshape(batch, -1)
    pol_map = conv(v, raw['w_pc'], raw['b_pc']).reshape(batch, -1)
    h = _leaky(jnp.concatenate([val_map, y], axis=1) @ raw['w_fc1'].T + raw['b_fc1'])
    val = h @ raw['w_fc2'].T + raw['b_fc2']
    logits = jnp.concatenate([pol_map, y], axis=1) @ raw['w_policy'].T + raw['b_policy']
    return jax.nn.softmax(logits, axis=1), val


if __name__ == "__main__":
    key = jax.random.PRNGKey(0)
    B, C_in, H, W = 2, 4, 4, 4            # Quarto-like 4x4 board, 4 input planes
    actions_n = 16
    kx_, ky_, kp_ = jax.random.split(key, 3)
    x = jax.random.normal(kx_, (B, C_in, H, W), jnp.float32)   # NCHW like PyTorch
    y = jax.random.normal(ky_, (B, 1), jnp.float32)
    params, raw = init_params(kp_, C_in, H, W, actions_n)

    pol, val = net_forward(params, x, y, actions_n=actions_n)
    jax.block_until_ready((pol, val))

    assert pol.shape == (B, actions_n) and val.shape == (B, 1)
    assert bool(jnp.all(jnp.isfinite(pol))) and bool(jnp.all(jnp.isfinite(val)))
    assert bool(jnp.allclose(jnp.sum(pol, axis=1), 1.0, atol=1e-4))

    # Self-check vs. a pure-JAX f32 reference (kernel convs run in bf16 on MXU).
    pol_r, val_r = reference_forward(raw, x, y)
    assert bool(jnp.allclose(pol, pol_r, atol=3e-2))
    assert bool(jnp.allclose(val, val_r, atol=3e-2, rtol=3e-2))
    print("KERNEL_OK")
</pallas_src>

<mosaic_0001>
module attributes {stable_mosaic.version = 11 : i64} {
  func.func @kernel(%arg0: memref<2x4x4x4xf32, #tpu.memory_space<vmem>>, %arg1: memref<2x1xf32, #tpu.memory_space<vmem>>, %arg2: memref<33x72xbf16, #tpu.memory_space<vmem>>, %arg3: memref<648x64xbf16, #tpu.memory_space<vmem>>, %arg4: memref<184x64xf32, #tpu.memory_space<vmem>>, %arg5: memref<2x16xf32, #tpu.memory_space<vmem>>, %arg6: memref<2x1xf32, #tpu.memory_space<vmem>>) attributes {dimension_semantics = [], scalar_prefetch = 0 : i64, scratch_operands = 0 : i64, tpu.core_type = #tpu.core_type<tc>} {
    %c0 = arith.constant 0 : index
    %c0_0 = arith.constant 0 : index
    %c0_1 = arith.constant 0 : index
    %c0_2 = arith.constant 0 : index
    %0 = vector.load %arg0[%c0, %c0_0, %c0_1, %c0_2] : memref<2x4x4x4xf32, #tpu.memory_space<vmem>>, vector<1x4x1x4xf32>
    %1 = vector.shape_cast %0 : vector<1x4x1x4xf32> to vector<4x4xf32>
    %c0_3 = arith.constant 0 : index
    %c0_4 = arith.constant 0 : index
    %c1 = arith.constant 1 : index
    %c0_5 = arith.constant 0 : index
    %2 = vector.load %arg0[%c0_3, %c0_4, %c1, %c0_5] : memref<2x4x4x4xf32, #tpu.memory_space<vmem>>, vector<1x4x1x4xf32>
    %3 = vector.shape_cast %2 : vector<1x4x1x4xf32> to vector<4x4xf32>
    %c0_6 = arith.constant 0 : index
    %c0_7 = arith.constant 0 : index
    %c2 = arith.constant 2 : index
    %c0_8 = arith.constant 0 : index
    %4 = vector.load %arg0[%c0_6, %c0_7, %c2, %c0_8] : memref<2x4x4x4xf32, #tpu.memory_space<vmem>>, vector<1x4x1x4xf32>
    %5 = vector.shape_cast %4 : vector<1x4x1x4xf32> to vector<4x4xf32>
    %c0_9 = arith.constant 0 : index
    %c0_10 = arith.constant 0 : index
    %c3 = arith.constant 3 : index
    %c0_11 = arith.constant 0 : index
    %6 = vector.load %arg0[%c0_9, %c0_10, %c3, %c0_11] : memref<2x4x4x4xf32, #tpu.memory_space<vmem>>, vector<1x4x1x4xf32>
    %7 = vector.shape_cast %6 : vector<1x4x1x4xf32> to vector<4x4xf32>
    %c1_12 = arith.constant 1 : index
    %c0_13 = arith.constant 0 : index
    %c0_14 = arith.constant 0 : index
    %c0_15 = arith.constant 0 : index
    %8 = vector.load %arg0[%c1_12, %c0_13, %c0_14, %c0_15] : memref<2x4x4x4xf32, #tpu.memory_space<vmem>>, vector<1x4x1x4xf32>
    %9 = vector.shape_cast %8 : vector<1x4x1x4xf32> to vector<4x4xf32>
    %c1_16 = arith.constant 1 : index
    %c0_17 = arith.constant 0 : index
    %c1_18 = arith.constant 1 : index
    %c0_19 = arith.constant 0 : index
    %10 = vector.load %arg0[%c1_16, %c0_17, %c1_18, %c0_19] : memref<2x4x4x4xf32, #tpu.memory_space<vmem>>, vector<1x4x1x4xf32>
    %11 = vector.shape_cast %10 : vector<1x4x1x4xf32> to vector<4x4xf32>
    %c1_20 = arith.constant 1 : index
    %c0_21 = arith.constant 0 : index
    %c2_22 = arith.constant 2 : index
    %c0_23 = arith.constant 0 : index
    %12 = vector.load %arg0[%c1_20, %c0_21, %c2_22, %c0_23] : memref<2x4x4x4xf32, #tpu.memory_space<vmem>>, vector<1x4x1x4xf32>
    %13 = vector.shape_cast %12 : vector<1x4x1x4xf32> to vector<4x4xf32>
    %c1_24 = arith.constant 1 : index
    %c0_25 = arith.constant 0 : index
    %c3_26 = arith.constant 3 : index
    %c0_27 = arith.constant 0 : index
    %14 = vector.load %arg0[%c1_24, %c0_25, %c3_26, %c0_27] : memref<2x4x4x4xf32, #tpu.memory_space<vmem>>, vector<1x4x1x4xf32>
    %15 = vector.shape_cast %14 : vector<1x4x1x4xf32> to vector<4x4xf32>
    %16 = tpu.concatenate %1, %3, %5, %7, %9, %11, %13, %15 in 1 : vector<4x4xf32>, vector<4x4xf32>, vector<4x4xf32>, vector<4x4xf32>, vector<4x4xf32>, vector<4x4xf32>, vector<4x4xf32>, vector<4x4xf32> -> vector<4x32xf32>
    %17 = arith.truncf %16 : vector<4x32xf32> to vector<4x32xbf16>
    %c0_28 = arith.constant 0 : index
    %c0_29 = arith.constant 0 : index
    %18 = vector.load %arg2[%c0_28, %c0_29] : memref<33x72xbf16, #tpu.memory_space<vmem>>, vector<32x72xbf16>
    %cst = arith.constant dense<0.000000e+00> : vector<4x72xf32>
    %19 = tpu.matmul %17, %18, %cst {dimension_numbers = #tpu.dot_dimension_numbers<[1], [0], [0], [1], [0, 0, 1, 1], [], []>} : vector<4x32xbf16>, vector<32x72xbf16>, vector<4x72xf32> -> vector<4x72xf32>
    %20 = arith.truncf %19 : vector<4x72xf32> to vector<4x72xbf16>
    %c32 = arith.constant 32 : index
    %c0_30 = arith.constant 0 : index
    %21 = vector.load %arg2[%c32, %c0_30] : memref<33x72xbf16, #tpu.memory_space<vmem>>, vector<1x72xbf16>
    %22 = arith.extf %21 : vector<1x72xbf16> to vector<1x72xf32>
    %c0_31 = arith.constant 0 : index
    %c0_32 = arith.constant 0 : index
    %23 = vector.load %arg4[%c0_31, %c0_32] : memref<184x64xf32, #tpu.memory_space<vmem>>, vector<64x1xf32>
    %c576 = arith.constant 576 : index
    %c0_33 = arith.constant 0 : index
    %24 = vector.load %arg3[%c576, %c0_33] : memref<648x64xbf16, #tpu.memory_space<vmem>>, vector<64x4xbf16>
    %25 = vector.extract_strided_slice %20 {offsets = [0, 65], sizes = [4, 7], strides = [1, 1]} : vector<4x72xbf16> to vector<4x7xbf16>
    %26 = vector.extract_strided_slice %20 {offsets = [0, 0], sizes = [4, 65], strides = [1, 1]} : vector<4x72xbf16> to vector<4x65xbf16>
    %27 = tpu.concatenate %25, %26 in 1 : vector<4x7xbf16>, vector<4x65xbf16> -> vector<4x72xbf16>
    %cst_34 = arith.constant dense<0.000000e+00> : vector<64x72xf32>
    %28 = tpu.matmul %24, %27, %cst_34 {dimension_numbers = #tpu.dot_dimension_numbers<[1], [0], [0], [1], [0, 0, 1, 1], [], []>} : vector<64x4xbf16>, vector<4x72xbf16>, vector<64x72xf32> -> vector<64x72xf32>
    %c576_35 = arith.constant 576 : index
    %c4 = arith.constant 4 : index
    %29 = vector.load %arg3[%c576_35, %c4] : memref<648x64xbf16, #tpu.memory_space<vmem>>, vector<64x4xbf16>
    %30 = vector.extract_strided_slice %20 {offsets = [0, 66], sizes = [4, 6], strides = [1, 1]} : vector<4x72xbf16> to vector<4x6xbf16>
    %31 = vector.extract_strided_slice %20 {offsets = [0, 0], sizes = [4, 66], strides = [1, 1]} : vector<4x72xbf16> to vector<4x66xbf16>
    %32 = tpu.concatenate %30, %31 in 1 : vector<4x6xbf16>, vector<4x66xbf16> -> vector<4x72xbf16>
    %cst_36 = arith.constant dense<0.000000e+00> : vector<64x72xf32>
    %33 = tpu.matmul %29, %32, %cst_36 {dimension_numbers = #tpu.dot_dimension_numbers<[1], [0], [0], [1], [0, 0, 1, 1], [], []>} : vector<64x4xbf16>, vector<4x72xbf16>, vector<64x72xf32> -> vector<64x72xf32>
    %34 = arith.addf %28, %33 : vector<64x72xf32>
    %c576_37 = arith.constant 576 : index
    %c8 = arith.constant 8 : index
    %35 = vector.load %arg3[%c576_37, %c8] : memref<648x64xbf16, #tpu.memory_space<vmem>>, vector<64x4xbf16>
    %36 = vector.extract_strided_slice %20 {offsets = [0, 67], sizes = [4, 5], strides = [1, 1]} : vector<4x72xbf16> to vector<4x5xbf16>
    %37 = vector.extract_strided_slice %20 {offsets = [0, 0], sizes = [4, 67], strides = [1, 1]} : vector<4x72xbf16> to vector<4x67xbf16>
    %38 = tpu.concatenate %36, %37 in 1 : vector<4x5xbf16>, vector<4x67xbf16> -> vector<4x72xbf16>
    %cst_38 = arith.constant dense<0.000000e+00> : vector<64x72xf32>
    %39 = tpu.matmul %35, %38, %cst_38 {dimension_numbers = #tpu.dot_dimension_numbers<[1], [0], [0], [1], [0, 0, 1, 1], [], []>} : vector<64x4xbf16>, vector<4x72xbf16>, vector<64x72xf32> -> vector<64x72xf32>
    %40 = arith.addf %34, %39 : vector<64x72xf32>
    %c576_39 = arith.constant 576 : index
    %c12 = arith.constant 12 : index
    %41 = vector.load %arg3[%c576_39, %c12] : memref<648x64xbf16, #tpu.memory_space<vmem>>, vector<64x4xbf16>
    %42 = vector.extract_strided_slice %20 {offsets = [0, 71], sizes = [4, 1], strides = [1, 1]} : vector<4x72xbf16> to vector<4x1xbf16>
    %43 = vector.extract_strided_slice %20 {offsets = [0, 0], sizes = [4, 71], strides = [1, 1]} : vector<4x72xbf16> to vector<4x71xbf16>
    %44 = tpu.concatenate %42, %43 in 1 : vector<4x1xbf16>, vector<4x71xbf16> -> vector<4x72xbf16>
    %cst_40 = arith.constant dense<0.000000e+00> : vector<64x72xf32>
    %45 = tpu.matmul %41, %44, %cst_40 {dimension_numbers = #tpu.dot_dimension_numbers<[1], [0], [0], [1], [0, 0, 1, 1], [], []>} : vector<64x4xbf16>, vector<4x72xbf16>, vector<64x72xf32> -> vector<64x72xf32>
    %46 = arith.addf %40, %45 : vector<64x72xf32>
    %c576_41 = arith.constant 576 : index
    %c16 = arith.constant 16 : index
    %47 = vector.load %arg3[%c576_41, %c16] : memref<648x64xbf16, #tpu.memory_space<vmem>>, vector<64x4xbf16>
    %cst_42 = arith.constant dense<0.000000e+00> : vector<64x72xf32>
    %48 = tpu.matmul %47, %20, %cst_42 {dimension_numbers = #tpu.dot_dimension_numbers<[1], [0], [0], [1], [0, 0, 1, 1], [], []>} : vector<64x4xbf16>, vector<4x72xbf16>, vector<64x72xf32> -> vector<64x72xf32>
    %49 = arith.addf %46, %48 : vector<64x72xf32>
    %c576_43 = arith.constant 576 : index
    %c20 = arith.constant 20 : index
    %50 = vector.load %arg3[%c576_43, %c20] : memref<648x64xbf16, #tpu.memory_space<vmem>>, vector<64x4xbf16>
    %51 = vector.extract_strided_slice %20 {offsets = [0, 1], sizes = [4, 71], strides = [1, 1]} : vector<4x72xbf16> to vector<4x71xbf16>
    %52 = vector.extract_strided_slice %20 {offsets = [0, 0], sizes = [4, 1], strides = [1, 1]} : vector<4x72xbf16> to vector<4x1xbf16>
    %53 = tpu.concatenate %51, %52 in 1 : vector<4x71xbf16>, vector<4x1xbf16> -> vector<4x72xbf16>
    %cst_44 = arith.constant dense<0.000000e+00> : vector<64x72xf32>
    %54 = tpu.matmul %50, %53, %cst_44 {dimension_numbers = #tpu.dot_dimension_numbers<[1], [0], [0], [1], [0, 0, 1, 1], [], []>} : vector<64x4xbf16>, vector<4x72xbf16>, vector<64x72xf32> -> vector<64x72xf32>
    %55 = arith.addf %49, %54 : vector<64x72xf32>
    %c576_45 = arith.constant 576 : index
    %c24 = arith.constant 24 : index
    %56 = vector.load %arg3[%c576_45, %c24] : memref<648x64xbf16, #tpu.memory_space<vmem>>, vector<64x4xbf16>
    %57 = vector.extract_strided_slice %20 {offsets = [0, 5], sizes = [4, 67], strides = [1, 1]} : vector<4x72xbf16> to vector<4x67xbf16>
    %58 = vector.extract_strided_slice %20 {offsets = [0, 0], sizes = [4, 5], strides = [1, 1]} : vector<4x72xbf16> to vector<4x5xbf16>
    %59 = tpu.concatenate %57, %58 in 1 : vector<4x67xbf16>, vector<4x5xbf16> -> vector<4x72xbf16>
    %cst_46 = arith.constant dense<0.000000e+00> : vector<64x72xf32>
    %60 = tpu.matmul %56, %59, %cst_46 {dimension_numbers = #tpu.dot_dimension_numbers<[1], [0], [0], [1], [0, 0, 1, 1], [], []>} : vector<64x4xbf16>, vector<4x72xbf16>, vector<64x72xf32> -> vector<64x72xf32>
    %61 = arith.addf %55, %60 : vector<64x72xf32>
    %c576_47 = arith.constant 576 : index
    %c28 = arith.constant 28 : index
    %62 = vector.load %arg3[%c576_47, %c28] : memref<648x64xbf16, #tpu.memory_space<vmem>>, vector<64x4xbf16>
    %63 = vector.extract_strided_slice %20 {offsets = [0, 6], sizes = [4, 66], strides = [1, 1]} : vector<4x72xbf16> to vector<4x66xbf16>
    %64 = vector.extract_strided_slice %20 {offsets = [0, 0], sizes = [4, 6], strides = [1, 1]} : vector<4x72xbf16> to vector<4x6xbf16>
    %65 = tpu.concatenate %63, %64 in 1 : vector<4x66xbf16>, vector<4x6xbf16> -> vector<4x72xbf16>
    %cst_48 = arith.constant dense<0.000000e+00> : vector<64x72xf32>
    %66 = tpu.matmul %62, %65, %cst_48 {dimension_numbers = #tpu.dot_dimension_numbers<[1], [0], [0], [1], [0, 0, 1, 1], [], []>} : vector<64x4xbf16>, vector<4x72xbf16>, vector<64x72xf32> -> vector<64x72xf32>
    %67 = arith.addf %61, %66 : vector<64x72xf32>
    %c576_49 = arith.constant 576 : index
    %c32_50 = arith.constant 32 : index
    %68 = vector.load %arg3[%c576_49, %c32_50] : memref<648x64xbf16, #tpu.memory_space<vmem>>, vector<64x4xbf16>
    %69 = vector.extract_strided_slice %20 {offsets = [0, 7], sizes = [4, 65], strides = [1, 1]} : vector<4x72xbf16> to vector<4x65xbf16>
    %70 = vector.extract_strided_slice %20 {offsets = [0, 0], sizes = [4, 7], strides = [1, 1]} : vector<4x72xbf16> to vector<4x7xbf16>
    %71 = tpu.concatenate %69, %70 in 1 : vector<4x65xbf16>, vector<4x7xbf16> -> vector<4x72xbf16>
    %cst_51 = arith.constant dense<0.000000e+00> : vector<64x72xf32>
    %72 = tpu.matmul %68, %71, %cst_51 {dimension_numbers = #tpu.dot_dimension_numbers<[1], [0], [0], [1], [0, 0, 1, 1], [], []>} : vector<64x4xbf16>, vector<4x72xbf16>, vector<64x72xf32> -> vector<64x72xf32>
    %73 = arith.addf %67, %72 : vector<64x72xf32>
    %74 = vector.broadcast %23 : vector<64x1xf32> to vector<64x72xf32>
    %75 = arith.addf %73, %74 : vector<64x72xf32>
    %cst_52 = arith.constant 0.000000e+00 : f32
    %76 = vector.broadcast %cst_52 : f32 to vector<64x72xf32>
    %77 = arith.cmpf ogt, %75, %76 : vector<64x72xf32>
    %cst_53 = arith.constant 0.00999999977 : f32
    %78 = vector.broadcast %cst_53 : f32 to vector<64x72xf32>
    %79 = arith.mulf %78, %75 : vector<64x72xf32>
    %80 = arith.select %77, %75, %79 : vector<64x72xi1>, vector<64x72xf32>
    %81 = vector.broadcast %22 : vector<1x72xf32> to vector<64x72xf32>
    %82 = arith.mulf %80, %81 : vector<64x72xf32>
    %c0_54 = arith.constant 0 : index
    %c1_55 = arith.constant 1 : index
    %83 = vector.load %arg4[%c0_54, %c1_55] : memref<184x64xf32, #tpu.memory_space<vmem>>, vector<64x1xf32>
    %84 = arith.truncf %82 : vector<64x72xf32> to vector<64x72xbf16>
    %c0_56 = arith.constant 0 : index
    %c0_57 = arith.constant 0 : index
    %85 = vector.load %arg3[%c0_56, %c0_57] : memref<648x64xbf16, #tpu.memory_space<vmem>>, vector<64x64xbf16>
    %86 = vector.extract_strided_slice %84 {offsets = [0, 65], sizes = [64, 7], strides = [1, 1]} : vector<64x72xbf16> to vector<64x7xbf16>
    %87 = vector.extract_strided_slice %84 {offsets = [0, 0], sizes = [64, 65], strides = [1, 1]} : vector<64x72xbf16> to vector<64x65xbf16>
    %88 = tpu.concatenate %86, %87 in 1 : vector<64x7xbf16>, vector<64x65xbf16> -> vector<64x72xbf16>
    %cst_58 = arith.constant dense<0.000000e+00> : vector<64x72xf32>
    %89 = tpu.matmul %85, %88, %cst_58 {dimension_numbers = #tpu.dot_dimension_numbers<[1], [0], [0], [1], [0, 0, 1, 1], [], []>} : vector<64x64xbf16>, vector<64x72xbf16>, vector<64x72xf32> -> vector<64x72xf32>
    %c64 = arith.constant 64 : index
    %c0_59 = arith.constant 0 : index
    %90 = vector.load %arg3[%c64, %c0_59] : memref<648x64xbf16, #tpu.memory_space<vmem>>, vector<64x64xbf16>
    %91 = vector.extract_strided_slice %84 {offsets = [0, 66], sizes = [64, 6], strides = [1, 1]} : vector<64x72xbf16> to vector<64x6xbf16>
    %92 = vector.extract_strided_slice %84 {offsets = [0, 0], sizes = [64, 66], strides = [1, 1]} : vector<64x72xbf16> to vector<64x66xbf16>
    %93 = tpu.concatenate %91, %92 in 1 : vector<64x6xbf16>, vector<64x66xbf16> -> vector<64x72xbf16>
    %cst_60 = arith.constant dense<0.000000e+00> : vector<64x72xf32>
    %94 = tpu.matmul %90, %93, %cst_60 {dimension_numbers = #tpu.dot_dimension_numbers<[1], [0], [0], [1], [0, 0, 1, 1], [], []>} : vector<64x64xbf16>, vector<64x72xbf16>, vector<64x72xf32> -> vector<64x72xf32>
    %95 = arith.addf %89, %94 : vector<64x72xf32>
    %c128 = arith.constant 128 : index
    %c0_61 = arith.constant 0 : index
    %96 = vector.load %arg3[%c128, %c0_61] : memref<648x64xbf16, #tpu.memory_space<vmem>>, vector<64x64xbf16>
    %97 = vector.extract_strided_slice %84 {offsets = [0, 67], sizes = [64, 5], strides = [1, 1]} : vector<64x72xbf16> to vector<64x5xbf16>
    %98 = vector.extract_strided_slice %84 {offsets = [0, 0], sizes = [64, 67], strides = [1, 1]} : vector<64x72xbf16> to vector<64x67xbf16>
    %99 = tpu.concatenate %97, %98 in 1 : vector<64x5xbf16>, vector<64x67xbf16> -> vector<64x72xbf16>
    %cst_62 = arith.constant dense<0.000000e+00> : vector<64x72xf32>
    %100 = tpu.matmul %96, %99, %cst_62 {dimension_numbers = #tpu.dot_dimension_numbers<[1], [0], [0], [1], [0, 0, 1, 1], [], []>} : vector<64x64xbf16>, vector<64x72xbf16>, vector<64x72xf32> -> vector<64x72xf32>
    %101 = arith.addf %95, %100 : vector<64x72xf32>
    %c192 = arith.constant 192 : index
    %c0_63 = arith.constant 0 : index
    %102 = vector.load %arg3[%c192, %c0_63] : memref<648x64xbf16, #tpu.memory_space<vmem>>, vector<64x64xbf16>
    %103 = vector.extract_strided_slice %84 {offsets = [0, 71], sizes = [64, 1], strides = [1, 1]} : vector<64x72xbf16> to vector<64x1xbf16>
    %104 = vector.extract_strided_slice %84 {offsets = [0, 0], sizes = [64, 71], strides = [1, 1]} : vector<64x72xbf16> to vector<64x71xbf16>
    %105 = tpu.concatenate %103, %104 in 1 : vector<64x1xbf16>, vector<64x71xbf16> -> vector<64x72xbf16>
    %cst_64 = arith.constant dense<0.000000e+00> : vector<64x72xf32>
    %106 = tpu.matmul %102, %105, %cst_64 {dimension_numbers = #tpu.dot_dimension_numbers<[1], [0], [0], [1], [0, 0, 1, 1], [], []>} : vector<64x64xbf16>, vector<64x72xbf16>, vector<64x72xf32> -> vector<64x72xf32>
    %107 = arith.addf %101, %106 : vector<64x72xf32>
    %c256 = arith.constant 256 : index
    %c0_65 = arith.constant 0 : index
    %108 = vector.load %arg3[%c256, %c0_65] : memref<648x64xbf16, #tpu.memory_space<vmem>>, vector<64x64xbf16>
    %cst_66 = arith.constant dense<0.000000e+00> : vector<64x72xf32>
    %109 = tpu.matmul %108, %84, %cst_66 {dimension_numbers = #tpu.dot_dimension_numbers<[1], [0], [0], [1], [0, 0, 1, 1], [], []>} : vector<64x64xbf16>, vector<64x72xbf16>, vector<64x72xf32> -> vector<64x72xf32>
    %110 = arith.addf %107, %109 : vector<64x72xf32>
    %c320 = arith.constant 320 : index
    %c0_67 = arith.constant 0 : index
    %111 = vector.load %arg3[%c320, %c0_67] : memref<648x64xbf16, #tpu.memory_space<vmem>>, vector<64x64xbf16>
    %112 = vector.extract_strided_slice %84 {offsets = [0, 1], sizes = [64, 71], strides = [1, 1]} : vector<64x72xbf16> to vector<64x71xbf16>
    %113 = vector.extract_strided_slice %84 {offsets = [0, 0], sizes = [64, 1], strides = [1, 1]} : vector<64x72xbf16> to vector<64x1xbf16>
    %114 = tpu.concatenate %112, %113 in 1 : vector<64x71xbf16>, vector<64x1xbf16> -> vector<64x72xbf16>
    %cst_68 = arith.constant dense<0.000000e+00> : vector<64x72xf32>
    %115 = tpu.matmul %111, %114, %cst_68 {dimension_numbers = #tpu.dot_dimension_numbers<[1], [0], [0], [1], [0, 0, 1, 1], [], []>} : vector<64x64xbf16>, vector<64x72xbf16>, vector<64x72xf32> -> vector<64x72xf32>
    %116 = arith.addf %110, %115 : vector<64x72xf32>
    %c384 = arith.constant 384 : index
    %c0_69 = arith.constant 0 : index
    %117 = vector.load %arg3[%c384, %c0_69] : memref<648x64xbf16, #tpu.memory_space<vmem>>, vector<64x64xbf16>
    %118 = vector.extract_strided_slice %84 {offsets = [0, 5], sizes = [64, 67], strides = [1, 1]} : vector<64x72xbf16> to vector<64x67xbf16>
    %119 = vector.extract_strided_slice %84 {offsets = [0, 0], sizes = [64, 5], strides = [1, 1]} : vector<64x72xbf16> to vector<64x5xbf16>
    %120 = tpu.concatenate %118, %119 in 1 : vector<64x67xbf16>, vector<64x5xbf16> -> vector<64x72xbf16>
    %cst_70 = arith.constant dense<0.000000e+00> : vector<64x72xf32>
    %121 = tpu.matmul %117, %120, %cst_70 {dimension_numbers = #tpu.dot_dimension_numbers<[1], [0], [0], [1], [0, 0, 1, 1], [], []>} : vector<64x64xbf16>, vector<64x72xbf16>, vector<64x72xf32> -> vector<64x72xf32>
    %122 = arith.addf %116, %121 : vector<64x72xf32>
    %c448 = arith.constant 448 : index
    %c0_71 = arith.constant 0 : index
    %123 = vector.load %arg3[%c448, %c0_71] : memref<648x64xbf16, #tpu.memory_space<vmem>>, vector<64x64xbf16>
    %124 = vector.extract_strided_slice %84 {offsets = [0, 6], sizes = [64, 66], strides = [1, 1]} : vector<64x72xbf16> to vector<64x66xbf16>
    %125 = vector.extract_strided_slice %84 {offsets = [0, 0], sizes = [64, 6], strides = [1, 1]} : vector<64x72xbf16> to vector<64x6xbf16>
    %126 = tpu.concatenate %124, %125 in 1 : vector<64x66xbf16>, vector<64x6xbf16> -> vector<64x72xbf16>
    %cst_72 = arith.constant dense<0.000000e+00> : vector<64x72xf32>
    %127 = tpu.matmul %123, %126, %cst_72 {dimension_numbers = #tpu.dot_dimension_numbers<[1], [0], [0], [1], [0, 0, 1, 1], [], []>} : vector<64x64xbf16>, vector<64x72xbf16>, vector<64x72xf32> -> vector<64x72xf32>
    %128 = arith.addf %122, %127 : vector<64x72xf32>
    %c512 = arith.constant 512 : index
    %c0_73 = arith.constant 0 : index
    %129 = vector.load %arg3[%c512, %c0_73] : memref<648x64xbf16, #tpu.memory_space<vmem>>, vector<64x64xbf16>
    %130 = vector.extract_strided_slice %84 {offsets = [0, 7], sizes = [64, 65], strides = [1, 1]} : vector<64x72xbf16> to vector<64x65xbf16>
    %131 = vector.extract_strided_slice %84 {offsets = [0, 0], sizes = [64, 7], strides = [1, 1]} : vector<64x72xbf16> to vector<64x7xbf16>
    %132 = tpu.concatenate %130, %131 in 1 : vector<64x65xbf16>, vector<64x7xbf16> -> vector<64x72xbf16>
    %cst_74 = arith.constant dense<0.000000e+00> : vector<64x72xf32>
    %133 = tpu.matmul %129, %132, %cst_74 {dimension_numbers = #tpu.dot_dimension_numbers<[1], [0], [0], [1], [0, 0, 1, 1], [], []>} : vector<64x64xbf16>, vector<64x72xbf16>, vector<64x72xf32> -> vector<64x72xf32>
    %134 = arith.addf %128, %133 : vector<64x72xf32>
    %135 = vector.broadcast %83 : vector<64x1xf32> to vector<64x72xf32>
    %136 = arith.addf %134, %135 : vector<64x72xf32>
    %cst_75 = arith.constant 0.000000e+00 : f32
    %137 = vector.broadcast %cst_75 : f32 to vector<64x72xf32>
    %138 = arith.cmpf ogt, %136, %137 : vector<64x72xf32>
    %cst_76 = arith.constant 0.00999999977 : f32
    %139 = vector.broadcast %cst_76 : f32 to vector<64x72xf32>
    %140 = arith.mulf %139, %136 : vector<64x72xf32>
    %141 = arith.select %138, %136, %140 : vector<64x72xi1>, vector<64x72xf32>
    %142 = arith.addf %82, %141 : vector<64x72xf32>
    %c640 = arith.constant 640 : index
    %c0_77 = arith.constant 0 : index
    %143 = vector.load %arg3[%c640, %c0_77] : memref<648x64xbf16, #tpu.memory_space<vmem>>, vector<3x64xbf16>
    %144 = arith.truncf %142 : vector<64x72xf32> to vector<64x72xbf16>
    %cst_78 = arith.constant dense<0.000000e+00> : vector<3x72xf32>
    %145 = tpu.matmul %143, %144, %cst_78 {dimension_numbers = #tpu.dot_dimension_numbers<[1], [0], [0], [1], [0, 0, 1, 1], [], []>} : vector<3x64xbf16>, vector<64x72xbf16>, vector<3x72xf32> -> vector<3x72xf32>
    %c0_79 = arith.constant 0 : index
    %c2_80 = arith.constant 2 : index
    %146 = vector.load %arg4[%c0_79, %c2_80] : memref<184x64xf32, #tpu.memory_space<vmem>>, vector<3x1xf32>
    %147 = vector.broadcast %146 : vector<3x1xf32> to vector<3x72xf32>
    %148 = arith.addf %145, %147 : vector<3x72xf32>
    %cst_81 = arith.constant 0.000000e+00 : f32
    %149 = vector.broadcast %cst_81 : f32 to vector<3x72xf32>
    %150 = arith.cmpf ogt, %148, %149 : vector<3x72xf32>
    %cst_82 = arith.constant 0.00999999977 : f32
    %151 = vector.broadcast %cst_82 : f32 to vector<3x72xf32>
    %152 = arith.mulf %151, %148 : vector<3x72xf32>
    %153 = arith.select %150, %148, %152 : vector<3x72xi1>, vector<3x72xf32>
    %154 = vector.extract_strided_slice %153 {offsets = [0, 0], sizes = [1, 72], strides = [1, 1]} : vector<3x72xf32> to vector<1x72xf32>
    %155 = vector.extract_strided_slice %154 {offsets = [0, 0], sizes = [1, 36], strides = [1, 1]} : vector<1x72xf32> to vector<1x36xf32>
    %156 = vector.extract_strided_slice %154 {offsets = [0, 36], sizes = [1, 36], strides = [1, 1]} : vector<1x72xf32> to vector<1x36xf32>
    %157 = tpu.concatenate %155, %156 in 0 : vector<1x36xf32>, vector<1x36xf32> -> vector<2x36xf32>
    %158 = vector.extract_strided_slice %153 {offsets = [1, 0], sizes = [1, 72], strides = [1, 1]} : vector<3x72xf32> to vector<1x72xf32>
    %159 = vector.extract_strided_slice %153 {offsets = [2, 0], sizes = [1, 72], strides = [1, 1]} : vector<3x72xf32> to vector<1x72xf32>
    %160 = vector.extract_strided_slice %158 {offsets = [0, 0], sizes = [1, 36], strides = [1, 1]} : vector<1x72xf32> to vector<1x36xf32>
    %161 = vector.extract_strided_slice %159 {offsets = [0, 0], sizes = [1, 36], strides = [1, 1]} : vector<1x72xf32> to vector<1x36xf32>
    %162 = tpu.concatenate %160, %161 in 1 : vector<1x36xf32>, vector<1x36xf32> -> vector<1x72xf32>
    %163 = vector.extract_strided_slice %158 {offsets = [0, 36], sizes = [1, 36], strides = [1, 1]} : vector<1x72xf32> to vector<1x36xf32>
    %164 = vector.extract_strided_slice %159 {offsets = [0, 36], sizes = [1, 36], strides = [1, 1]} : vector<1x72xf32> to vector<1x36xf32>
    %165 = tpu.concatenate %163, %164 in 1 : vector<1x36xf32>, vector<1x36xf32> -> vector<1x72xf32>
    %166 = tpu.concatenate %162, %165 in 0 : vector<1x72xf32>, vector<1x72xf32> -> vector<2x72xf32>
    %c0_83 = arith.constant 0 : index
    %c0_84 = arith.constant 0 : index
    %167 = vector.load %arg1[%c0_83, %c0_84] : memref<2x1xf32, #tpu.memory_space<vmem>>, vector<2x1xf32>
    %c64_85 = arith.constant 64 : index
    %c0_86 = arith.constant 0 : index
    %168 = vector.load %arg4[%c64_85, %c0_86] : memref<184x64xf32, #tpu.memory_space<vmem>>, vector<36x20xf32>
    %cst_87 = arith.constant dense<0.000000e+00> : vector<2x20xf32>
    %169 = tpu.matmul %157, %168, %cst_87 {dimension_numbers = #tpu.dot_dimension_numbers<[1], [0], [0], [1], [0, 0, 1, 1], [], []>} : vector<2x36xf32>, vector<36x20xf32>, vector<2x20xf32> -> vector<2x20xf32>
    %c104 = arith.constant 104 : index
    %c0_88 = arith.constant 0 : index
    %170 = vector.load %arg4[%c104, %c0_88] : memref<184x64xf32, #tpu.memory_space<vmem>>, vector<1x20xf32>
    %171 = vector.broadcast %167 : vector<2x1xf32> to vector<2x20xf32>
    %172 = vector.broadcast %170 : vector<1x20xf32> to vector<2x20xf32>
    %173 = arith.mulf %171, %172 : vector<2x20xf32>
    %174 = arith.addf %169, %173 : vector<2x20xf32>
    %c105 = arith.constant 105 : index
    %c0_89 = arith.constant 0 : index
    %175 = vector.load %arg4[%c105, %c0_89] : memref<184x64xf32, #tpu.memory_space<vmem>>, vector<1x20xf32>
    %176 = vector.broadcast %175 : vector<1x20xf32> to vector<2x20xf32>
    %177 = arith.addf %174, %176 : vector<2x20xf32>
    %cst_90 = arith.constant 0.000000e+00 : f32
    %178 = vector.broadcast %cst_90 : f32 to vector<2x20xf32>
    %179 = arith.cmpf ogt, %177, %178 : vector<2x20xf32>
    %cst_91 = arith.constant 0.00999999977 : f32
    %180 = vector.broadcast %cst_91 : f32 to vector<2x20xf32>
    %181 = arith.mulf %180, %177 : vector<2x20xf32>
    %182 = arith.select %179, %177, %181 : vector<2x20xi1>, vector<2x20xf32>
    %c0_92 = arith.constant 0 : index
    %c3_93 = arith.constant 3 : index
    %183 = vector.load %arg4[%c0_92, %c3_93] : memref<184x64xf32, #tpu.memory_space<vmem>>, vector<20x1xf32>
    %cst_94 = arith.constant dense<0.000000e+00> : vector<2x1xf32>
    %184 = tpu.matmul %182, %183, %cst_94 {dimension_numbers = #tpu.dot_dimension_numbers<[1], [0], [0], [1], [0, 0, 1, 1], [], []>} : vector<2x20xf32>, vector<20x1xf32>, vector<2x1xf32> -> vector<2x1xf32>
    %c0_95 = arith.constant 0 : index
    %c4_96 = arith.constant 4 : index
    %185 = vector.load %arg4[%c0_95, %c4_96] : memref<184x64xf32, #tpu.memory_space<vmem>>, vector<1x1xf32>
    %186 = vector.broadcast %185 : vector<1x1xf32> to vector<2x1xf32>
    %187 = arith.addf %184, %186 : vector<2x1xf32>
    %c0_97 = arith.constant 0 : index
    %c0_98 = arith.constant 0 : index
    %188 = vector.load %arg6[%c0_97, %c0_98] : memref<2x1xf32, #tpu.memory_space<vmem>>, vector<2x1xf32>
    tpu.vector_store %arg6[%c0_97, %c0_98], %187 {strides = array<i32>} : memref<2x1xf32, #tpu.memory_space<vmem>>, vector<2x1xf32>,
    %c112 = arith.constant 112 : index
    %c0_99 = arith.constant 0 : index
    %189 = vector.load %arg4[%c112, %c0_99] : memref<184x64xf32, #tpu.memory_space<vmem>>, vector<72x16xf32>
    %cst_100 = arith.constant dense<0.000000e+00> : vector<2x16xf32>
    %190 = tpu.matmul %166, %189, %cst_100 {dimension_numbers = #tpu.dot_dimension_numbers<[1], [0], [0], [1], [0, 0, 1, 1], [], []>} : vector<2x72xf32>, vector<72x16xf32>, vector<2x16xf32> -> vector<2x16xf32>
    %c106 = arith.constant 106 : index
    %c0_101 = arith.constant 0 : index
    %191 = vector.load %arg4[%c106, %c0_101] : memref<184x64xf32, #tpu.memory_space<vmem>>, vector<1x16xf32>
    %192 = vector.broadcast %167 : vector<2x1xf32> to vector<2x16xf32>
    %193 = vector.broadcast %191 : vector<1x16xf32> to vector<2x16xf32>
    %194 = arith.mulf %192, %193 : vector<2x16xf32>
    %195 = arith.addf %190, %194 : vector<2x16xf32>
    %c107 = arith.constant 107 : index
    %c0_102 = arith.constant 0 : index
    %196 = vector.load %arg4[%c107, %c0_102] : memref<184x64xf32, #tpu.memory_space<vmem>>, vector<1x16xf32>
    %197 = vector.broadcast %196 : vector<1x16xf32> to vector<2x16xf32>
    %198 = arith.addf %195, %197 : vector<2x16xf32>
    %cst_103 = arith.constant dense<0xFF800000> : vector<2xf32>
    %199 = vector.multi_reduction <maximumf>, %198, %cst_103 [1] : vector<2x16xf32> to vector<2xf32>
    %200 = vector.shape_cast %199 : vector<2xf32> to vector<2x1xf32>
    %201 = vector.broadcast %200 : vector<2x1xf32> to vector<2x16xf32>
    %202 = arith.subf %198, %201 : vector<2x16xf32>
    %203 = math.exp %202 : vector<2x16xf32>
    %cst_104 = arith.constant dense<0.000000e+00> : vector<2xf32>
    %204 = vector.multi_reduction <add>, %203, %cst_104 [1] : vector<2x16xf32> to vector<2xf32>
    %205 = vector.shape_cast %204 : vector<2xf32> to vector<2x1xf32>
    %206 = vector.broadcast %205 : vector<2x1xf32> to vector<2x16xf32>
    %207 = arith.divf %203, %206 : vector<2x16xf32>
    %c0_105 = arith.constant 0 : index
    %c0_106 = arith.constant 0 : index
    %208 = vector.load %arg5[%c0_105, %c0_106] : memref<2x16xf32, #tpu.memory_space<vmem>>, vector<2x16xf32>
    tpu.vector_store %arg5[%c0_105, %c0_106], %207 {strides = array<i32>} : memref<2x16xf32, #tpu.memory_space<vmem>>, vector<2x16xf32>,
    return
  }
}

</mosaic_0001>

<llo_original>
// kernel: net_forward.1
$region0: #{net_forward.1}
  #allocation0 [shape = 'u32[]', space=smem, size = 0x4, offset = 0x4, fixed_abs, tag = 'smem constant byte address 0x4 - core index']
  #allocation1 [shape = 'u32[144,128]{1,0:T(1,128)}', space=vmem, size = 0x12000, scoped, tag = 'internal scratch']
  %s0 = inlined_call_operand.vmem [shape: f32[2,4,4,4], index: 0, kind: input, shape index: {}]
  %s1 = inlined_call_operand.vmem [shape: f32[2,1], index: 1, kind: input, shape index: {}]
  %s2 = inlined_call_operand.vmem [shape: bf16[33,72], index: 2, kind: input, shape index: {}]
  %s3 = inlined_call_operand.vmem [shape: bf16[648,64], index: 3, kind: input, shape index: {}]
  %s4 = inlined_call_operand.vmem [shape: f32[184,64], index: 4, kind: input, shape index: {}]
  %s5 = inlined_call_operand.hbm [shape: f32[2,16], index: 5, kind: output, shape index: {0}]
  %s6 = inlined_call_operand.vmem [shape: f32[2,1], index: 6, kind: output, shape index: {1}]
  %7 = xla_tuple %s5, %s6
  %s8 = sld [smem:[#allocation0]]
  $region38: #{net_forward.1} parent=0
    _
  %s10 = ssub.s32 1, %s8
  %s11 = scalar_select 0, %s10, %s8
  $region1: #{net_forward.1} parent=0
    #allocation2 [shape = 'u8[1024]{0}', space=vmem, size = 0x400, scoped, tag = 'output window, operand 0, single buffered']
    #allocation3 [shape = 's32[1]{0}', space=sflag, size = 0x4, scoped, tag = 'scoped memory for net_forward.1']
    %12 = vsyncpa [#allocation3], 0
    // Predicated region
    $region2: #{net_forward.1} parent=1 // pred_check
      _
    $region3: #{net_forward.1} parent=1 // pred_check_branch
      %14 = sbr.rel (0) target = $region5
    $region4: #{net_forward.1} parent=1 // pred_region
      _
    $region5: #{net_forward.1} parent=1 // pred_fallthru
      _
    // Predicated region
    $region6: #{net_forward.1} parent=1 // pred_check
      _
    $region7: #{net_forward.1} parent=1 // pred_check_branch
      %16 = sbr.rel (0) target = $region9
    $region8: #{net_forward.1} parent=1 // pred_region
      _
    $region9: #{net_forward.1} parent=1 // pred_fallthru
      _
    // Predicated region
    $region10: #{net_forward.1} parent=1 // pred_check
      _
    $region11: #{net_forward.1} parent=1 // pred_check_branch
      %18 = sbr.rel (0) target = $region13
    $region12: #{net_forward.1} parent=1 // pred_region
      _
    $region13: #{net_forward.1} parent=1 // pred_fallthru
      _
    // Predicated region
    $region14: #{net_forward.1} parent=1 // pred_check
      _
    $region15: #{net_forward.1} parent=1 // pred_check_branch
      %20 = sbr.rel (0) target = $region17
    $region16: #{net_forward.1} parent=1 // pred_region
      _
    $region17: #{net_forward.1} parent=1 // pred_fallthru
      _
    // Predicated region
    $region18: #{net_forward.1} parent=1 // pred_check
      _
    $region19: #{net_forward.1} parent=1 // pred_check_branch
      %22 = sbr.rel (0) target = $region21
    $region20: #{net_forward.1} parent=1 // pred_region
      _
    $region21: #{net_forward.1} parent=1 // pred_fallthru
      _
    %v24 = vld [vmem:[%s0] sm:$0x1]
    %v25 = vld [vmem:[%s0 + $0x4] sm:$0x1]
    %v26 = vld [vmem:[%s0 + $0x8] sm:$0x1]
    %v27 = vld [vmem:[%s0 + $0xc] sm:$0x1]
    %v28 = vld [vmem:[%s0 + $0x1] sm:$0x1]
    %v29 = vld [vmem:[%s0 + $0x5] sm:$0x1]
    %v30 = vld [vmem:[%s0 + $0x9] sm:$0x1]
    %v31 = vld [vmem:[%s0 + $0xd] sm:$0x1]
    %v32 = vld [vmem:[%s0 + $0x2] sm:$0x1]
    %v33 = vld [vmem:[%s0 + $0x6] sm:$0x1]
    %v34 = vld [vmem:[%s0 + $0xa] sm:$0x1]
    %v35 = vld [vmem:[%s0 + $0xe] sm:$0x1]
    %v36 = vld [vmem:[%s0 + $0x3] sm:$0x1]
    %v37 = vld [vmem:[%s0 + $0x7] sm:$0x1]
    %v38 = vld [vmem:[%s0 + $0xb] sm:$0x1]
    %v39 = vld [vmem:[%s0 + $0xf] sm:$0x1]
    %s40 = scalar_lea.vmem %s0, 16
    %v41 = vld [vmem:[%s40] sm:$0x1]
    %v42 = vld [vmem:[%s40 + $0x4] sm:$0x1]
    %v43 = vld [vmem:[%s40 + $0x8] sm:$0x1]
    %v44 = vld [vmem:[%s40 + $0xc] sm:$0x1]
    %v45 = vld [vmem:[%s40 + $0x1] sm:$0x1]
    %v46 = vld [vmem:[%s40 + $0x5] sm:$0x1]
    %v47 = vld [vmem:[%s40 + $0x9] sm:$0x1]
    %v48 = vld [vmem:[%s40 + $0xd] sm:$0x1]
    %v49 = vld [vmem:[%s40 + $0x2] sm:$0x1]
    %v50 = vld [vmem:[%s40 + $0x6] sm:$0x1]
    %v51 = vld [vmem:[%s40 + $0xa] sm:$0x1]
    %v52 = vld [vmem:[%s40 + $0xe] sm:$0x1]
    %v53 = vld [vmem:[%s40 + $0x3] sm:$0x1]
    %v54 = vld [vmem:[%s40 + $0x7] sm:$0x1]
    %v55 = vld [vmem:[%s40 + $0xb] sm:$0x1]
    %v56 = vld [vmem:[%s40 + $0xf] sm:$0x1]
    %v61 = vrot.slane %v25, 7
    %vm62 = vcmask 1041409
    %v63 = vsel %vm62, %v61, %v24
    %v64 = vrot.slane %v26, 6
    %vm65 = vcmask 1042434
    %v66 = vsel %vm65, %v64, %v63
    %v67 = vrot.slane %v27, 5
    %vm68 = vcmask 1043459
    %v69 = vsel %vm68, %v67, %v66
    %v75 = vrot.slane %v29, 7
    %v76 = vsel %vm62, %v75, %v28
    %v77 = vrot.slane %v30, 6
    %v78 = vsel %vm65, %v77, %v76
    %v79 = vrot.slane %v31, 5
    %v80 = vsel %vm68, %v79, %v78
    %81 = vrot.lane.b32.xlu0 %v80, 4
    %v82 = vpop.permute.xlu0 %81
    %v88 = vrot.slane %v33, 7
    %v89 = vsel %vm62, %v88, %v32
    %v90 = vrot.slane %v34, 6
    %v91 = vsel %vm65, %v90, %v89
    %v92 = vrot.slane %v35, 5
    %v93 = vsel %vm68, %v92, %v91
    %94 = vrot.lane.b32.xlu0 %v93, 8
    %v95 = vpop.permute.xlu0 %94
    %v101 = vrot.slane %v37, 7
    %v102 = vsel %vm62, %v101, %v36
    %v103 = vrot.slane %v38, 6
    %v104 = vsel %vm65, %v103, %v102
    %v105 = vrot.slane %v39, 5
    %v106 = vsel %vm68, %v105, %v104
    %107 = vrot.lane.b32.xlu0 %v106, 12
    %v108 = vpop.permute.xlu0 %107
    %v114 = vrot.slane %v42, 7
    %v115 = vsel %vm62, %v114, %v41
    %v116 = vrot.slane %v43, 6
    %v117 = vsel %vm65, %v116, %v115
    %v118 = vrot.slane %v44, 5
    %v119 = vsel %vm68, %v118, %v117
    %120 = vrot.lane.b32.xlu0 %v119, 16
    %v121 = vpop.permute.xlu0 %120
    %v127 = vrot.slane %v46, 7
    %v128 = vsel %vm62, %v127, %v45
    %v129 = vrot.slane %v47, 6
    %v130 = vsel %vm65, %v129, %v128
    %v131 = vrot.slane %v48, 5
    %v132 = vsel %vm68, %v131, %v130
    %133 = vrot.lane.b32.xlu0 %v132, 20
    %v134 = vpop.permute.xlu0 %133
    %v140 = vrot.slane %v50, 7
    %v141 = vsel %vm62, %v140, %v49
    %v142 = vrot.slane %v51, 6
    %v143 = vsel %vm65, %v142, %v141
    %v144 = vrot.slane %v52, 5
    %v145 = vsel %vm68, %v144, %v143
    %146 = vrot.lane.b32.xlu0 %v145, 24
    %v147 = vpop.permute.xlu0 %146
    %v153 = vrot.slane %v54, 7
    %v154 = vsel %vm62, %v153, %v53
    %v155 = vrot.slane %v55, 6
    %v156 = vsel %vm65, %v155, %v154
    %v157 = vrot.slane %v56, 5
    %v158 = vsel %vm68, %v157, %v156
    %159 = vrot.lane.b32.xlu0 %v158, 28
    %v160 = vpop.permute.xlu0 %159
    %vm162 = vcmask 31744
    %v163 = vsel %vm162, %v69, %v82
    %vm164 = vcmask 64512
    %v165 = vsel %vm164, %v163, %v95
    %vm166 = vcmask 97280
    %v167 = vsel %vm166, %v165, %v108
    %vm168 = vcmask 130048
    %v169 = vsel %vm168, %v167, %v121
    %vm170 = vcmask 162816
    %v171 = vsel %vm170, %v169, %v134
    %vm172 = vcmask 195584
    %v173 = vsel %vm172, %v171, %v147
    %vm174 = vcmask 228352
    %v175 = vsel %vm174, %v173, %v160
    %v176 = vpack.c.bf16 %v175, %v175
    %v177 = vld [vmem:[%s2] sm:$0xf]
    %v178 = vld [vmem:[%s2 + $0x4] sm:$0xf]
    %v179 = vld [vmem:[%s2 + $0x8] sm:$0xf]
    %v180 = vld [vmem:[%s2 + $0xc] sm:$0xf]
    %v185 = vunpack.c.l.b16 %v177
    %v186 = vunpack.c.l.b16 %v178
    %v187 = vunpack.c.l.b16 %v179
    %v188 = vunpack.c.l.b16 %v180
    %v189 = vpack.c.b16 %v186, %v185
    %v190 = vpack.c.b16 %v188, %v187
    %vm193 = vcmask 261120
    %v195 = vsel %vm193, %v176, 0
    %197 = vmatprep.subr.bf16.mxu0 0
    %198 = vmatpush1.bf16.msra.mxu0 %v189
    %199 = vmatprep.subr.bf16.mxu0 0
    %200 = vmatpush1.bf16.msra.mxu0 %v190
    %201 = vmatprep.subr.bf16.mxu0 0
    %202 = vmatpush1.bf16.msra.mxu0 0
    %203 = vmatprep.subr.bf16.mxu0 0
    %204 = vmatpush1.bf16.msra.mxu0 0
    %205 = vmatprep.subr.bf16.mxu0 0
    %206 = vmatpush1.bf16.msra.mxu0 0
    %207 = vmatprep.subr.bf16.mxu0 0
    %208 = vmatpush1.bf16.msra.mxu0 0
    %209 = vmatprep.subr.bf16.mxu0 0
    %210 = vmatpush1.bf16.msra.mxu0 0
    %211 = vmatprep.subr.bf16.mxu0 0
    %212 = vmatpush1.bf16.msra.mxu0 0
    %213 = vmatprep.subr.bf16.mxu0 0
    %214 = vmatpush1.bf16.msra.mxu0 0
    %215 = vmatprep.subr.bf16.mxu0 0
    %216 = vmatpush1.bf16.msra.mxu0 0
    %217 = vmatprep.subr.bf16.mxu0 0
    %218 = vmatpush1.bf16.msra.mxu0 0
    %219 = vmatprep.subr.bf16.mxu0 0
    %220 = vmatpush1.bf16.msra.mxu0 0
    %221 = vmatprep.subr.bf16.mxu0 0
    %222 = vmatpush1.bf16.msra.mxu0 0
    %223 = vmatprep.subr.bf16.mxu0 0
    %224 = vmatpush1.bf16.msra.mxu0 0
    %225 = vmatprep.subr.bf16.mxu0 0
    %226 = vmatpush1.bf16.msra.mxu0 0
    %227 = vmatprep.subr.bf16.mxu0 0
    %228 = vmatpush1.bf16.msra.mxu0 0
    %229 = vmatprep.mubr.bf16.mxu0 0
    %230 = vmatmul.mubr.bf16.gmra.mrb[0].mxu0 %v195
    %v231 = vpop.f32.mrb[0].mxu0
    %v232 = vadd.f32 0.0, %v231
    %v233 = vpop.f32.mrb[0].mxu0
    %v234 = vpop.f32.mrb[0].mxu0
    %v235 = vpop.f32.mrb[0].mxu0
    %236 = vdwg.mxu0
    %v237 = vpack.c.bf16 %v232, %v232
    %v238 = vld [vmem:[%s2 + $0x10] sm:$0x1]
    %v239 = vunpack.c.l.bf16 %v238
    %v240 = vld [vmem:[%s4] sm:$0xff]
    %v241 = vld [vmem:[%s4 + $0x8] sm:$0xff]
    %v242 = vld [vmem:[%s4 + $0x10] sm:$0xff]
    %v243 = vld [vmem:[%s4 + $0x18] sm:$0xff]
    %v244 = vld [vmem:[%s4 + $0x20] sm:$0xff]
    %v245 = vld [vmem:[%s4 + $0x28] sm:$0xff]
    %v246 = vld [vmem:[%s4 + $0x30] sm:$0xff]
    %v247 = vld [vmem:[%s4 + $0x38] sm:$0xff]
    %v248 = vld [vmem:[%s3 + $0x120] sm:$0xf]
    %v249 = vld [vmem:[%s3 + $0x124] sm:$0xf]
    %v250 = vld [vmem:[%s3 + $0x128] sm:$0xf]
    %v251 = vld [vmem:[%s3 + $0x12c] sm:$0xf]
    %v252 = vld [vmem:[%s3 + $0x130] sm:$0xf]
    %v253 = vld [vmem:[%s3 + $0x134] sm:$0xf]
    %v254 = vld [vmem:[%s3 + $0x138] sm:$0xf]
    %v255 = vld [vmem:[%s3 + $0x13c] sm:$0xf]
    %257 = vrot.lane.b32.xlu0 %v237, 63
    %v258 = vpop.permute.xlu0 %257
    %259 = vrot.lane.b32.xlu0 %v237, 7
    %v260 = vpop.permute.xlu0 %259
    %vm261 = vcmask 56320
    %v264 = vsel %vm261, %v258, %v260
    %265 = vrot.lane.b32.xlu0 %v237, 62
    %v266 = vpop.permute.xlu0 %265
    %267 = vrot.lane.b32.xlu0 %v237, 6
    %v268 = vpop.permute.xlu0 %267
    %vm269 = vcmask 48128
    %v272 = vsel %vm269, %v266, %v268
    %v281 = vunpack.c.l.b16 %v248
    %v282 = vunpack.c.l.b16 %v249
    %v283 = vunpack.c.l.b16 %v250
    %v284 = vunpack.c.l.b16 %v251
    %v285 = vunpack.c.l.b16 %v252
    %v286 = vunpack.c.l.b16 %v253
    %v287 = vunpack.c.l.b16 %v254
    %v288 = vunpack.c.l.b16 %v255
    %v289 = vpack.c.b16 %v282, %v281
    %v290 = vpack.c.b16 %v284, %v283
    %v291 = vpack.c.b16 %v286, %v285
    %v292 = vpack.c.b16 %v288, %v287
    %293 = vrot.lane.b32.xlu0 %v289, 124
    %v294 = vpop.permute.xlu0 %293
    %295 = vrot.lane.b32.xlu0 %v290, 124
    %v296 = vpop.permute.xlu0 %295
    %297 = vrot.lane.b32.xlu0 %v291, 124
    %v298 = vpop.permute.xlu0 %297
    %299 = vrot.lane.b32.xlu0 %v292, 124
    %v300 = vpop.permute.xlu0 %299
    %v302 = vsel %vm162, %v294, 0
    %v305 = vsel %vm162, %v296, 0
    %v308 = vsel %vm162, %v298, 0
    %v311 = vsel %vm162, %v300, 0
    %vm313 = vcmask 1041408
    %v314 = vsel %vm313, %v272, 0
    %316 = vmatprep.subr.bf16.mxu0 0
    %317 = vmatpush1.bf16.msra.mxu0 %v314
    %318 = vmatprep.subr.bf16.mxu0 0
    %319 = vmatpush1.bf16.msra.mxu0 0
    %320 = vmatprep.subr.bf16.mxu0 0
    %321 = vmatpush1.bf16.msra.mxu0 0
    %322 = vmatprep.subr.bf16.mxu0 0
    %323 = vmatpush1.bf16.msra.mxu0 0
    %324 = vmatprep.subr.bf16.mxu0 0
    %325 = vmatpush1.bf16.msra.mxu0 0
    %326 = vmatprep.subr.bf16.mxu0 0
    %327 = vmatpush1.bf16.msra.mxu0 0
    %328 = vmatprep.subr.bf16.mxu0 0
    %329 = vmatpush1.bf16.msra.mxu0 0
    %330 = vmatprep.subr.bf16.mxu0 0
    %331 = vmatpush1.bf16.msra.mxu0 0
    %332 = vmatprep.subr.bf16.mxu0 0
    %333 = vmatpush1.bf16.msra.mxu0 0
    %334 = vmatprep.subr.bf16.mxu0 0
    %335 = vmatpush1.bf16.msra.mxu0 0
    %336 = vmatprep.subr.bf16.mxu0 0
    %337 = vmatpush1.bf16.msra.mxu0 0
    %338 = vmatprep.subr.bf16.mxu0 0
    %339 = vmatpush1.bf16.msra.mxu0 0
    %340 = vmatprep.subr.bf16.mxu0 0
    %341 = vmatpush1.bf16.msra.mxu0 0
    %342 = vmatprep.subr.bf16.mxu0 0
    %343 = vmatpush1.bf16.msra.mxu0 0
    %344 = vmatprep.subr.bf16.mxu0 0
    %345 = vmatpush1.bf16.msra.mxu0 0
    %346 = vmatprep.subr.bf16.mxu0 0
    %347 = vmatpush1.bf16.msra.mxu0 0
    %348 = vmatprep.mubr.bf16.mxu0 0
    %349 = vmatmul.mubr.bf16.gmra.mrb[0].mxu0 %v302
    %v350 = vpop.f32.mrb[0].mxu0
    %v351 = vadd.f32 0.0, %v350
    %v352 = vpop.f32.mrb[0].mxu0
    %v353 = vpop.f32.mrb[0].mxu0
    %v354 = vadd.f32 0.0, %v353
    %v355 = vpop.f32.mrb[0].mxu0
    %356 = vmatprep.mubr.bf16.mxu0 0
    %357 = vmatmul.mubr.bf16.gmra.mrb[0].mxu0 %v305
    %v358 = vpop.f32.mrb[0].mxu0
    %v359 = vadd.f32 0.0, %v358
    %v360 = vpop.f32.mrb[0].mxu0
    %v361 = vpop.f32.mrb[0].mxu0
    %v362 = vadd.f32 0.0, %v361
    %v363 = vpop.f32.mrb[0].mxu0
    %364 = vmatprep.mubr.bf16.mxu0 0
    %365 = vmatmul.mubr.bf16.gmra.mrb[0].mxu0 %v308
    %v366 = vpop.f32.mrb[0].mxu0
    %v367 = vadd.f32 0.0, %v366
    %v368 = vpop.f32.mrb[0].mxu0
    %v369 = vpop.f32.mrb[0].mxu0
    %v370 = vadd.f32 0.0, %v369
    %v371 = vpop.f32.mrb[0].mxu0
    %372 = vmatprep.mubr.bf16.mxu0 0
    %373 = vmatmul.mubr.bf16.gmra.mrb[0].mxu0 %v311
    %v374 = vpop.f32.mrb[0].mxu0
    %v375 = vadd.f32 0.0, %v374
    %v376 = vpop.f32.mrb[0].mxu0
    %v377 = vpop.f32.mrb[0].mxu0
    %v378 = vadd.f32 0.0, %v377
    %v379 = vpop.f32.mrb[0].mxu0
    %380 = vdwg.mxu0
    %v382 = vsel %vm162, %v289, 0
    %v385 = vsel %vm162, %v290, 0
    %v388 = vsel %vm162, %v291, 0
    %v391 = vsel %vm162, %v292, 0
    %v393 = vsel %vm313, %v264, 0
    %395 = vmatprep.subr.bf16.mxu0 0
    %396 = vmatpush1.bf16.msra.mxu0 %v393
    %397 = vmatprep.subr.bf16.mxu0 0
    %398 = vmatpush1.bf16.msra.mxu0 0
    %399 = vmatprep.subr.bf16.mxu0 0
    %400 = vmatpush1.bf16.msra.mxu0 0
    %401 = vmatprep.subr.bf16.mxu0 0
    %402 = vmatpush1.bf16.msra.mxu0 0
    %403 = vmatprep.subr.bf16.mxu0 0
    %404 = vmatpush1.bf16.msra.mxu0 0
    %405 = vmatprep.subr.bf16.mxu0 0
    %406 = vmatpush1.bf16.msra.mxu0 0
    %407 = vmatprep.subr.bf16.mxu0 0
    %408 = vmatpush1.bf16.msra.mxu0 0
    %409 = vmatprep.subr.bf16.mxu0 0
    %410 = vmatpush1.bf16.msra.mxu0 0
    %411 = vmatprep.subr.bf16.mxu0 0
    %412 = vmatpush1.bf16.msra.mxu0 0
    %413 = vmatprep.subr.bf16.mxu0 0
    %414 = vmatpush1.bf16.msra.mxu0 0
    %415 = vmatprep.subr.bf16.mxu0 0
    %416 = vmatpush1.bf16.msra.mxu0 0
    %417 = vmatprep.subr.bf16.mxu0 0
    %418 = vmatpush1.bf16.msra.mxu0 0
    %419 = vmatprep.subr.bf16.mxu0 0
    %420 = vmatpush1.bf16.msra.mxu0 0
    %421 = vmatprep.subr.bf16.mxu0 0
    %422 = vmatpush1.bf16.msra.mxu0 0
    %423 = vmatprep.subr.bf16.mxu0 0
    %424 = vmatpush1.bf16.msra.mxu0 0
    %425 = vmatprep.subr.bf16.mxu0 0
    %426 = vmatpush1.bf16.msra.mxu0 0
    %427 = vmatprep.mubr.bf16.mxu0 0
    %428 = vmatmul.mubr.bf16.gmra.mrb[0].mxu0 %v382
    %v429 = vpop.f32.mrb[0].mxu0
    %v430 = vadd.f32 %v351, %v429
    %v431 = vpop.f32.mrb[0].mxu0
    %v432 = vpop.f32.mrb[0].mxu0
    %v433 = vadd.f32 %v354, %v432
    %v434 = vpop.f32.mrb[0].mxu0
    %435 = vmatprep.mubr.bf16.mxu0 0
    %436 = vmatmul.mubr.bf16.gmra.mrb[0].mxu0 %v385
    %v437 = vpop.f32.mrb[0].mxu0
    %v438 = vadd.f32 %v359, %v437
    %v439 = vpop.f32.mrb[0].mxu0
    %v440 = vpop.f32.mrb[0].mxu0
    %v441 = vadd.f32 %v362, %v440
    %v442 = vpop.f32.mrb[0].mxu0
    %443 = vmatprep.mubr.bf16.mxu0 0
    %444 = vmatmul.mubr.bf16.gmra.mrb[0].mxu0 %v388
    %v445 = vpop.f32.mrb[0].mxu0
    %v446 = vadd.f32 %v367, %v445
    %v447 = vpop.f32.mrb[0].mxu0
    %v448 = vpop.f32.mrb[0].mxu0
    %v449 = vadd.f32 %v370, %v448
    %v450 = vpop.f32.mrb[0].mxu0
    %451 = vmatprep.mubr.bf16.mxu0 0
    %452 = vmatmul.mubr.bf16.gmra.mrb[0].mxu0 %v391
    %v453 = vpop.f32.mrb[0].mxu0
    %v454 = vadd.f32 %v375, %v453
    %v455 = vpop.f32.mrb[0].mxu0
    %v456 = vpop.f32.mrb[0].mxu0
    %v457 = vadd.f32 %v378, %v456
    %v458 = vpop.f32.mrb[0].mxu0
    %459 = vdwg.mxu0
    %460 = vrot.lane.b32.xlu0 %v237, 61
    %v461 = vpop.permute.xlu0 %460
    %462 = vrot.lane.b32.xlu0 %v237, 5
    %v463 = vpop.permute.xlu0 %462
    %vm464 = vcmask 39936
    %v467 = vsel %vm464, %v461, %v463
    %468 = vrot.lane.b32.xlu0 %v289, 120
    %v469 = vpop.permute.xlu0 %468
    %470 = vrot.lane.b32.xlu0 %v290, 120
    %v471 = vpop.permute.xlu0 %470
    %472 = vrot.lane.b32.xlu0 %v291, 120
    %v473 = vpop.permute.xlu0 %472
    %474 = vrot.lane.b32.xlu0 %v292, 120
    %v475 = vpop.permute.xlu0 %474
    %v477 = vsel %vm162, %v469, 0
    %v480 = vsel %vm162, %v471, 0
    %v483 = vsel %vm162, %v473, 0
    %v486 = vsel %vm162, %v475, 0
    %v488 = vsel %vm313, %v467, 0
    %490 = vmatprep.subr.bf16.mxu0 0
    %491 = vmatpush1.bf16.msra.mxu0 %v488
    %492 = vmatprep.subr.bf16.mxu0 0
    %493 = vmatpush1.bf16.msra.mxu0 0
    %494 = vmatprep.subr.bf16.mxu0 0
    %495 = vmatpush1.bf16.msra.mxu0 0
    %496 = vmatprep.subr.bf16.mxu0 0
    %497 = vmatpush1.bf16.msra.mxu0 0
    %498 = vmatprep.subr.bf16.mxu0 0
    %499 = vmatpush1.bf16.msra.mxu0 0
    %500 = vmatprep.subr.bf16.mxu0 0
    %501 = vmatpush1.bf16.msra.mxu0 0
    %502 = vmatprep.subr.bf16.mxu0 0
    %503 = vmatpush1.bf16.msra.mxu0 0
    %504 = vmatprep.subr.bf16.mxu0 0
    %505 = vmatpush1.bf16.msra.mxu0 0
    %506 = vmatprep.subr.bf16.mxu0 0
    %507 = vmatpush1.bf16.msra.mxu0 0
    %508 = vmatprep.subr.bf16.mxu0 0
    %509 = vmatpush1.bf16.msra.mxu0 0
    %510 = vmatprep.subr.bf16.mxu0 0
    %511 = vmatpush1.bf16.msra.mxu0 0
    %512 = vmatprep.subr.bf16.mxu0 0
    %513 = vmatpush1.bf16.msra.mxu0 0
    %514 = vmatprep.subr.bf16.mxu0 0
    %515 = vmatpush1.bf16.msra.mxu0 0
    %516 = vmatprep.subr.bf16.mxu0 0
    %517 = vmatpush1.bf16.msra.mxu0 0
    %518 = vmatprep.subr.bf16.mxu0 0
    %519 = vmatpush1.bf16.msra.mxu0 0
    %520 = vmatprep.subr.bf16.mxu0 0
    %521 = vmatpush1.bf16.msra.mxu0 0
    %522 = vmatprep.mubr.bf16.mxu0 0
    %523 = vmatmul.mubr.bf16.gmra.mrb[0].mxu0 %v477
    %v524 = vpop.f32.mrb[0].mxu0
    %v525 = vadd.f32 0.0, %v524
    %v526 = vpop.f32.mrb[0].mxu0
    %v527 = vpop.f32.mrb[0].mxu0
    %v528 = vadd.f32 0.0, %v527
    %v529 = vpop.f32.mrb[0].mxu0
    %530 = vmatprep.mubr.bf16.mxu0 0
    %531 = vmatmul.mubr.bf16.gmra.mrb[0].mxu0 %v480
    %v532 = vpop.f32.mrb[0].mxu0
    %v533 = vadd.f32 0.0, %v532
    %v534 = vpop.f32.mrb[0].mxu0
    %v535 = vpop.f32.mrb[0].mxu0
    %v536 = vadd.f32 0.0, %v535
    %v537 = vpop.f32.mrb[0].mxu0
    %538 = vmatprep.mubr.bf16.mxu0 0
    %539 = vmatmul.mubr.bf16.gmra.mrb[0].mxu0 %v483
    %v540 = vpop.f32.mrb[0].mxu0
    %v541 = vadd.f32 0.0, %v540
    %v542 = vpop.f32.mrb[0].mxu0
    %v543 = vpop.f32.mrb[0].mxu0
    %v544 = vadd.f32 0.0, %v543
    %v545 = vpop.f32.mrb[0].mxu0
    %546 = vmatprep.mubr.bf16.mxu0 0
    %547 = vmatmul.mubr.bf16.gmra.mrb[0].mxu0 %v486
    %v548 = vpop.f32.mrb[0].mxu0
    %v549 = vadd.f32 0.0, %v548
    %v550 = vpop.f32.mrb[0].mxu0
    %v551 = vpop.f32.mrb[0].mxu0
    %v552 = vadd.f32 0.0, %v551
    %v553 = vpop.f32.mrb[0].mxu0
    %554 = vdwg.mxu0
    %v555 = vadd.f32 %v430, %v525
    %v556 = vadd.f32 %v433, %v528
    %v557 = vadd.f32 %v438, %v533
    %v558 = vadd.f32 %v441, %v536
    %v559 = vadd.f32 %v446, %v541
    %v560 = vadd.f32 %v449, %v544
    %v561 = vadd.f32 %v454, %v549
    %v562 = vadd.f32 %v457, %v552
    %563 = vrot.lane.b32.xlu0 %v237, 57
    %v564 = vpop.permute.xlu0 %563
    %565 = vrot.lane.b32.xlu0 %v237, 1
    %v566 = vpop.permute.xlu0 %565
    %vm567 = vcmask 7168
    %v570 = vsel %vm567, %v564, %v566
    %571 = vrot.lane.b32.xlu0 %v289, 116
    %v572 = vpop.permute.xlu0 %571
    %573 = vrot.lane.b32.xlu0 %v290, 116
    %v574 = vpop.permute.xlu0 %573
    %575 = vrot.lane.b32.xlu0 %v291, 116
    %v576 = vpop.permute.xlu0 %575
    %577 = vrot.lane.b32.xlu0 %v292, 116
    %v578 = vpop.permute.xlu0 %577
    %v580 = vsel %vm162, %v572, 0
    %v583 = vsel %vm162, %v574, 0
    %v586 = vsel %vm162, %v576, 0
    %v589 = vsel %vm162, %v578, 0
    %v591 = vsel %vm313, %v570, 0
    %593 = vmatprep.subr.bf16.mxu0 0
    %594 = vmatpush1.bf16.msra.mxu0 %v591
    %595 = vmatprep.subr.bf16.mxu0 0
    %596 = vmatpush1.bf16.msra.mxu0 0
    %597 = vmatprep.subr.bf16.mxu0 0
    %598 = vmatpush1.bf16.msra.mxu0 0
    %599 = vmatprep.subr.bf16.mxu0 0
    %600 = vmatpush1.bf16.msra.mxu0 0
    %601 = vmatprep.subr.bf16.mxu0 0
    %602 = vmatpush1.bf16.msra.mxu0 0
    %603 = vmatprep.subr.bf16.mxu0 0
    %604 = vmatpush1.bf16.msra.mxu0 0
    %605 = vmatprep.subr.bf16.mxu0 0
    %606 = vmatpush1.bf16.msra.mxu0 0
    %607 = vmatprep.subr.bf16.mxu0 0
    %608 = vmatpush1.bf16.msra.mxu0 0
    %609 = vmatprep.subr.bf16.mxu0 0
    %610 = vmatpush1.bf16.msra.mxu0 0
    %611 = vmatprep.subr.bf16.mxu0 0
    %612 = vmatpush1.bf16.msra.mxu0 0
    %613 = vmatprep.subr.bf16.mxu0 0
    %614 = vmatpush1.bf16.msra.mxu0 0
    %615 = vmatprep.subr.bf16.mxu0 0
    %616 = vmatpush1.bf16.msra.mxu0 0
    %617 = vmatprep.subr.bf16.mxu0 0
    %618 = vmatpush1.bf16.msra.mxu0 0
    %619 = vmatprep.subr.bf16.mxu0 0
    %620 = vmatpush1.bf16.msra.mxu0 0
    %621 = vmatprep.subr.bf16.mxu0 0
    %622 = vmatpush1.bf16.msra.mxu0 0
    %623 = vmatprep.subr.bf16.mxu0 0
    %624 = vmatpush1.bf16.msra.mxu0 0
    %625 = vmatprep.mubr.bf16.mxu0 0
    %626 = vmatmul.mubr.bf16.gmra.mrb[0].mxu0 %v580
    %v627 = vpop.f32.mrb[0].mxu0
    %v628 = vadd.f32 0.0, %v627
    %v629 = vpop.f32.mrb[0].mxu0
    %v630 = vpop.f32.mrb[0].mxu0
    %v631 = vadd.f32 0.0, %v630
    %v632 = vpop.f32.mrb[0].mxu0
    %633 = vmatprep.mubr.bf16.mxu0 0
    %634 = vmatmul.mubr.bf16.gmra.mrb[0].mxu0 %v583
    %v635 = vpop.f32.mrb[0].mxu0
    %v636 = vadd.f32 0.0, %v635
    %v637 = vpop.f32.mrb[0].mxu0
    %v638 = vpop.f32.mrb[0].mxu0
    %v639 = vadd.f32 0.0, %v638
    %v640 = vpop.f32.mrb[0].mxu0
    %641 = vmatprep.mubr.bf16.mxu0 0
    %642 = vmatmul.mubr.bf16.gmra.mrb[0].mxu0 %v586
    %v643 = vpop.f32.mrb[0].mxu0
    %v644 = vadd.f32 0.0, %v643
    %v645 = vpop.f32.mrb[0].mxu0
    %v646 = vpop.f32.mrb[0].mxu0
    %v647 = vadd.f32 0.0, %v646
    %v648 = vpop.f32.mrb[0].mxu0
    %649 = vmatprep.mubr.bf16.mxu0 0
    %650 = vmatmul.mubr.bf16.gmra.mrb[0].mxu0 %v589
    %v651 = vpop.f32.mrb[0].mxu0
    %v652 = vadd.f32 0.0, %v651
    %v653 = vpop.f32.mrb[0].mxu0
    %v654 = vpop.f32.mrb[0].mxu0
    %v655 = vadd.f32 0.0, %v654
    %v656 = vpop.f32.mrb[0].mxu0
    %657 = vdwg.mxu0
    %v658 = vadd.f32 %v555, %v628
    %v659 = vadd.f32 %v556, %v631
    %v660 = vadd.f32 %v557, %v636
    %v661 = vadd.f32 %v558, %v639
    %v662 = vadd.f32 %v559, %v644
    %v663 = vadd.f32 %v560, %v647
    %v664 = vadd.f32 %v561, %v652
    %v665 = vadd.f32 %v562, %v655
    %666 = vrot.lane.b32.xlu0 %v289, 112
    %v667 = vpop.permute.xlu0 %666
    %668 = vrot.lane.b32.xlu0 %v290, 112
    %v669 = vpop.permute.xlu0 %668
    %670 = vrot.lane.b32.xlu0 %v291, 112
    %v671 = vpop.permute.xlu0 %670
    %672 = vrot.lane.b32.xlu0 %v292, 112
    %v673 = vpop.permute.xlu0 %672
    %v675 = vsel %vm162, %v667, 0
    %v678 = vsel %vm162, %v669, 0
    %v681 = vsel %vm162, %v671, 0
    %v684 = vsel %vm162, %v673, 0
    %v687 = vsel %vm313, %v237, 0
    %689 = vmatprep.subr.bf16.mxu0 0
    %690 = vmatpush1.bf16.msra.mxu0 %v687
    %691 = vmatprep.subr.bf16.mxu0 0
    %692 = vmatpush1.bf16.msra.mxu0 0
    %693 = vmatprep.subr.bf16.mxu0 0
    %694 = vmatpush1.bf16.msra.mxu0 0
    %695 = vmatprep.subr.bf16.mxu0 0
    %696 = vmatpush1.bf16.msra.mxu0 0
    %697 = vmatprep.subr.bf16.mxu0 0
    %698 = vmatpush1.bf16.msra.mxu0 0
    %699 = vmatprep.subr.bf16.mxu0 0
    %700 = vmatpush1.bf16.msra.mxu0 0
    %701 = vmatprep.subr.bf16.mxu0 0
    %702 = vmatpush1.bf16.msra.mxu0 0
    %703 = vmatprep.subr.bf16.mxu0 0
    %704 = vmatpush1.bf16.msra.mxu0 0
    %705 = vmatprep.subr.bf16.mxu0 0
    %706 = vmatpush1.bf16.msra.mxu0 0
    %707 = vmatprep.subr.bf16.mxu0 0
    %708 = vmatpush1.bf16.msra.mxu0 0
    %709 = vmatprep.subr.bf16.mxu0 0
    %710 = vmatpush1.bf16.msra.mxu0 0
    %711 = vmatprep.subr.bf16.mxu0 0
    %712 = vmatpush1.bf16.msra.mxu0 0
    %713 = vmatprep.subr.bf16.mxu0 0
    %714 = vmatpush1.bf16.msra.mxu0 0
    %715 = vmatprep.subr.bf16.mxu0 0
    %716 = vmatpush1.bf16.msra.mxu0 0
    %717 = vmatprep.subr.bf16.mxu0 0
    %718 = vmatpush1.bf16.msra.mxu0 0
    %719 = vmatprep.subr.bf16.mxu0 0
    %720 = vmatpush1.bf16.msra.mxu0 0
    %721 = vmatprep.mubr.bf16.mxu0 0
    %722 = vmatmul.mubr.bf16.gmra.mrb[0].mxu0 %v675
    %v723 = vpop.f32.mrb[0].mxu0
    %v724 = vadd.f32 0.0, %v723
    %v725 = vpop.f32.mrb[0].mxu0
    %v726 = vpop.f32.mrb[0].mxu0
    %v727 = vadd.f32 0.0, %v726
    %v728 = vpop.f32.mrb[0].mxu0
    %729 = vmatprep.mubr.bf16.mxu0 0
    %730 = vmatmul.mubr.bf16.gmra.mrb[0].mxu0 %v678
    %v731 = vpop.f32.mrb[0].mxu0
    %v732 = vadd.f32 0.0, %v731
    %v733 = vpop.f32.mrb[0].mxu0
    %v734 = vpop.f32.mrb[0].mxu0
    %v735 = vadd.f32 0.0, %v734
    %v736 = vpop.f32.mrb[0].mxu0
    %737 = vmatprep.mubr.bf16.mxu0 0
    %738 = vmatmul.mubr.bf16.gmra.mrb[0].mxu0 %v681
    %v739 = vpop.f32.mrb[0].mxu0
    %v740 = vadd.f32 0.0, %v739
    %v741 = vpop.f32.mrb[0].mxu0
    %v742 = vpop.f32.mrb[0].mxu0
    %v743 = vadd.f32 0.0, %v742
    %v744 = vpop.f32.mrb[0].mxu0
    %745 = vmatprep.mubr.bf16.mxu0 0
    %746 = vmatmul.mubr.bf16.gmra.mrb[0].mxu0 %v684
    %v747 = vpop.f32.mrb[0].mxu0
    %v748 = vadd.f32 0.0, %v747
    %v749 = vpop.f32.mrb[0].mxu0
    %v750 = vpop.f32.mrb[0].mxu0
    %v751 = vadd.f32 0.0, %v750
    %v752 = vpop.f32.mrb[0].mxu0
    %753 = vdwg.mxu0
    %v754 = vadd.f32 %v658, %v724
    %v755 = vadd.f32 %v659, %v727
    %v756 = vadd.f32 %v660, %v732
    %v757 = vadd.f32 %v661, %v735
    %v758 = vadd.f32 %v662, %v740
    %v759 = vadd.f32 %v663, %v743
    %v760 = vadd.f32 %v664, %v748
    %v761 = vadd.f32 %v665, %v751
    %762 = vrot.lane.b32.xlu0 %v237, 127
    %v763 = vpop.permute.xlu0 %762
    %764 = vrot.lane.b32.xlu0 %v237, 71
    %v765 = vpop.permute.xlu0 %764
    %vm766 = vcmask 580608
    %v769 = vsel %vm766, %v763, %v765
    %770 = vrot.lane.b32.xlu0 %v289, 108
    %v771 = vpop.permute.xlu0 %770
    %772 = vrot.lane.b32.xlu0 %v290, 108
    %v773 = vpop.permute.xlu0 %772
    %774 = vrot.lane.b32.xlu0 %v291, 108
    %v775 = vpop.permute.xlu0 %774
    %776 = vrot.lane.b32.xlu0 %v292, 108
    %v777 = vpop.permute.xlu0 %776
    %v779 = vsel %vm162, %v771, 0
    %v782 = vsel %vm162, %v773, 0
    %v785 = vsel %vm162, %v775, 0
    %v788 = vsel %vm162, %v777, 0
    %v790 = vsel %vm313, %v769, 0
    %792 = vmatprep.subr.bf16.mxu0 0
    %793 = vmatpush1.bf16.msra.mxu0 %v790
    %794 = vmatprep.subr.bf16.mxu0 0
    %795 = vmatpush1.bf16.msra.mxu0 0
    %796 = vmatprep.subr.bf16.mxu0 0
    %797 = vmatpush1.bf16.msra.mxu0 0
    %798 = vmatprep.subr.bf16.mxu0 0
    %799 = vmatpush1.bf16.msra.mxu0 0
    %800 = vmatprep.subr.bf16.mxu0 0
    %801 = vmatpush1.bf16.msra.mxu0 0
    %802 = vmatprep.subr.bf16.mxu0 0
    %803 = vmatpush1.bf16.msra.mxu0 0
    %804 = vmatprep.subr.bf16.mxu0 0
    %805 = vmatpush1.bf16.msra.mxu0 0
    %806 = vmatprep.subr.bf16.mxu0 0
    %807 = vmatpush1.bf16.msra.mxu0 0
    %808 = vmatprep.subr.bf16.mxu0 0
    %809 = vmatpush1.bf16.msra.mxu0 0
    %810 = vmatprep.subr.bf16.mxu0 0
    %811 = vmatpush1.bf16.msra.mxu0 0
    %812 = vmatprep.subr.bf16.mxu0 0
    %813 = vmatpush1.bf16.msra.mxu0 0
    %814 = vmatprep.subr.bf16.mxu0 0
    %815 = vmatpush1.bf16.msra.mxu0 0
    %816 = vmatprep.subr.bf16.mxu0 0
    %817 = vmatpush1.bf16.msra.mxu0 0
    %818 = vmatprep.subr.bf16.mxu0 0
    %819 = vmatpush1.bf16.msra.mxu0 0
    %820 = vmatprep.subr.bf16.mxu0 0
    %821 = vmatpush1.bf16.msra.mxu0 0
    %822 = vmatprep.subr.bf16.mxu0 0
    %823 = vmatpush1.bf16.msra.mxu0 0
    %824 = vmatprep.mubr.bf16.mxu0 0
    %825 = vmatmul.mubr.bf16.gmra.mrb[0].mxu0 %v779
    %v826 = vpop.f32.mrb[0].mxu0
    %v827 = vadd.f32 0.0, %v826
    %v828 = vpop.f32.mrb[0].mxu0
    %v829 = vpop.f32.mrb[0].mxu0
    %v830 = vadd.f32 0.0, %v829
    %v831 = vpop.f32.mrb[0].mxu0
    %832 = vmatprep.mubr.bf16.mxu0 0
    %833 = vmatmul.mubr.bf16.gmra.mrb[0].mxu0 %v782
    %v834 = vpop.f32.mrb[0].mxu0
    %v835 = vadd.f32 0.0, %v834
    %v836 = vpop.f32.mrb[0].mxu0
    %v837 = vpop.f32.mrb[0].mxu0
    %v838 = vadd.f32 0.0, %v837
    %v839 = vpop.f32.mrb[0].mxu0
    %840 = vmatprep.mubr.bf16.mxu0 0
    %841 = vmatmul.mubr.bf16.gmra.mrb[0].mxu0 %v785
    %v842 = vpop.f32.mrb[0].mxu0
    %v843 = vadd.f32 0.0, %v842
    %v844 = vpop.f32.mrb[0].mxu0
    %v845 = vpop.f32.mrb[0].mxu0
    %v846 = vadd.f32 0.0, %v845
    %v847 = vpop.f32.mrb[0].mxu0
    %848 = vmatprep.mubr.bf16.mxu0 0
    %849 = vmatmul.mubr.bf16.gmra.mrb[0].mxu0 %v788
    %v850 = vpop.f32.mrb[0].mxu0
    %v851 = vadd.f32 0.0, %v850
    %v852 = vpop.f32.mrb[0].mxu0
    %v853 = vpop.f32.mrb[0].mxu0
    %v854 = vadd.f32 0.0, %v853
    %v855 = vpop.f32.mrb[0].mxu0
    %856 = vdwg.mxu0
    %v857 = vadd.f32 %v754, %v827
    %v858 = vadd.f32 %v755, %v830
    %v859 = vadd.f32 %v756, %v835
    %v860 = vadd.f32 %v757, %v838
    %v861 = vadd.f32 %v758, %v843
    %v862 = vadd.f32 %v759, %v846
    %v863 = vadd.f32 %v760, %v851
    %v864 = vadd.f32 %v761, %v854
    %865 = vrot.lane.b32.xlu0 %v237, 123
    %v866 = vpop.permute.xlu0 %865
    %867 = vrot.lane.b32.xlu0 %v237, 67
    %v868 = vpop.permute.xlu0 %867
    %vm869 = vcmask 547840
    %v872 = vsel %vm869, %v866, %v868
    %873 = vrot.lane.b32.xlu0 %v289, 104
    %v874 = vpop.permute.xlu0 %873
    %875 = vrot.lane.b32.xlu0 %v290, 104
    %v876 = vpop.permute.xlu0 %875
    %877 = vrot.lane.b32.xlu0 %v291, 104
    %v878 = vpop.permute.xlu0 %877
    %879 = vrot.lane.b32.xlu0 %v292, 104
    %v880 = vpop.permute.xlu0 %879
    %v882 = vsel %vm162, %v874, 0
    %v885 = vsel %vm162, %v876, 0
    %v888 = vsel %vm162, %v878, 0
    %v891 = vsel %vm162, %v880, 0
    %v893 = vsel %vm313, %v872, 0
    %895 = vmatprep.subr.bf16.mxu0 0
    %896 = vmatpush1.bf16.msra.mxu0 %v893
    %897 = vmatprep.subr.bf16.mxu0 0
    %898 = vmatpush1.bf16.msra.mxu0 0
    %899 = vmatprep.subr.bf16.mxu0 0
    %900 = vmatpush1.bf16.msra.mxu0 0
    %901 = vmatprep.subr.bf16.mxu0 0
    %902 = vmatpush1.bf16.msra.mxu0 0
    %903 = vmatprep.subr.bf16.mxu0 0
    %904 = vmatpush1.bf16.msra.mxu0 0
    %905 = vmatprep.subr.bf16.mxu0 0
    %906 = vmatpush1.bf16.msra.mxu0 0
    %907 = vmatprep.subr.bf16.mxu0 0
    %908 = vmatpush1.bf16.msra.mxu0 0
    %909 = vmatprep.subr.bf16.mxu0 0
    %910 = vmatpush1.bf16.msra.mxu0 0
    %911 = vmatprep.subr.bf16.mxu0 0
    %912 = vmatpush1.bf16.msra.mxu0 0
    %913 = vmatprep.subr.bf16.mxu0 0
    %914 = vmatpush1.bf16.msra.mxu0 0
    %915 = vmatprep.subr.bf16.mxu0 0
    %916 = vmatpush1.bf16.msra.mxu0 0
    %917 = vmatprep.subr.bf16.mxu0 0
    %918 = vmatpush1.bf16.msra.mxu0 0
    %919 = vmatprep.subr.bf16.mxu0 0
    %920 = vmatpush1.bf16.msra.mxu0 0
    %921 = vmatprep.subr.bf16.mxu0 0
    %922 = vmatpush1.bf16.msra.mxu0 0
    %923 = vmatprep.subr.bf16.mxu0 0
    %924 = vmatpush1.bf16.msra.mxu0 0
    %925 = vmatprep.subr.bf16.mxu0 0
    %926 = vmatpush1.bf16.msra.mxu0 0
    %927 = vmatprep.mubr.bf16.mxu0 0
    %928 = vmatmul.mubr.bf16.gmra.mrb[0].mxu0 %v882
    %v929 = vpop.f32.mrb[0].mxu0
    %v930 = vadd.f32 0.0, %v929
    %v931 = vpop.f32.mrb[0].mxu0
    %v932 = vpop.f32.mrb[0].mxu0
    %v933 = vadd.f32 0.0, %v932
    %v934 = vpop.f32.mrb[0].mxu0
    %935 = vmatprep.mubr.bf16.mxu0 0
    %936 = vmatmul.mubr.bf16.gmra.mrb[0].mxu0 %v885
    %v937 = vpop.f32.mrb[0].mxu0
    %v938 = vadd.f32 0.0, %v937
    %v939 = vpop.f32.mrb[0].mxu0
    %v940 = vpop.f32.mrb[0].mxu0
    %v941 = vadd.f32 0.0, %v940
    %v942 = vpop.f32.mrb[0].mxu0
    %943 = vmatprep.mubr.bf16.mxu0 0
    %944 = vmatmul.mubr.bf16.gmra.mrb[0].mxu0 %v888
    %v945 = vpop.f32.mrb[0].mxu0
    %v946 = vadd.f32 0.0, %v945
    %v947 = vpop.f32.mrb[0].mxu0
    %v948 = vpop.f32.mrb[0].mxu0
    %v949 = vadd.f32 0.0, %v948
    %v950 = vpop.f32.mrb[0].mxu0
    %951 = vmatprep.mubr.bf16.mxu0 0
    %952 = vmatmul.mubr.bf16.gmra.mrb[0].mxu0 %v891
    %v953 = vpop.f32.mrb[0].mxu0
    %v954 = vadd.f32 0.0, %v953
    %v955 = vpop.f32.mrb[0].mxu0
    %v956 = vpop.f32.mrb[0].mxu0
    %v957 = vadd.f32 0.0, %v956
    %v958 = vpop.f32.mrb[0].mxu0
    %959 = vdwg.mxu0
    %v960 = vadd.f32 %v857, %v930
    %v961 = vadd.f32 %v858, %v933
    %v962 = vadd.f32 %v859, %v938
    %v963 = vadd.f32 %v860, %v941
    %v964 = vadd.f32 %v861, %v946
    %v965 = vadd.f32 %v862, %v949
    %v966 = vadd.f32 %v863, %v954
    %v967 = vadd.f32 %v864, %v957
    %968 = vrot.lane.b32.xlu0 %v237, 122
    %v969 = vpop.permute.xlu0 %968
    %970 = vrot.lane.b32.xlu0 %v237, 66
    %v971 = vpop.permute.xlu0 %970
    %vm972 = vcmask 539648
    %v975 = vsel %vm972, %v969, %v971
    %976 = vrot.lane.b32.xlu0 %v289, 100
    %v977 = vpop.permute.xlu0 %976
    %978 = vrot.lane.b32.xlu0 %v290, 100
    %v979 = vpop.permute.xlu0 %978
    %980 = vrot.lane.b32.xlu0 %v291, 100
    %v981 = vpop.permute.xlu0 %980
    %982 = vrot.lane.b32.xlu0 %v292, 100
    %v983 = vpop.permute.xlu0 %982
    %v985 = vsel %vm162, %v977, 0
    %v988 = vsel %vm162, %v979, 0
    %v991 = vsel %vm162, %v981, 0
    %v994 = vsel %vm162, %v983, 0
    %v996 = vsel %vm313, %v975, 0
    %998 = vmatprep.subr.bf16.mxu0 0
    %999 = vmatpush1.bf16.msra.mxu0 %v996
    %1000 = vmatprep.subr.bf16.mxu0 0
    %1001 = vmatpush1.bf16.msra.mxu0 0
    %1002 = vmatprep.subr.bf16.mxu0 0
    %1003 = vmatpush1.bf16.msra.mxu0 0
    %1004 = vmatprep.subr.bf16.mxu0 0
    %1005 = vmatpush1.bf16.msra.mxu0 0
    %1006 = vmatprep.subr.bf16.mxu0 0
    %1007 = vmatpush1.bf16.msra.mxu0 0
    %1008 = vmatprep.subr.bf16.mxu0 0
    %1009 = vmatpush1.bf16.msra.mxu0 0
    %1010 = vmatprep.subr.bf16.mxu0 0
    %1011 = vmatpush1.bf16.msra.mxu0 0
    %1012 = vmatprep.subr.bf16.mxu0 0
    %1013 = vmatpush1.bf16.msra.mxu0 0
    %1014 = vmatprep.subr.bf16.mxu0 0
    %1015 = vmatpush1.bf16.msra.mxu0 0
    %1016 = vmatprep.subr.bf16.mxu0 0
    %1017 = vmatpush1.bf16.msra.mxu0 0
    %1018 = vmatprep.subr.bf16.mxu0 0
    %1019 = vmatpush1.bf16.msra.mxu0 0
    %1020 = vmatprep.subr.bf16.mxu0 0
    %1021 = vmatpush1.bf16.msra.mxu0 0
    %1022 = vmatprep.subr.bf16.mxu0 0
    %1023 = vmatpush1.bf16.msra.mxu0 0
    %1024 = vmatprep.subr.bf16.mxu0 0
    %1025 = vmatpush1.bf16.msra.mxu0 0
    %1026 = vmatprep.subr.bf16.mxu0 0
    %1027 = vmatpush1.bf16.msra.mxu0 0
    %1028 = vmatprep.subr.bf16.mxu0 0
    %1029 = vmatpush1.bf16.msra.mxu0 0
    %1030 = vmatprep.mubr.bf16.mxu0 0
    %1031 = vmatmul.mubr.bf16.gmra.mrb[0].mxu0 %v985
    %v1032 = vpop.f32.mrb[0].mxu0
    %v1033 = vadd.f32 0.0, %v1032
    %v1034 = vpop.f32.mrb[0].mxu0
    %v1035 = vpop.f32.mrb[0].mxu0
    %v1036 = vadd.f32 0.0, %v1035
    %v1037 = vpop.f32.mrb[0].mxu0
    %1038 = vmatprep.mubr.bf16.mxu0 0
    %1039 = vmatmul.mubr.bf16.gmra.mrb[0].mxu0 %v988
    %v1040 = vpop.f32.mrb[0].mxu0
    %v1041 = vadd.f32 0.0, %v1040
    %v1042 = vpop.f32.mrb[0].mxu0
    %v1043 = vpop.f32.mrb[0].mxu0
    %v1044 = vadd.f32 0.0, %v1043
    %v1045 = vpop.f32.mrb[0].mxu0
    %1046 = vmatprep.mubr.bf16.mxu0 0
    %1047 = vmatmul.mubr.bf16.gmra.mrb[0].mxu0 %v991
    %v1048 = vpop.f32.mrb[0].mxu0
    %v1049 = vadd.f32 0.0, %v1048
    %v1050 = vpop.f32.mrb[0].mxu0
    %v1051 = vpop.f32.mrb[0].mxu0
    %v1052 = vadd.f32 0.0, %v1051
    %v1053 = vpop.f32.mrb[0].mxu0
    %1054 = vmatprep.mubr.bf16.mxu0 0
    %1055 = vmatmul.mubr.bf16.gmra.mrb[0].mxu0 %v994
    %v1056 = vpop.f32.mrb[0].mxu0
    %v1057 = vadd.f32 0.0, %v1056
    %v1058 = vpop.f32.mrb[0].mxu0
    %v1059 = vpop.f32.mrb[0].mxu0
    %v1060 = vadd.f32 0.0, %v1059
    %v1061 = vpop.f32.mrb[0].mxu0
    %1062 = vdwg.mxu0
    %v1063 = vadd.f32 %v960, %v1033
    %v1064 = vadd.f32 %v961, %v1036
    %v1065 = vadd.f32 %v962, %v1041
    %v1066 = vadd.f32 %v963, %v1044
    %v1067 = vadd.f32 %v964, %v1049
    %v1068 = vadd.f32 %v965, %v1052
    %v1069 = vadd.f32 %v966, %v1057
    %v1070 = vadd.f32 %v967, %v1060
    %1071 = vrot.lane.b32.xlu0 %v237, 121
    %v1072 = vpop.permute.xlu0 %1071
    %1073 = vrot.lane.b32.xlu0 %v237, 65
    %v1074 = vpop.permute.xlu0 %1073
    %vm1075 = vcmask 531456
    %v1078 = vsel %vm1075, %v1072, %v1074
    %1079 = vrot.lane.b32.xlu0 %v289, 96
    %v1080 = vpop.permute.xlu0 %1079
    %1081 = vrot.lane.b32.xlu0 %v290, 96
    %v1082 = vpop.permute.xlu0 %1081
    %1083 = vrot.lane.b32.xlu0 %v291, 96
    %v1084 = vpop.permute.xlu0 %1083
    %1085 = vrot.lane.b32.xlu0 %v292, 96
    %v1086 = vpop.permute.xlu0 %1085
    %v1088 = vsel %vm162, %v1080, 0
    %v1091 = vsel %vm162, %v1082, 0
    %v1094 = vsel %vm162, %v1084, 0
    %v1097 = vsel %vm162, %v1086, 0
    %v1099 = vsel %vm313, %v1078, 0
    %1101 = vmatprep.subr.bf16.mxu0 0
    %1102 = vmatpush1.bf16.msra.mxu0 %v1099
    %1103 = vmatprep.subr.bf16.mxu0 0
    %1104 = vmatpush1.bf16.msra.mxu0 0
    %1105 = vmatprep.subr.bf16.mxu0 0
    %1106 = vmatpush1.bf16.msra.mxu0 0
    %1107 = vmatprep.subr.bf16.mxu0 0
    %1108 = vmatpush1.bf16.msra.mxu0 0
    %1109 = vmatprep.subr.bf16.mxu0 0
    %1110 = vmatpush1.bf16.msra.mxu0 0
    %1111 = vmatprep.subr.bf16.mxu0 0
    %1112 = vmatpush1.bf16.msra.mxu0 0
    %1113 = vmatprep.subr.bf16.mxu0 0
    %1114 = vmatpush1.bf16.msra.mxu0 0
    %1115 = vmatprep.subr.bf16.mxu0 0
    %1116 = vmatpush1.bf16.msra.mxu0 0
    %1117 = vmatprep.subr.bf16.mxu0 0
    %1118 = vmatpush1.bf16.msra.mxu0 0
    %1119 = vmatprep.subr.bf16.mxu0 0
    %1120 = vmatpush1.bf16.msra.mxu0 0
    %1121 = vmatprep.subr.bf16.mxu0 0
    %1122 = vmatpush1.bf16.msra.mxu0 0
    %1123 = vmatprep.subr.bf16.mxu0 0
    %1124 = vmatpush1.bf16.msra.mxu0 0
    %1125 = vmatprep.subr.bf16.mxu0 0
    %1126 = vmatpush1.bf16.msra.mxu0 0
    %1127 = vmatprep.subr.bf16.mxu0 0
    %1128 = vmatpush1.bf16.msra.mxu0 0
    %1129 = vmatprep.subr.bf16.mxu0 0
    %1130 = vmatpush1.bf16.msra.mxu0 0
    %1131 = vmatprep.subr.bf16.mxu0 0
    %1132 = vmatpush1.bf16.msra.mxu0 0
    %1133 = vmatprep.mubr.bf16.mxu0 0
    %1134 = vmatmul.mubr.bf16.gmra.mrb[0].mxu0 %v1088
    %v1135 = vpop.f32.mrb[0].mxu0
    %v1136 = vadd.f32 0.0, %v1135
    %v1137 = vpop.f32.mrb[0].mxu0
    %v1138 = vpop.f32.mrb[0].mxu0
    %v1139 = vadd.f32 0.0, %v1138
    %v1140 = vpop.f32.mrb[0].mxu0
    %1141 = vmatprep.mubr.bf16.mxu0 0
    %1142 = vmatmul.mubr.bf16.gmra.mrb[0].mxu0 %v1091
    %v1143 = vpop.f32.mrb[0].mxu0
    %v1144 = vadd.f32 0.0, %v1143
    %v1145 = vpop.f32.mrb[0].mxu0
    %v1146 = vpop.f32.mrb[0].mxu0
    %v1147 = vadd.f32 0.0, %v1146
    %v1148 = vpop.f32.mrb[0].mxu0
    %1149 = vmatprep.mubr.bf16.mxu0 0
    %1150 = vmatmul.mubr.bf16.gmra.mrb[0].mxu0 %v1094
    %v1151 = vpop.f32.mrb[0].mxu0
    %v1152 = vadd.f32 0.0, %v1151
    %v1153 = vpop.f32.mrb[0].mxu0
    %v1154 = vpop.f32.mrb[0].mxu0
    %v1155 = vadd.f32 0.0, %v1154
    %v1156 = vpop.f32.mrb[0].mxu0
    %1157 = vmatprep.mubr.bf16.mxu0 0
    %1158 = vmatmul.mubr.bf16.gmra.mrb[0].mxu0 %v1097
    %v1159 = vpop.f32.mrb[0].mxu0
    %v1160 = vadd.f32 0.0, %v1159
    %v1161 = vpop.f32.mrb[0].mxu0
    %v1162 = vpop.f32.mrb[0].mxu0
    %v1163 = vadd.f32 0.0, %v1162
    %v1164 = vpop.f32.mrb[0].mxu0
    %1165 = vdwg.mxu0
    %v1166 = vadd.f32 %v1063, %v1136
    %v1167 = vadd.f32 %v1064, %v1139
    %v1168 = vadd.f32 %v1065, %v1144
    %v1169 = vadd.f32 %v1066, %v1147
    %v1170 = vadd.f32 %v1067, %v1152
    %v1171 = vadd.f32 %v1068, %v1155
    %v1172 = vadd.f32 %v1069, %v1160
    %v1173 = vadd.f32 %v1070, %v1163
    %1175 = vset.pattern.permute.xlu0 0
    %1176 = vperm.xlu0 %1175, %v240
    %v1177 = vpop.permute.xlu0 %1176
    %1180 = vset.pattern.permute.xlu0 0
    %1181 = vperm.xlu0 %1180, %v241
    %v1182 = vpop.permute.xlu0 %1181
    %1185 = vset.pattern.permute.xlu0 0
    %1186 = vperm.xlu0 %1185, %v242
    %v1187 = vpop.permute.xlu0 %1186
    %1190 = vset.pattern.permute.xlu0 0
    %1191 = vperm.xlu0 %1190, %v243
    %v1192 = vpop.permute.xlu0 %1191
    %1195 = vset.pattern.permute.xlu0 0
    %1196 = vperm.xlu0 %1195, %v244
    %v1197 = vpop.permute.xlu0 %1196
    %1200 = vset.pattern.permute.xlu0 0
    %1201 = vperm.xlu0 %1200, %v245
    %v1202 = vpop.permute.xlu0 %1201
    %1205 = vset.pattern.permute.xlu0 0
    %1206 = vperm.xlu0 %1205, %v246
    %v1207 = vpop.permute.xlu0 %1206
    %1210 = vset.pattern.permute.xlu0 0
    %1211 = vperm.xlu0 %1210, %v247
    %v1212 = vpop.permute.xlu0 %1211
    %v1214 = vadd.f32 %v1166, %v1177
    %v1215 = vadd.f32 %v1167, %v1182
    %v1216 = vadd.f32 %v1168, %v1187
    %v1217 = vadd.f32 %v1169, %v1192
    %v1218 = vadd.f32 %v1170, %v1197
    %v1219 = vadd.f32 %v1171, %v1202
    %v1220 = vadd.f32 %v1172, %v1207
    %v1221 = vadd.f32 %v1173, %v1212
    %vm1222 = vcmp.gt.f32.partialorder %v1214, 0.0
    %vm1223 = vcmp.gt.f32.partialorder %v1215, 0.0
    %vm1224 = vcmp.gt.f32.partialorder %v1216, 0.0
    %vm1225 = vcmp.gt.f32.partialorder %v1217, 0.0
    %vm1226 = vcmp.gt.f32.partialorder %v1218, 0.0
    %vm1227 = vcmp.gt.f32.partialorder %v1219, 0.0
    %vm1228 = vcmp.gt.f32.partialorder %v1220, 0.0
    %vm1229 = vcmp.gt.f32.partialorder %v1221, 0.0
    %v1230 = vmul.f32 %v1214, 0.01
    %v1231 = vmul.f32 %v1215, 0.01
    %v1232 = vmul.f32 %v1216, 0.01
    %v1233 = vmul.f32 %v1217, 0.01
    %v1234 = vmul.f32 %v1218, 0.01
    %v1235 = vmul.f32 %v1219, 0.01
    %v1236 = vmul.f32 %v1220, 0.01
    %v1237 = vmul.f32 %v1221, 0.01
    %v1238 = vsel %vm1222, %v1214, %v1230
    %v1239 = vsel %vm1223, %v1215, %v1231
    %v1240 = vsel %vm1224, %v1216, %v1232
    %v1241 = vsel %vm1225, %v1217, %v1233
    %v1242 = vsel %vm1226, %v1218, %v1234
    %v1243 = vsel %vm1227, %v1219, %v1235
    %v1244 = vsel %vm1228, %v1220, %v1236
    %v1245 = vsel %vm1229, %v1221, %v1237
    %v1246 = vlaneseq
    %v1247 = vshrl.u32 %v1246, 7
    %v1248 = vsub.s32 0, %v1247
    %v1249 = vrot.slane %v239, %v1248
    %v1250 = vmul.f32 %v1238, %v1249
    %v1251 = vmul.f32 %v1239, %v1249
    %v1252 = vmul.f32 %v1240, %v1249
    %v1253 = vmul.f32 %v1241, %v1249
    %v1254 = vmul.f32 %v1242, %v1249
    %v1255 = vmul.f32 %v1243, %v1249
    %v1256 = vmul.f32 %v1244, %v1249
    %v1257 = vmul.f32 %v1245, %v1249
    %v1258 = vpack.c.bf16 %v1251, %v1250
    %v1259 = vpack.c.bf16 %v1253, %v1252
    %v1260 = vpack.c.bf16 %v1255, %v1254
    %v1261 = vpack.c.bf16 %v1257, %v1256
    %v1262 = vld [vmem:[%s3] sm:$0xf]
    %v1263 = vld [vmem:[%s3 + $0x4] sm:$0xf]
    %v1264 = vld [vmem:[%s3 + $0x8] sm:$0xf]
    %v1265 = vld [vmem:[%s3 + $0xc] sm:$0xf]
    %v1266 = vld [vmem:[%s3 + $0x10] sm:$0xf]
    %v1267 = vld [vmem:[%s3 + $0x14] sm:$0xf]
    %v1268 = vld [vmem:[%s3 + $0x18] sm:$0xf]
    %v1269 = vld [vmem:[%s3 + $0x1c] sm:$0xf]
    %1274 = vrot.lane.b32.xlu0 %v1258, 63
    %v1275 = vpop.permute.xlu0 %1274
    %1276 = vrot.lane.b32.xlu0 %v1259, 63
    %v1277 = vpop.permute.xlu0 %1276
    %1278 = vrot.lane.b32.xlu0 %v1260, 63
    %v1279 = vpop.permute.xlu0 %1278
    %1280 = vrot.lane.b32.xlu0 %v1261, 63
    %v1281 = vpop.permute.xlu0 %1280
    %1282 = vrot.lane.b32.xlu0 %v1258, 7
    %v1283 = vpop.permute.xlu0 %1282
    %1284 = vrot.lane.b32.xlu0 %v1259, 7
    %v1285 = vpop.permute.xlu0 %1284
    %1286 = vrot.lane.b32.xlu0 %v1260, 7
    %v1287 = vpop.permute.xlu0 %1286
    %1288 = vrot.lane.b32.xlu0 %v1261, 7
    %v1289 = vpop.permute.xlu0 %1288
    %v1292 = vsel %vm261, %v1275, %v1283
    %v1296 = vsel %vm261, %v1277, %v1285
    %v1300 = vsel %vm261, %v1279, %v1287
    %v1304 = vsel %vm261, %v1281, %v1289
    %v1306 = vld [vmem:[%s3 + $0x20] sm:$0xf]
    %v1307 = vld [vmem:[%s3 + $0x24] sm:$0xf]
    %v1308 = vld [vmem:[%s3 + $0x28] sm:$0xf]
    %v1309 = vld [vmem:[%s3 + $0x2c] sm:$0xf]
    %v1310 = vld [vmem:[%s3 + $0x30] sm:$0xf]
    %v1311 = vld [vmem:[%s3 + $0x34] sm:$0xf]
    %v1312 = vld [vmem:[%s3 + $0x38] sm:$0xf]
    %v1313 = vld [vmem:[%s3 + $0x3c] sm:$0xf]
    %1314 = vrot.lane.b32.xlu0 %v1258, 62
    %v1315 = vpop.permute.xlu0 %1314
    %1316 = vrot.lane.b32.xlu0 %v1259, 62
    %v1317 = vpop.permute.xlu0 %1316
    %1318 = vrot.lane.b32.xlu0 %v1260, 62
    %v1319 = vpop.permute.xlu0 %1318
    %1320 = vrot.lane.b32.xlu0 %v1261, 62
    %v1321 = vpop.permute.xlu0 %1320
    %1322 = vrot.lane.b32.xlu0 %v1258, 6
    %v1323 = vpop.permute.xlu0 %1322
    %1324 = vrot.lane.b32.xlu0 %v1259, 6
    %v1325 = vpop.permute.xlu0 %1324
    %1326 = vrot.lane.b32.xlu0 %v1260, 6
    %v1327 = vpop.permute.xlu0 %1326
    %1328 = vrot.lane.b32.xlu0 %v1261, 6
    %v1329 = vpop.permute.xlu0 %1328
    %v1332 = vsel %vm269, %v1315, %v1323
    %v1336 = vsel %vm269, %v1317, %v1325
    %v1340 = vsel %vm269, %v1319, %v1327
    %v1344 = vsel %vm269, %v1321, %v1329
    %v1354 = vunpack.c.l.b16 %v1306
    %v1355 = vunpack.c.l.b16 %v1307
    %v1356 = vunpack.c.l.b16 %v1308
    %v1357 = vunpack.c.l.b16 %v1309
    %v1358 = vunpack.c.l.b16 %v1310
    %v1359 = vunpack.c.l.b16 %v1311
    %v1360 = vunpack.c.l.b16 %v1312
    %v1361 = vunpack.c.l.b16 %v1313
    %v1362 = vpack.c.b16 %v1355, %v1354
    %v1363 = vpack.c.b16 %v1357, %v1356
    %v1364 = vpack.c.b16 %v1359, %v1358
    %v1365 = vpack.c.b16 %v1361, %v1360
    %vm1366 = vcmask 523264
    %v1368 = vsel %vm1366, %v1362, 0
    %v1371 = vsel %vm1366, %v1363, 0
    %v1374 = vsel %vm1366, %v1364, 0
    %v1377 = vsel %vm1366, %v1365, 0
    %1379 = vmatprep.subr.bf16.mxu0 0
    %1380 = vmatpush1.bf16.msra.mxu0 %v1332
    %1381 = vmatprep.subr.bf16.mxu0 0
    %1382 = vmatpush1.bf16.msra.mxu0 %v1336
    %1383 = vmatprep.subr.bf16.mxu0 0
    %1384 = vmatpush1.bf16.msra.mxu0 %v1340
    %1385 = vmatprep.subr.bf16.mxu0 0
    %1386 = vmatpush1.bf16.msra.mxu0 %v1344
    %1387 = vmatprep.subr.bf16.mxu0 0
    %1388 = vmatpush1.bf16.msra.mxu0 0
    %1389 = vmatprep.subr.bf16.mxu0 0
    %1390 = vmatpush1.bf16.msra.mxu0 0
    %1391 = vmatprep.subr.bf16.mxu0 0
    %1392 = vmatpush1.bf16.msra.mxu0 0
    %1393 = vmatprep.subr.bf16.mxu0 0
    %1394 = vmatpush1.bf16.msra.mxu0 0
    %1395 = vmatprep.subr.bf16.mxu0 0
    %1396 = vmatpush1.bf16.msra.mxu0 0
    %1397 = vmatprep.subr.bf16.mxu0 0
    %1398 = vmatpush1.bf16.msra.mxu0 0
    %1399 = vmatprep.subr.bf16.mxu0 0
    %1400 = vmatpush1.bf16.msra.mxu0 0
    %1401 = vmatprep.subr.bf16.mxu0 0
    %1402 = vmatpush1.bf16.msra.mxu0 0
    %1403 = vmatprep.subr.bf16.mxu0 0
    %1404 = vmatpush1.bf16.msra.mxu0 0
    %1405 = vmatprep.subr.bf16.mxu0 0
    %1406 = vmatpush1.bf16.msra.mxu0 0
    %1407 = vmatprep.subr.bf16.mxu0 0
    %1408 = vmatpush1.bf16.msra.mxu0 0
    %1409 = vmatprep.subr.bf16.mxu0 0
    %1410 = vmatpush1.bf16.msra.mxu0 0
    %1411 = vmatprep.mubr.bf16.mxu0 0
    %1412 = vmatmul.mubr.bf16.gmra.mrb[0].mxu0 %v1368
    %v1413 = vpop.f32.mrb[0].mxu0
    %v1414 = vadd.f32 0.0, %v1413
    %v1415 = vpop.f32.mrb[0].mxu0
    %v1416 = vpop.f32.mrb[0].mxu0
    %v1417 = vadd.f32 0.0, %v1416
    %v1418 = vpop.f32.mrb[0].mxu0
    %1419 = vmatprep.mubr.bf16.mxu0 0
    %1420 = vmatmul.mubr.bf16.gmra.mrb[0].mxu0 %v1371
    %v1421 = vpop.f32.mrb[0].mxu0
    %v1422 = vadd.f32 0.0, %v1421
    %v1423 = vpop.f32.mrb[0].mxu0
    %v1424 = vpop.f32.mrb[0].mxu0
    %v1425 = vadd.f32 0.0, %v1424
    %v1426 = vpop.f32.mrb[0].mxu0
    %1427 = vmatprep.mubr.bf16.mxu0 0
    %1428 = vmatmul.mubr.bf16.gmra.mrb[0].mxu0 %v1374
    %v1429 = vpop.f32.mrb[0].mxu0
    %v1430 = vadd.f32 0.0, %v1429
    %v1431 = vpop.f32.mrb[0].mxu0
    %v1432 = vpop.f32.mrb[0].mxu0
    %v1433 = vadd.f32 0.0, %v1432
    %v1434 = vpop.f32.mrb[0].mxu0
    %1435 = vmatprep.mubr.bf16.mxu0 0
    %1436 = vmatmul.mubr.bf16.gmra.mrb[0].mxu0 %v1377
    %v1437 = vpop.f32.mrb[0].mxu0
    %v1438 = vadd.f32 0.0, %v1437
    %v1439 = vpop.f32.mrb[0].mxu0
    %v1440 = vpop.f32.mrb[0].mxu0
    %v1441 = vadd.f32 0.0, %v1440
    %v1442 = vpop.f32.mrb[0].mxu0
    %1443 = vdwg.mxu0
    %v1452 = vunpack.c.l.b16 %v1262
    %v1453 = vunpack.c.l.b16 %v1263
    %v1454 = vunpack.c.l.b16 %v1264
    %v1455 = vunpack.c.l.b16 %v1265
    %v1456 = vunpack.c.l.b16 %v1266
    %v1457 = vunpack.c.l.b16 %v1267
    %v1458 = vunpack.c.l.b16 %v1268
    %v1459 = vunpack.c.l.b16 %v1269
    %v1460 = vpack.c.b16 %v1453, %v1452
    %v1461 = vpack.c.b16 %v1455, %v1454
    %v1462 = vpack.c.b16 %v1457, %v1456
    %v1463 = vpack.c.b16 %v1459, %v1458
    %v1465 = vsel %vm1366, %v1460, 0
    %v1468 = vsel %vm1366, %v1461, 0
    %v1471 = vsel %vm1366, %v1462, 0
    %v1474 = vsel %vm1366, %v1463, 0
    %1476 = vmatprep.subr.bf16.mxu0 0
    %1477 = vmatpush1.bf16.msra.mxu0 %v1292
    %1478 = vmatprep.subr.bf16.mxu0 0
    %1479 = vmatpush1.bf16.msra.mxu0 %v1296
    %1480 = vmatprep.subr.bf16.mxu0 0
    %1481 = vmatpush1.bf16.msra.mxu0 %v1300
    %1482 = vmatprep.subr.bf16.mxu0 0
    %1483 = vmatpush1.bf16.msra.mxu0 %v1304
    %1484 = vmatprep.subr.bf16.mxu0 0
    %1485 = vmatpush1.bf16.msra.mxu0 0
    %1486 = vmatprep.subr.bf16.mxu0 0
    %1487 = vmatpush1.bf16.msra.mxu0 0
    %1488 = vmatprep.subr.bf16.mxu0 0
    %1489 = vmatpush1.bf16.msra.mxu0 0
    %1490 = vmatprep.subr.bf16.mxu0 0
    %1491 = vmatpush1.bf16.msra.mxu0 0
    %1492 = vmatprep.subr.bf16.mxu0 0
    %1493 = vmatpush1.bf16.msra.mxu0 0
    %1494 = vmatprep.subr.bf16.mxu0 0
    %1495 = vmatpush1.bf16.msra.mxu0 0
    %1496 = vmatprep.subr.bf16.mxu0 0
    %1497 = vmatpush1.bf16.msra.mxu0 0
    %1498 = vmatprep.subr.bf16.mxu0 0
    %1499 = vmatpush1.bf16.msra.mxu0 0
    %1500 = vmatprep.subr.bf16.mxu0 0
    %1501 = vmatpush1.bf16.msra.mxu0 0
    %1502 = vmatprep.subr.bf16.mxu0 0
    %1503 = vmatpush1.bf16.msra.mxu0 0
    %1504 = vmatprep.subr.bf16.mxu0 0
    %1505 = vmatpush1.bf16.msra.mxu0 0
    %1506 = vmatprep.subr.bf16.mxu0 0
    %1507 = vmatpush1.bf16.msra.mxu0 0
    %1508 = vmatprep.mubr.bf16.mxu0 0
    %1509 = vmatmul.mubr.bf16.gmra.mrb[0].mxu0 %v1465
    %v1510 = vpop.f32.mrb[0].mxu0
    %v1511 = vadd.f32 %v1414, %v1510
    %v1512 = vpop.f32.mrb[0].mxu0
    %v1513 = vpop.f32.mrb[0].mxu0
    %v1514 = vadd.f32 %v1417, %v1513
    %v1515 = vpop.f32.mrb[0].mxu0
    %1516 = vmatprep.mubr.bf16.mxu0 0
    %1517 = vmatmul.mubr.bf16.gmra.mrb[0].mxu0 %v1468
    %v1518 = vpop.f32.mrb[0].mxu0
    %v1519 = vadd.f32 %v1422, %v1518
    %v1520 = vpop.f32.mrb[0].mxu0
    %v1521 = vpop.f32.mrb[0].mxu0
    %v1522 = vadd.f32 %v1425, %v1521
    %v1523 = vpop.f32.mrb[0].mxu0
    %1524 = vmatprep.mubr.bf16.mxu0 0
    %1525 = vmatmul.mubr.bf16.gmra.mrb[0].mxu0 %v1471
    %v1526 = vpop.f32.mrb[0].mxu0
    %v1527 = vadd.f32 %v1430, %v1526
    %v1528 = vpop.f32.mrb[0].mxu0
    %v1529 = vpop.f32.mrb[0].mxu0
    %v1530 = vadd.f32 %v1433, %v1529
    %v1531 = vpop.f32.mrb[0].mxu0
    %1532 = vmatprep.mubr.bf16.mxu0 0
    %1533 = vmatmul.mubr.bf16.gmra.mrb[0].mxu0 %v1474
    %v1534 = vpop.f32.mrb[0].mxu0
    %v1535 = vadd.f32 %v1438, %v1534
    %v1536 = vpop.f32.mrb[0].mxu0
    %v1537 = vpop.f32.mrb[0].mxu0
    %v1538 = vadd.f32 %v1441, %v1537
    %v1539 = vpop.f32.mrb[0].mxu0
    %1540 = vdwg.mxu0
    %v1541 = vld [vmem:[%s3 + $0x40] sm:$0xf]
    %v1542 = vld [vmem:[%s3 + $0x44] sm:$0xf]
    %v1543 = vld [vmem:[%s3 + $0x48] sm:$0xf]
    %v1544 = vld [vmem:[%s3 + $0x4c] sm:$0xf]
    %v1545 = vld [vmem:[%s3 + $0x50] sm:$0xf]
    %v1546 = vld [vmem:[%s3 + $0x54] sm:$0xf]
    %v1547 = vld [vmem:[%s3 + $0x58] sm:$0xf]
    %v1548 = vld [vmem:[%s3 + $0x5c] sm:$0xf]
    %1549 = vrot.lane.b32.xlu0 %v1258, 61
    %v1550 = vpop.permute.xlu0 %1549
    %1551 = vrot.lane.b32.xlu0 %v1259, 61
    %v1552 = vpop.permute.xlu0 %1551
    %1553 = vrot.lane.b32.xlu0 %v1260, 61
    %v1554 = vpop.permute.xlu0 %1553
    %1555 = vrot.lane.b32.xlu0 %v1261, 61
    %v1556 = vpop.permute.xlu0 %1555
    %1557 = vrot.lane.b32.xlu0 %v1258, 5
    %v1558 = vpop.permute.xlu0 %1557
    %1559 = vrot.lane.b32.xlu0 %v1259, 5
    %v1560 = vpop.permute.xlu0 %1559
    %1561 = vrot.lane.b32.xlu0 %v1260, 5
    %v1562 = vpop.permute.xlu0 %1561
    %1563 = vrot.lane.b32.xlu0 %v1261, 5
    %v1564 = vpop.permute.xlu0 %1563
    %v1567 = vsel %vm464, %v1550, %v1558
    %v1571 = vsel %vm464, %v1552, %v1560
    %v1575 = vsel %vm464, %v1554, %v1562
    %v1579 = vsel %vm464, %v1556, %v1564
    %v1589 = vunpack.c.l.b16 %v1541
    %v1590 = vunpack.c.l.b16 %v1542
    %v1591 = vunpack.c.l.b16 %v1543
    %v1592 = vunpack.c.l.b16 %v1544
    %v1593 = vunpack.c.l.b16 %v1545
    %v1594 = vunpack.c.l.b16 %v1546
    %v1595 = vunpack.c.l.b16 %v1547
    %v1596 = vunpack.c.l.b16 %v1548
    %v1597 = vpack.c.b16 %v1590, %v1589
    %v1598 = vpack.c.b16 %v1592, %v1591
    %v1599 = vpack.c.b16 %v1594, %v1593
    %v1600 = vpack.c.b16 %v1596, %v1595
    %v1602 = vsel %vm1366, %v1597, 0
    %v1605 = vsel %vm1366, %v1598, 0
    %v1608 = vsel %vm1366, %v1599, 0
    %v1611 = vsel %vm1366, %v1600, 0
    %1613 = vmatprep.subr.bf16.mxu0 0
    %1614 = vmatpush1.bf16.msra.mxu0 %v1567
    %1615 = vmatprep.subr.bf16.mxu0 0
    %1616 = vmatpush1.bf16.msra.mxu0 %v1571
    %1617 = vmatprep.subr.bf16.mxu0 0
    %1618 = vmatpush1.bf16.msra.mxu0 %v1575
    %1619 = vmatprep.subr.bf16.mxu0 0
    %1620 = vmatpush1.bf16.msra.mxu0 %v1579
    %1621 = vmatprep.subr.bf16.mxu0 0
    %1622 = vmatpush1.bf16.msra.mxu0 0
    %1623 = vmatprep.subr.bf16.mxu0 0
    %1624 = vmatpush1.bf16.msra.mxu0 0
    %1625 = vmatprep.subr.bf16.mxu0 0
    %1626 = vmatpush1.bf16.msra.mxu0 0
    %1627 = vmatprep.subr.bf16.mxu0 0
    %1628 = vmatpush1.bf16.msra.mxu0 0
    %1629 = vmatprep.subr.bf16.mxu0 0
    %1630 = vmatpush1.bf16.msra.mxu0 0
    %1631 = vmatprep.subr.bf16.mxu0 0
    %1632 = vmatpush1.bf16.msra.mxu0 0
    %1633 = vmatprep.subr.bf16.mxu0 0
    %1634 = vmatpush1.bf16.msra.mxu0 0
    %1635 = vmatprep.subr.bf16.mxu0 0
    %1636 = vmatpush1.bf16.msra.mxu0 0
    %1637 = vmatprep.subr.bf16.mxu0 0
    %1638 = vmatpush1.bf16.msra.mxu0 0
    %1639 = vmatprep.subr.bf16.mxu0 0
    %1640 = vmatpush1.bf16.msra.mxu0 0
    %1641 = vmatprep.subr.bf16.mxu0 0
    %1642 = vmatpush1.bf16.msra.mxu0 0
    %1643 = vmatprep.subr.bf16.mxu0 0
    %1644 = vmatpush1.bf16.msra.mxu0 0
    %1645 = vmatprep.mubr.bf16.mxu0 0
    %1646 = vmatmul.mubr.bf16.gmra.mrb[0].mxu0 %v1602
    %v1647 = vpop.f32.mrb[0].mxu0
    %v1648 = vadd.f32 0.0, %v1647
    %v1649 = vpop.f32.mrb[0].mxu0
    %v1650 = vpop.f32.mrb[0].mxu0
    %v1651 = vadd.f32 0.0, %v1650
    %v1652 = vpop.f32.mrb[0].mxu0
    %1653 = vmatprep.mubr.bf16.mxu0 0
    %1654 = vmatmul.mubr.bf16.gmra.mrb[0].mxu0 %v1605
    %v1655 = vpop.f32.mrb[0].mxu0
    %v1656 = vadd.f32 0.0, %v1655
    %v1657 = vpop.f32.mrb[0].mxu0
    %v1658 = vpop.f32.mrb[0].mxu0
    %v1659 = vadd.f32 0.0, %v1658
    %v1660 = vpop.f32.mrb[0].mxu0
    %1661 = vmatprep.mubr.bf16.mxu0 0
    %1662 = vmatmul.mubr.bf16.gmra.mrb[0].mxu0 %v1608
    %v1663 = vpop.f32.mrb[0].mxu0
    %v1664 = vadd.f32 0.0, %v1663
    %v1665 = vpop.f32.mrb[0].mxu0
    %v1666 = vpop.f32.mrb[0].mxu0
    %v1667 = vadd.f32 0.0, %v1666
    %v1668 = vpop.f32.mrb[0].mxu0
    %1669 = vmatprep.mubr.bf16.mxu0 0
    %1670 = vmatmul.mubr.bf16.gmra.mrb[0].mxu0 %v1611
    %v1671 = vpop.f32.mrb[0].mxu0
    %v1672 = vadd.f32 0.0, %v1671
    %v1673 = vpop.f32.mrb[0].mxu0
    %v1674 = vpop.f32.mrb[0].mxu0
    %v1675 = vadd.f32 0.0, %v1674
    %v1676 = vpop.f32.mrb[0].mxu0
    %1677 = vdwg.mxu0
    %v1678 = vadd.f32 %v1511, %v1648
    %v1679 = vadd.f32 %v1514, %v1651
    %v1680 = vadd.f32 %v1519, %v1656
    %v1681 = vadd.f32 %v1522, %v1659
    %v1682 = vadd.f32 %v1527, %v1664
    %v1683 = vadd.f32 %v1530, %v1667
    %v1684 = vadd.f32 %v1535, %v1672
    %v1685 = vadd.f32 %v1538, %v1675
    %v1686 = vld [vmem:[%s3 + $0x60] sm:$0xf]
    %v1687 = vld [vmem:[%s3 + $0x64] sm:$0xf]
    %v1688 = vld [vmem:[%s3 + $0x68] sm:$0xf]
    %v1689 = vld [vmem:[%s3 + $0x6c] sm:$0xf]
    %v1690 = vld [vmem:[%s3 + $0x70] sm:$0xf]
    %v1691 = vld [vmem:[%s3 + $0x74] sm:$0xf]
    %v1692 = vld [vmem:[%s3 + $0x78] sm:$0xf]
    %v1693 = vld [vmem:[%s3 + $0x7c] sm:$0xf]
    %1694 = vrot.lane.b32.xlu0 %v1258, 57
    %v1695 = vpop.permute.xlu0 %1694
    %1696 = vrot.lane.b32.xlu0 %v1259, 57
    %v1697 = vpop.permute.xlu0 %1696
    %1698 = vrot.lane.b32.xlu0 %v1260, 57
    %v1699 = vpop.permute.xlu0 %1698
    %1700 = vrot.lane.b32.xlu0 %v1261, 57
    %v1701 = vpop.permute.xlu0 %1700
    %1702 = vrot.lane.b32.xlu0 %v1258, 1
    %v1703 = vpop.permute.xlu0 %1702
    %1704 = vrot.lane.b32.xlu0 %v1259, 1
    %v1705 = vpop.permute.xlu0 %1704
    %1706 = vrot.lane.b32.xlu0 %v1260, 1
    %v1707 = vpop.permute.xlu0 %1706
    %1708 = vrot.lane.b32.xlu0 %v1261, 1
    %v1709 = vpop.permute.xlu0 %1708
    %v1712 = vsel %vm567, %v1695, %v1703
    %v1716 = vsel %vm567, %v1697, %v1705
    %v1720 = vsel %vm567, %v1699, %v1707
    %v1724 = vsel %vm567, %v1701, %v1709
    %v1734 = vunpack.c.l.b16 %v1686
    %v1735 = vunpack.c.l.b16 %v1687
    %v1736 = vunpack.c.l.b16 %v1688
    %v1737 = vunpack.c.l.b16 %v1689
    %v1738 = vunpack.c.l.b16 %v1690
    %v1739 = vunpack.c.l.b16 %v1691
    %v1740 = vunpack.c.l.b16 %v1692
    %v1741 = vunpack.c.l.b16 %v1693
    %v1742 = vpack.c.b16 %v1735, %v1734
    %v1743 = vpack.c.b16 %v1737, %v1736
    %v1744 = vpack.c.b16 %v1739, %v1738
    %v1745 = vpack.c.b16 %v1741, %v1740
    %v1747 = vsel %vm1366, %v1742, 0
    %v1750 = vsel %vm1366, %v1743, 0
    %v1753 = vsel %vm1366, %v1744, 0
    %v1756 = vsel %vm1366, %v1745, 0
    %1758 = vmatprep.subr.bf16.mxu0 0
    %1759 = vmatpush1.bf16.msra.mxu0 %v1712
    %1760 = vmatprep.subr.bf16.mxu0 0
    %1761 = vmatpush1.bf16.msra.mxu0 %v1716
    %1762 = vmatprep.subr.bf16.mxu0 0
    %1763 = vmatpush1.bf16.msra.mxu0 %v1720
    %1764 = vmatprep.subr.bf16.mxu0 0
    %1765 = vmatpush1.bf16.msra.mxu0 %v1724
    %1766 = vmatprep.subr.bf16.mxu0 0
    %1767 = vmatpush1.bf16.msra.mxu0 0
    %1768 = vmatprep.subr.bf16.mxu0 0
    %1769 = vmatpush1.bf16.msra.mxu0 0
    %1770 = vmatprep.subr.bf16.mxu0 0
    %1771 = vmatpush1.bf16.msra.mxu0 0
    %1772 = vmatprep.subr.bf16.mxu0 0
    %1773 = vmatpush1.bf16.msra.mxu0 0
    %1774 = vmatprep.subr.bf16.mxu0 0
    %1775 = vmatpush1.bf16.msra.mxu0 0
    %1776 = vmatprep.subr.bf16.mxu0 0
    %1777 = vmatpush1.bf16.msra.mxu0 0
    %1778 = vmatprep.subr.bf16.mxu0 0
    %1779 = vmatpush1.bf16.msra.mxu0 0
    %1780 = vmatprep.subr.bf16.mxu0 0
    %1781 = vmatpush1.bf16.msra.mxu0 0
    %1782 = vmatprep.subr.bf16.mxu0 0
    %1783 = vmatpush1.bf16.msra.mxu0 0
    %1784 = vmatprep.subr.bf16.mxu0 0
    %1785 = vmatpush1.bf16.msra.mxu0 0
    %1786 = vmatprep.subr.bf16.mxu0 0
    %1787 = vmatpush1.bf16.msra.mxu0 0
    %1788 = vmatprep.subr.bf16.mxu0 0
    %1789 = vmatpush1.bf16.msra.mxu0 0
    %1790 = vmatprep.mubr.bf16.mxu0 0
    %1791 = vmatmul.mubr.bf16.gmra.mrb[0].mxu0 %v1747
    %v1792 = vpop.f32.mrb[0].mxu0
    %v1793 = vadd.f32 0.0, %v1792
    %v1794 = vpop.f32.mrb[0].mxu0
    %v1795 = vpop.f32.mrb[0].mxu0
    %v1796 = vadd.f32 0.0, %v1795
    %v1797 = vpop.f32.mrb[0].mxu0
    %1798 = vmatprep.mubr.bf16.mxu0 0
    %1799 = vmatmul.mubr.bf16.gmra.mrb[0].mxu0 %v1750
    %v1800 = vpop.f32.mrb[0].mxu0
    %v1801 = vadd.f32 0.0, %v1800
    %v1802 = vpop.f32.mrb[0].mxu0
    %v1803 = vpop.f32.mrb[0].mxu0
    %v1804 = vadd.f32 0.0, %v1803
    %v1805 = vpop.f32.mrb[0].mxu0
    %1806 = vmatprep.mubr.bf16.mxu0 0
    %1807 = vmatmul.mubr.bf16.gmra.mrb[0].mxu0 %v1753
    %v1808 = vpop.f32.mrb[0].mxu0
    %v1809 = vadd.f32 0.0, %v1808
    %v1810 = vpop.f32.mrb[0].mxu0
    %v1811 = vpop.f32.mrb[0].mxu0
    %v1812 = vadd.f32 0.0, %v1811
    %v1813 = vpop.f32.mrb[0].mxu0
    %1814 = vmatprep.mubr.bf16.mxu0 0
    %1815 = vmatmul.mubr.bf16.gmra.mrb[0].mxu0 %v1756
    %v1816 = vpop.f32.mrb[0].mxu0
    %v1817 = vadd.f32 0.0, %v1816
    %v1818 = vpop.f32.mrb[0].mxu0
    %v1819 = vpop.f32.mrb[0].mxu0
    %v1820 = vadd.f32 0.0, %v1819
    %v1821 = vpop.f32.mrb[0].mxu0
    %1822 = vdwg.mxu0
    %v1823 = vadd.f32 %v1678, %v1793
    %v1824 = vadd.f32 %v1679, %v1796
    %v1825 = vadd.f32 %v1680, %v1801
    %v1826 = vadd.f32 %v1681, %v1804
    %v1827 = vadd.f32 %v1682, %v1809
    %v1828 = vadd.f32 %v1683, %v1812
    %v1829 = vadd.f32 %v1684, %v1817
    %v1830 = vadd.f32 %v1685, %v1820
    %v1831 = vld [vmem:[%s3 + $0x80] sm:$0xf]
    %v1832 = vld [vmem:[%s3 + $0x84] sm:$0xf]
    %v1833 = vld [vmem:[%s3 + $0x88] sm:$0xf]
    %v1834 = vld [vmem:[%s3 + $0x8c] sm:$0xf]
    %v1835 = vld [vmem:[%s3 + $0x90] sm:$0xf]
    %v1836 = vld [vmem:[%s3 + $0x94] sm:$0xf]
    %v1837 = vld [vmem:[%s3 + $0x98] sm:$0xf]
    %v1838 = vld [vmem:[%s3 + $0x9c] sm:$0xf]
    %v1847 = vunpack.c.l.b16 %v1831
    %v1848 = vunpack.c.l.b16 %v1832
    %v1849 = vunpack.c.l.b16 %v1833
    %v1850 = vunpack.c.l.b16 %v1834
    %v1851 = vunpack.c.l.b16 %v1835
    %v1852 = vunpack.c.l.b16 %v1836
    %v1853 = vunpack.c.l.b16 %v1837
    %v1854 = vunpack.c.l.b16 %v1838
    %v1855 = vpack.c.b16 %v1848, %v1847
    %v1856 = vpack.c.b16 %v1850, %v1849
    %v1857 = vpack.c.b16 %v1852, %v1851
    %v1858 = vpack.c.b16 %v1854, %v1853
    %v1860 = vsel %vm1366, %v1855, 0
    %v1863 = vsel %vm1366, %v1856, 0
    %v1866 = vsel %vm1366, %v1857, 0
    %v1869 = vsel %vm1366, %v1858, 0
    %1871 = vmatprep.subr.bf16.mxu0 0
    %1872 = vmatpush1.bf16.msra.mxu0 %v1258
    %1873 = vmatprep.subr.bf16.mxu0 0
    %1874 = vmatpush1.bf16.msra.mxu0 %v1259
    %1875 = vmatprep.subr.bf16.mxu0 0
    %1876 = vmatpush1.bf16.msra.mxu0 %v1260
    %1877 = vmatprep.subr.bf16.mxu0 0
    %1878 = vmatpush1.bf16.msra.mxu0 %v1261
    %1879 = vmatprep.subr.bf16.mxu0 0
    %1880 = vmatpush1.bf16.msra.mxu0 0
    %1881 = vmatprep.subr.bf16.mxu0 0
    %1882 = vmatpush1.bf16.msra.mxu0 0
    %1883 = vmatprep.subr.bf16.mxu0 0
    %1884 = vmatpush1.bf16.msra.mxu0 0
    %1885 = vmatprep.subr.bf16.mxu0 0
    %1886 = vmatpush1.bf16.msra.mxu0 0
    %1887 = vmatprep.subr.bf16.mxu0 0
    %1888 = vmatpush1.bf16.msra.mxu0 0
    %1889 = vmatprep.subr.bf16.mxu0 0
    %1890 = vmatpush1.bf16.msra.mxu0 0
    %1891 = vmatprep.subr.bf16.mxu0 0
    %1892 = vmatpush1.bf16.msra.mxu0 0
    %1893 = vmatprep.subr.bf16.mxu0 0
    %1894 = vmatpush1.bf16.msra.mxu0 0
    %1895 = vmatprep.subr.bf16.mxu0 0
    %1896 = vmatpush1.bf16.msra.mxu0 0
    %1897 = vmatprep.subr.bf16.mxu0 0
    %1898 = vmatpush1.bf16.msra.mxu0 0
    %1899 = vmatprep.subr.bf16.mxu0 0
    %1900 = vmatpush1.bf16.msra.mxu0 0
    %1901 = vmatprep.subr.bf16.mxu0 0
    %1902 = vmatpush1.bf16.msra.mxu0 0
    %1903 = vmatprep.mubr.bf16.mxu0 0
    %1904 = vmatmul.mubr.bf16.gmra.mrb[0].mxu0 %v1860
    %v1905 = vpop.f32.mrb[0].mxu0
    %v1906 = vadd.f32 0.0, %v1905
    %v1907 = vpop.f32.mrb[0].mxu0
    %v1908 = vpop.f32.mrb[0].mxu0
    %v1909 = vadd.f32 0.0, %v1908
    %v1910 = vpop.f32.mrb[0].mxu0
    %1911 = vmatprep.mubr.bf16.mxu0 0
    %1912 = vmatmul.mubr.bf16.gmra.mrb[0].mxu0 %v1863
    %v1913 = vpop.f32.mrb[0].mxu0
    %v1914 = vadd.f32 0.0, %v1913
    %v1915 = vpop.f32.mrb[0].mxu0
    %v1916 = vpop.f32.mrb[0].mxu0
    %v1917 = vadd.f32 0.0, %v1916
    %v1918 = vpop.f32.mrb[0].mxu0
    %1919 = vmatprep.mubr.bf16.mxu0 0
    %1920 = vmatmul.mubr.bf16.gmra.mrb[0].mxu0 %v1866
    %v1921 = vpop.f32.mrb[0].mxu0
    %v1922 = vadd.f32 0.0, %v1921
    %v1923 = vpop.f32.mrb[0].mxu0
    %v1924 = vpop.f32.mrb[0].mxu0
    %v1925 = vadd.f32 0.0, %v1924
    %v1926 = vpop.f32.mrb[0].mxu0
    %1927 = vmatprep.mubr.bf16.mxu0 0
    %1928 = vmatmul.mubr.bf16.gmra.mrb[0].mxu0 %v1869
    %v1929 = vpop.f32.mrb[0].mxu0
    %v1930 = vadd.f32 0.0, %v1929
    %v1931 = vpop.f32.mrb[0].mxu0
    %v1932 = vpop.f32.mrb[0].mxu0
    %v1933 = vadd.f32 0.0, %v1932
    %v1934 = vpop.f32.mrb[0].mxu0
    %1935 = vdwg.mxu0
    %v1936 = vadd.f32 %v1823, %v1906
    %v1937 = vadd.f32 %v1824, %v1909
    %v1938 = vadd.f32 %v1825, %v1914
    %v1939 = vadd.f32 %v1826, %v1917
    %v1940 = vadd.f32 %v1827, %v1922
    %v1941 = vadd.f32 %v1828, %v1925
    %v1942 = vadd.f32 %v1829, %v1930
    %v1943 = vadd.f32 %v1830, %v1933
    %v1944 = vld [vmem:[%s3 + $0xa0] sm:$0xf]
    %v1945 = vld [vmem:[%s3 + $0xa4] sm:$0xf]
    %v1946 = vld [vmem:[%s3 + $0xa8] sm:$0xf]
    %v1947 = vld [vmem:[%s3 + $0xac] sm:$0xf]
    %v1948 = vld [vmem:[%s3 + $0xb0] sm:$0xf]
    %v1949 = vld [vmem:[%s3 + $0xb4] sm:$0xf]
    %v1950 = vld [vmem:[%s3 + $0xb8] sm:$0xf]
    %v1951 = vld [vmem:[%s3 + $0xbc] sm:$0xf]
    %1952 = vrot.lane.b32.xlu0 %v1258, 127
    %v1953 = vpop.permute.xlu0 %1952
    %1954 = vrot.lane.b32.xlu0 %v1259, 127
    %v1955 = vpop.permute.xlu0 %1954
    %1956 = vrot.lane.b32.xlu0 %v1260, 127
    %v1957 = vpop.permute.xlu0 %1956
    %1958 = vrot.lane.b32.xlu0 %v1261, 127
    %v1959 = vpop.permute.xlu0 %1958
    %1960 = vrot.lane.b32.xlu0 %v1258, 71
    %v1961 = vpop.permute.xlu0 %1960
    %1962 = vrot.lane.b32.xlu0 %v1259, 71
    %v1963 = vpop.permute.xlu0 %1962
    %1964 = vrot.lane.b32.xlu0 %v1260, 71
    %v1965 = vpop.permute.xlu0 %1964
    %1966 = vrot.lane.b32.xlu0 %v1261, 71
    %v1967 = vpop.permute.xlu0 %1966
    %v1970 = vsel %vm766, %v1953, %v1961
    %v1974 = vsel %vm766, %v1955, %v1963
    %v1978 = vsel %vm766, %v1957, %v1965
    %v1982 = vsel %vm766, %v1959, %v1967
    %v1992 = vunpack.c.l.b16 %v1944
    %v1993 = vunpack.c.l.b16 %v1945
    %v1994 = vunpack.c.l.b16 %v1946
    %v1995 = vunpack.c.l.b16 %v1947
    %v1996 = vunpack.c.l.b16 %v1948
    %v1997 = vunpack.c.l.b16 %v1949
    %v1998 = vunpack.c.l.b16 %v1950
    %v1999 = vunpack.c.l.b16 %v1951
    %v2000 = vpack.c.b16 %v1993, %v1992
    %v2001 = vpack.c.b16 %v1995, %v1994
    %v2002 = vpack.c.b16 %v1997, %v1996
    %v2003 = vpack.c.b16 %v1999, %v1998
    %v2005 = vsel %vm1366, %v2000, 0
    %v2008 = vsel %vm1366, %v2001, 0
    %v2011 = vsel %vm1366, %v2002, 0
    %v2014 = vsel %vm1366, %v2003, 0
    %2016 = vmatprep.subr.bf16.mxu0 0
    %2017 = vmatpush1.bf16.msra.mxu0 %v1970
    %2018 = vmatprep.subr.bf16.mxu0 0
    %2019 = vmatpush1.bf16.msra.mxu0 %v1974
    %2020 = vmatprep.subr.bf16.mxu0 0
    %2021 = vmatpush1.bf16.msra.mxu0 %v1978
    %2022 = vmatprep.subr.bf16.mxu0 0
    %2023 = vmatpush1.bf16.msra.mxu0 %v1982
    %2024 = vmatprep.subr.bf16.mxu0 0
    %2025 = vmatpush1.bf16.msra.mxu0 0
    %2026 = vmatprep.subr.bf16.mxu0 0
    %2027 = vmatpush1.bf16.msra.mxu0 0
    %2028 = vmatprep.subr.bf16.mxu0 0
    %2029 = vmatpush1.bf16.msra.mxu0 0
    %2030 = vmatprep.subr.bf16.mxu0 0
    %2031 = vmatpush1.bf16.msra.mxu0 0
    %2032 = vmatprep.subr.bf16.mxu0 0
    %2033 = vmatpush1.bf16.msra.mxu0 0
    %2034 = vmatprep.subr.bf16.mxu0 0
    %2035 = vmatpush1.bf16.msra.mxu0 0
    %2036 = vmatprep.subr.bf16.mxu0 0
    %2037 = vmatpush1.bf16.msra.mxu0 0
    %2038 = vmatprep.subr.bf16.mxu0 0
    %2039 = vmatpush1.bf16.msra.mxu0 0
    %2040 = vmatprep.subr.bf16.mxu0 0
    %2041 = vmatpush1.bf16.msra.mxu0 0
    %2042 = vmatprep.subr.bf16.mxu0 0
    %2043 = vmatpush1.bf16.msra.mxu0 0
    %2044 = vmatprep.subr.bf16.mxu0 0
    %2045 = vmatpush1.bf16.msra.mxu0 0
    %2046 = vmatprep.subr.bf16.mxu0 0
    %2047 = vmatpush1.bf16.msra.mxu0 0
    %2048 = vmatprep.mubr.bf16.mxu0 0
    %2049 = vmatmul.mubr.bf16.gmra.mrb[0].mxu0 %v2005
    %v2050 = vpop.f32.mrb[0].mxu0
    %v2051 = vadd.f32 0.0, %v2050
    %v2052 = vpop.f32.mrb[0].mxu0
    %v2053 = vpop.f32.mrb[0].mxu0
    %v2054 = vadd.f32 0.0, %v2053
    %v2055 = vpop.f32.mrb[0].mxu0
    %2056 = vmatprep.mubr.bf16.mxu0 0
    %2057 = vmatmul.mubr.bf16.gmra.mrb[0].mxu0 %v2008
    %v2058 = vpop.f32.mrb[0].mxu0
    %v2059 = vadd.f32 0.0, %v2058
    %v2060 = vpop.f32.mrb[0].mxu0
    %v2061 = vpop.f32.mrb[0].mxu0
    %v2062 = vadd.f32 0.0, %v2061
    %v2063 = vpop.f32.mrb[0].mxu0
    %2064 = vmatprep.mubr.bf16.mxu0 0
    %2065 = vmatmul.mubr.bf16.gmra.mrb[0].mxu0 %v2011
    %v2066 = vpop.f32.mrb[0].mxu0
    %v2067 = vadd.f32 0.0, %v2066
    %v2068 = vpop.f32.mrb[0].mxu0
    %v2069 = vpop.f32.mrb[0].mxu0
    %v2070 = vadd.f32 0.0, %v2069
    %v2071 = vpop.f32.mrb[0].mxu0
    %2072 = vmatprep.mubr.bf16.mxu0 0
    %2073 = vmatmul.mubr.bf16.gmra.mrb[0].mxu0 %v2014
    %v2074 = vpop.f32.mrb[0].mxu0
    %v2075 = vadd.f32 0.0, %v2074
    %v2076 = vpop.f32.mrb[0].mxu0
    %v2077 = vpop.f32.mrb[0].mxu0
    %v2078 = vadd.f32 0.0, %v2077
    %v2079 = vpop.f32.mrb[0].mxu0
    %2080 = vdwg.mxu0
    %v2081 = vadd.f32 %v1936, %v2051
    %v2082 = vadd.f32 %v1937, %v2054
    %v2083 = vadd.f32 %v1938, %v2059
    %v2084 = vadd.f32 %v1939, %v2062
    %v2085 = vadd.f32 %v1940, %v2067
    %v2086 = vadd.f32 %v1941, %v2070
    %v2087 = vadd.f32 %v1942, %v2075
    %v2088 = vadd.f32 %v1943, %v2078
    %v2089 = vld [vmem:[%s3 + $0xc0] sm:$0xf]
    %v2090 = vld [vmem:[%s3 + $0xc4] sm:$0xf]
    %v2091 = vld [vmem:[%s3 + $0xc8] sm:$0xf]
    %v2092 = vld [vmem:[%s3 + $0xcc] sm:$0xf]
    %v2093 = vld [vmem:[%s3 + $0xd0] sm:$0xf]
    %v2094 = vld [vmem:[%s3 + $0xd4] sm:$0xf]
    %v2095 = vld [vmem:[%s3 + $0xd8] sm:$0xf]
    %v2096 = vld [vmem:[%s3 + $0xdc] sm:$0xf]
    %2097 = vrot.lane.b32.xlu0 %v1258, 123
    %v2098 = vpop.permute.xlu0 %2097
    %2099 = vrot.lane.b32.xlu0 %v1259, 123
    %v2100 = vpop.permute.xlu0 %2099
    %2101 = vrot.lane.b32.xlu0 %v1260, 123
    %v2102 = vpop.permute.xlu0 %2101
    %2103 = vrot.lane.b32.xlu0 %v1261, 123
    %v2104 = vpop.permute.xlu0 %2103
    %2105 = vrot.lane.b32.xlu0 %v1258, 67
    %v2106 = vpop.permute.xlu0 %2105
    %2107 = vrot.lane.b32.xlu0 %v1259, 67
    %v2108 = vpop.permute.xlu0 %2107
    %2109 = vrot.lane.b32.xlu0 %v1260, 67
    %v2110 = vpop.permute.xlu0 %2109
    %2111 = vrot.lane.b32.xlu0 %v1261, 67
    %v2112 = vpop.permute.xlu0 %2111
    %v2115 = vsel %vm869, %v2098, %v2106
    %v2119 = vsel %vm869, %v2100, %v2108
    %v2123 = vsel %vm869, %v2102, %v2110
    %v2127 = vsel %vm869, %v2104, %v2112
    %v2137 = vunpack.c.l.b16 %v2089
    %v2138 = vunpack.c.l.b16 %v2090
    %v2139 = vunpack.c.l.b16 %v2091
    %v2140 = vunpack.c.l.b16 %v2092
    %v2141 = vunpack.c.l.b16 %v2093
    %v2142 = vunpack.c.l.b16 %v2094
    %v2143 = vunpack.c.l.b16 %v2095
    %v2144 = vunpack.c.l.b16 %v2096
    %v2145 = vpack.c.b16 %v2138, %v2137
    %v2146 = vpack.c.b16 %v2140, %v2139
    %v2147 = vpack.c.b16 %v2142, %v2141
    %v2148 = vpack.c.b16 %v2144, %v2143
    %v2150 = vsel %vm1366, %v2145, 0
    %v2153 = vsel %vm1366, %v2146, 0
    %v2156 = vsel %vm1366, %v2147, 0
    %v2159 = vsel %vm1366, %v2148, 0
    %2161 = vmatprep.subr.bf16.mxu0 0
    %2162 = vmatpush1.bf16.msra.mxu0 %v2115
    %2163 = vmatprep.subr.bf16.mxu0 0
    %2164 = vmatpush1.bf16.msra.mxu0 %v2119
    %2165 = vmatprep.subr.bf16.mxu0 0
    %2166 = vmatpush1.bf16.msra.mxu0 %v2123
    %2167 = vmatprep.subr.bf16.mxu0 0
    %2168 = vmatpush1.bf16.msra.mxu0 %v2127
    %2169 = vmatprep.subr.bf16.mxu0 0
    %2170 = vmatpush1.bf16.msra.mxu0 0
    %2171 = vmatprep.subr.bf16.mxu0 0
    %2172 = vmatpush1.bf16.msra.mxu0 0
    %2173 = vmatprep.subr.bf16.mxu0 0
    %2174 = vmatpush1.bf16.msra.mxu0 0
    %2175 = vmatprep.subr.bf16.mxu0 0
    %2176 = vmatpush1.bf16.msra.mxu0 0
    %2177 = vmatprep.subr.bf16.mxu0 0
    %2178 = vmatpush1.bf16.msra.mxu0 0
    %2179 = vmatprep.subr.bf16.mxu0 0
    %2180 = vmatpush1.bf16.msra.mxu0 0
    %2181 = vmatprep.subr.bf16.mxu0 0
    %2182 = vmatpush1.bf16.msra.mxu0 0
    %2183 = vmatprep.subr.bf16.mxu0 0
    %2184 = vmatpush1.bf16.msra.mxu0 0
    %2185 = vmatprep.subr.bf16.mxu0 0
    %2186 = vmatpush1.bf16.msra.mxu0 0
    %2187 = vmatprep.subr.bf16.mxu0 0
    %2188 = vmatpush1.bf16.msra.mxu0 0
    %2189 = vmatprep.subr.bf16.mxu0 0
    %2190 = vmatpush1.bf16.msra.mxu0 0
    %2191 = vmatprep.subr.bf16.mxu0 0
    %2192 = vmatpush1.bf16.msra.mxu0 0
    %2193 = vmatprep.mubr.bf16.mxu0 0
    %2194 = vmatmul.mubr.bf16.gmra.mrb[0].mxu0 %v2150
    %v2195 = vpop.f32.mrb[0].mxu0
    %v2196 = vadd.f32 0.0, %v2195
    %v2197 = vpop.f32.mrb[0].mxu0
    %v2198 = vpop.f32.mrb[0].mxu0
    %v2199 = vadd.f32 0.0, %v2198
    %v2200 = vpop.f32.mrb[0].mxu0
    %2201 = vmatprep.mubr.bf16.mxu0 0
    %2202 = vmatmul.mubr.bf16.gmra.mrb[0].mxu0 %v2153
    %v2203 = vpop.f32.mrb[0].mxu0
    %v2204 = vadd.f32 0.0, %v2203
    %v2205 = vpop.f32.mrb[0].mxu0
    %v2206 = vpop.f32.mrb[0].mxu0
    %v2207 = vadd.f32 0.0, %v2206
    %v2208 = vpop.f32.mrb[0].mxu0
    %2209 = vmatprep.mubr.bf16.mxu0 0
    %2210 = vmatmul.mubr.bf16.gmra.mrb[0].mxu0 %v2156
    %v2211 = vpop.f32.mrb[0].mxu0
    %v2212 = vadd.f32 0.0, %v2211
    %v2213 = vpop.f32.mrb[0].mxu0
    %v2214 = vpop.f32.mrb[0].mxu0
    %v2215 = vadd.f32 0.0, %v2214
    %v2216 = vpop.f32.mrb[0].mxu0
    %2217 = vmatprep.mubr.bf16.mxu0 0
    %2218 = vmatmul.mubr.bf16.gmra.mrb[0].mxu0 %v2159
    %v2219 = vpop.f32.mrb[0].mxu0
    %v2220 = vadd.f32 0.0, %v2219
    %v2221 = vpop.f32.mrb[0].mxu0
    %v2222 = vpop.f32.mrb[0].mxu0
    %v2223 = vadd.f32 0.0, %v2222
    %v2224 = vpop.f32.mrb[0].mxu0
    %2225 = vdwg.mxu0
    %v2226 = vadd.f32 %v2081, %v2196
    %v2227 = vadd.f32 %v2082, %v2199
    %v2228 = vadd.f32 %v2083, %v2204
    %v2229 = vadd.f32 %v2084, %v2207
    %v2230 = vadd.f32 %v2085, %v2212
    %v2231 = vadd.f32 %v2086, %v2215
    %v2232 = vadd.f32 %v2087, %v2220
    %v2233 = vadd.f32 %v2088, %v2223
    %v2234 = vld [vmem:[%s3 + $0xe0] sm:$0xf]
    %v2235 = vld [vmem:[%s3 + $0xe4] sm:$0xf]
    %v2236 = vld [vmem:[%s3 + $0xe8] sm:$0xf]
    %v2237 = vld [vmem:[%s3 + $0xec] sm:$0xf]
    %v2238 = vld [vmem:[%s3 + $0xf0] sm:$0xf]
    %v2239 = vld [vmem:[%s3 + $0xf4] sm:$0xf]
    %v2240 = vld [vmem:[%s3 + $0xf8] sm:$0xf]
    %v2241 = vld [vmem:[%s3 + $0xfc] sm:$0xf]
    %2242 = vrot.lane.b32.xlu0 %v1258, 122
    %v2243 = vpop.permute.xlu0 %2242
    %2244 = vrot.lane.b32.xlu0 %v1259, 122
    %v2245 = vpop.permute.xlu0 %2244
    %2246 = vrot.lane.b32.xlu0 %v1260, 122
    %v2247 = vpop.permute.xlu0 %2246
    %2248 = vrot.lane.b32.xlu0 %v1261, 122
    %v2249 = vpop.permute.xlu0 %2248
    %2250 = vrot.lane.b32.xlu0 %v1258, 66
    %v2251 = vpop.permute.xlu0 %2250
    %2252 = vrot.lane.b32.xlu0 %v1259, 66
    %v2253 = vpop.permute.xlu0 %2252
    %2254 = vrot.lane.b32.xlu0 %v1260, 66
    %v2255 = vpop.permute.xlu0 %2254
    %2256 = vrot.lane.b32.xlu0 %v1261, 66
    %v2257 = vpop.permute.xlu0 %2256
    %v2260 = vsel %vm972, %v2243, %v2251
    %v2264 = vsel %vm972, %v2245, %v2253
    %v2268 = vsel %vm972, %v2247, %v2255
    %v2272 = vsel %vm972, %v2249, %v2257
    %v2282 = vunpack.c.l.b16 %v2234
    %v2283 = vunpack.c.l.b16 %v2235
    %v2284 = vunpack.c.l.b16 %v2236
    %v2285 = vunpack.c.l.b16 %v2237
    %v2286 = vunpack.c.l.b16 %v2238
    %v2287 = vunpack.c.l.b16 %v2239
    %v2288 = vunpack.c.l.b16 %v2240
    %v2289 = vunpack.c.l.b16 %v2241
    %v2290 = vpack.c.b16 %v2283, %v2282
    %v2291 = vpack.c.b16 %v2285, %v2284
    %v2292 = vpack.c.b16 %v2287, %v2286
    %v2293 = vpack.c.b16 %v2289, %v2288
    %v2295 = vsel %vm1366, %v2290, 0
    %v2298 = vsel %vm1366, %v2291, 0
    %v2301 = vsel %vm1366, %v2292, 0
    %v2304 = vsel %vm1366, %v2293, 0
    %2306 = vmatprep.subr.bf16.mxu0 0
    %2307 = vmatpush1.bf16.msra.mxu0 %v2260
    %2308 = vmatprep.subr.bf16.mxu0 0
    %2309 = vmatpush1.bf16.msra.mxu0 %v2264
    %2310 = vmatprep.subr.bf16.mxu0 0
    %2311 = vmatpush1.bf16.msra.mxu0 %v2268
    %2312 = vmatprep.subr.bf16.mxu0 0
    %2313 = vmatpush1.bf16.msra.mxu0 %v2272
    %2314 = vmatprep.subr.bf16.mxu0 0
    %2315 = vmatpush1.bf16.msra.mxu0 0
    %2316 = vmatprep.subr.bf16.mxu0 0
    %2317 = vmatpush1.bf16.msra.mxu0 0
    %2318 = vmatprep.subr.bf16.mxu0 0
    %2319 = vmatpush1.bf16.msra.mxu0 0
    %2320 = vmatprep.subr.bf16.mxu0 0
    %2321 = vmatpush1.bf16.msra.mxu0 0
    %2322 = vmatprep.subr.bf16.mxu0 0
    %2323 = vmatpush1.bf16.msra.mxu0 0
    %2324 = vmatprep.subr.bf16.mxu0 0
    %2325 = vmatpush1.bf16.msra.mxu0 0
    %2326 = vmatprep.subr.bf16.mxu0 0
    %2327 = vmatpush1.bf16.msra.mxu0 0
    %2328 = vmatprep.subr.bf16.mxu0 0
    %2329 = vmatpush1.bf16.msra.mxu0 0
    %2330 = vmatprep.subr.bf16.mxu0 0
    %2331 = vmatpush1.bf16.msra.mxu0 0
    %2332 = vmatprep.subr.bf16.mxu0 0
    %2333 = vmatpush1.bf16.msra.mxu0 0
    %2334 = vmatprep.subr.bf16.mxu0 0
    %2335 = vmatpush1.bf16.msra.mxu0 0
    %2336 = vmatprep.subr.bf16.mxu0 0
    %2337 = vmatpush1.bf16.msra.mxu0 0
    %2338 = vmatprep.mubr.bf16.mxu0 0
    %2339 = vmatmul.mubr.bf16.gmra.mrb[0].mxu0 %v2295
    %v2340 = vpop.f32.mrb[0].mxu0
    %v2341 = vadd.f32 0.0, %v2340
    %v2342 = vpop.f32.mrb[0].mxu0
    %v2343 = vpop.f32.mrb[0].mxu0
    %v2344 = vadd.f32 0.0, %v2343
    %v2345 = vpop.f32.mrb[0].mxu0
    %2346 = vmatprep.mubr.bf16.mxu0 0
    %2347 = vmatmul.mubr.bf16.gmra.mrb[0].mxu0 %v2298
    %v2348 = vpop.f32.mrb[0].mxu0
    %v2349 = vadd.f32 0.0, %v2348
    %v2350 = vpop.f32.mrb[0].mxu0
    %v2351 = vpop.f32.mrb[0].mxu0
    %v2352 = vadd.f32 0.0, %v2351
    %v2353 = vpop.f32.mrb[0].mxu0
    %2354 = vmatprep.mubr.bf16.mxu0 0
    %2355 = vmatmul.mubr.bf16.gmra.mrb[0].mxu0 %v2301
    %v2356 = vpop.f32.mrb[0].mxu0
    %v2357 = vadd.f32 0.0, %v2356
    %v2358 = vpop.f32.mrb[0].mxu0
    %v2359 = vpop.f32.mrb[0].mxu0
    %v2360 = vadd.f32 0.0, %v2359
    %v2361 = vpop.f32.mrb[0].mxu0
    %2362 = vmatprep.mubr.bf16.mxu0 0
    %2363 = vmatmul.mubr.bf16.gmra.mrb[0].mxu0 %v2304
    %v2364 = vpop.f32.mrb[0].mxu0
    %v2365 = vadd.f32 0.0, %v2364
    %v2366 = vpop.f32.mrb[0].mxu0
    %v2367 = vpop.f32.mrb[0].mxu0
    %v2368 = vadd.f32 0.0, %v2367
    %v2369 = vpop.f32.mrb[0].mxu0
    %2370 = vdwg.mxu0
    %v2371 = vadd.f32 %v2226, %v2341
    %v2372 = vadd.f32 %v2227, %v2344
    %v2373 = vadd.f32 %v2228, %v2349
    %v2374 = vadd.f32 %v2229, %v2352
    %v2375 = vadd.f32 %v2230, %v2357
    %v2376 = vadd.f32 %v2231, %v2360
    %v2377 = vadd.f32 %v2232, %v2365
    %v2378 = vadd.f32 %v2233, %v2368
    %v2379 = vld [vmem:[%s3 + $0x100] sm:$0xf]
    %v2380 = vld [vmem:[%s3 + $0x104] sm:$0xf]
    %v2381 = vld [vmem:[%s3 + $0x108] sm:$0xf]
    %v2382 = vld [vmem:[%s3 + $0x10c] sm:$0xf]
    %v2383 = vld [vmem:[%s3 + $0x110] sm:$0xf]
    %v2384 = vld [vmem:[%s3 + $0x114] sm:$0xf]
    %v2385 = vld [vmem:[%s3 + $0x118] sm:$0xf]
    %v2386 = vld [vmem:[%s3 + $0x11c] sm:$0xf]
    %2387 = vrot.lane.b32.xlu0 %v1258, 121
    %v2388 = vpop.permute.xlu0 %2387
    %2389 = vrot.lane.b32.xlu0 %v1259, 121
    %v2390 = vpop.permute.xlu0 %2389
    %2391 = vrot.lane.b32.xlu0 %v1260, 121
    %v2392 = vpop.permute.xlu0 %2391
    %2393 = vrot.lane.b32.xlu0 %v1261, 121
    %v2394 = vpop.permute.xlu0 %2393
    %2395 = vrot.lane.b32.xlu0 %v1258, 65
    %v2396 = vpop.permute.xlu0 %2395
    %2397 = vrot.lane.b32.xlu0 %v1259, 65
    %v2398 = vpop.permute.xlu0 %2397
    %2399 = vrot.lane.b32.xlu0 %v1260, 65
    %v2400 = vpop.permute.xlu0 %2399
    %2401 = vrot.lane.b32.xlu0 %v1261, 65
    %v2402 = vpop.permute.xlu0 %2401
    %v2405 = vsel %vm1075, %v2388, %v2396
    %v2409 = vsel %vm1075, %v2390, %v2398
    %v2413 = vsel %vm1075, %v2392, %v2400
    %v2417 = vsel %vm1075, %v2394, %v2402
    %v2427 = vunpack.c.l.b16 %v2379
    %v2428 = vunpack.c.l.b16 %v2380
    %v2429 = vunpack.c.l.b16 %v2381
    %v2430 = vunpack.c.l.b16 %v2382
    %v2431 = vunpack.c.l.b16 %v2383
    %v2432 = vunpack.c.l.b16 %v2384
    %v2433 = vunpack.c.l.b16 %v2385
    %v2434 = vunpack.c.l.b16 %v2386
    %v2435 = vpack.c.b16 %v2428, %v2427
    %v2436 = vpack.c.b16 %v2430, %v2429
    %v2437 = vpack.c.b16 %v2432, %v2431
    %v2438 = vpack.c.b16 %v2434, %v2433
    %v2440 = vsel %vm1366, %v2435, 0
    %v2443 = vsel %vm1366, %v2436, 0
    %v2446 = vsel %vm1366, %v2437, 0
    %v2449 = vsel %vm1366, %v2438, 0
    %2451 = vmatprep.subr.bf16.mxu0 0
    %2452 = vmatpush1.bf16.msra.mxu0 %v2405
    %2453 = vmatprep.subr.bf16.mxu0 0
    %2454 = vmatpush1.bf16.msra.mxu0 %v2409
    %2455 = vmatprep.subr.bf16.mxu0 0
    %2456 = vmatpush1.bf16.msra.mxu0 %v2413
    %2457 = vmatprep.subr.bf16.mxu0 0
    %2458 = vmatpush1.bf16.msra.mxu0 %v2417
    %2459 = vmatprep.subr.bf16.mxu0 0
    %2460 = vmatpush1.bf16.msra.mxu0 0
    %2461 = vmatprep.subr.bf16.mxu0 0
    %2462 = vmatpush1.bf16.msra.mxu0 0
    %2463 = vmatprep.subr.bf16.mxu0 0
    %2464 = vmatpush1.bf16.msra.mxu0 0
    %2465 = vmatprep.subr.bf16.mxu0 0
    %2466 = vmatpush1.bf16.msra.mxu0 0
    %2467 = vmatprep.subr.bf16.mxu0 0
    %2468 = vmatpush1.bf16.msra.mxu0 0
    %2469 = vmatprep.subr.bf16.mxu0 0
    %2470 = vmatpush1.bf16.msra.mxu0 0
    %2471 = vmatprep.subr.bf16.mxu0 0
    %2472 = vmatpush1.bf16.msra.mxu0 0
    %2473 = vmatprep.subr.bf16.mxu0 0
    %2474 = vmatpush1.bf16.msra.mxu0 0
    %2475 = vmatprep.subr.bf16.mxu0 0
    %2476 = vmatpush1.bf16.msra.mxu0 0
    %2477 = vmatprep.subr.bf16.mxu0 0
    %2478 = vmatpush1.bf16.msra.mxu0 0
    %2479 = vmatprep.subr.bf16.mxu0 0
    %2480 = vmatpush1.bf16.msra.mxu0 0
    %2481 = vmatprep.subr.bf16.mxu0 0
    %2482 = vmatpush1.bf16.msra.mxu0 0
    %2483 = vmatprep.mubr.bf16.mxu0 0
    %2484 = vmatmul.mubr.bf16.gmra.mrb[0].mxu0 %v2440
    %v2485 = vpop.f32.mrb[0].mxu0
    %v2486 = vadd.f32 0.0, %v2485
    %v2487 = vpop.f32.mrb[0].mxu0
    %v2488 = vpop.f32.mrb[0].mxu0
    %v2489 = vadd.f32 0.0, %v2488
    %v2490 = vpop.f32.mrb[0].mxu0
    %2491 = vmatprep.mubr.bf16.mxu0 0
    %2492 = vmatmul.mubr.bf16.gmra.mrb[0].mxu0 %v2443
    %v2493 = vpop.f32.mrb[0].mxu0
    %v2494 = vadd.f32 0.0, %v2493
    %v2495 = vpop.f32.mrb[0].mxu0
    %v2496 = vpop.f32.mrb[0].mxu0
    %v2497 = vadd.f32 0.0, %v2496
    %v2498 = vpop.f32.mrb[0].mxu0
    %2499 = vmatprep.mubr.bf16.mxu0 0
    %2500 = vmatmul.mubr.bf16.gmra.mrb[0].mxu0 %v2446
    %v2501 = vpop.f32.mrb[0].mxu0
    %v2502 = vadd.f32 0.0, %v2501
    %v2503 = vpop.f32.mrb[0].mxu0
    %v2504 = vpop.f32.mrb[0].mxu0
    %v2505 = vadd.f32 0.0, %v2504
    %v2506 = vpop.f32.mrb[0].mxu0
    %2507 = vmatprep.mubr.bf16.mxu0 0
    %2508 = vmatmul.mubr.bf16.gmra.mrb[0].mxu0 %v2449
    %v2509 = vpop.f32.mrb[0].mxu0
    %v2510 = vadd.f32 0.0, %v2509
    %v2511 = vpop.f32.mrb[0].mxu0
    %v2512 = vpop.f32.mrb[0].mxu0
    %v2513 = vadd.f32 0.0, %v2512
    %v2514 = vpop.f32.mrb[0].mxu0
    %2515 = vdwg.mxu0
    %v2516 = vadd.f32 %v2371, %v2486
    %v2517 = vadd.f32 %v2372, %v2489
    %v2518 = vadd.f32 %v2373, %v2494
    %v2519 = vadd.f32 %v2374, %v2497
    %v2520 = vadd.f32 %v2375, %v2502
    %v2521 = vadd.f32 %v2376, %v2505
    %v2522 = vadd.f32 %v2377, %v2510
    %v2523 = vadd.f32 %v2378, %v2513
    %2524 = vset.pattern.permute.xlu0 1
    %2525 = vperm.xlu0 %2524, %v240
    %v2526 = vpop.permute.xlu0 %2525
    %2528 = vset.pattern.permute.xlu0 1
    %2529 = vperm.xlu0 %2528, %v241
    %v2530 = vpop.permute.xlu0 %2529
    %2532 = vset.pattern.permute.xlu0 1
    %2533 = vperm.xlu0 %2532, %v242
    %v2534 = vpop.permute.xlu0 %2533
    %2536 = vset.pattern.permute.xlu0 1
    %2537 = vperm.xlu0 %2536, %v243
    %v2538 = vpop.permute.xlu0 %2537
    %2540 = vset.pattern.permute.xlu0 1
    %2541 = vperm.xlu0 %2540, %v244
    %v2542 = vpop.permute.xlu0 %2541
    %2544 = vset.pattern.permute.xlu0 1
    %2545 = vperm.xlu0 %2544, %v245
    %v2546 = vpop.permute.xlu0 %2545
    %2548 = vset.pattern.permute.xlu0 1
    %2549 = vperm.xlu0 %2548, %v246
    %v2550 = vpop.permute.xlu0 %2549
    %2552 = vset.pattern.permute.xlu0 1
    %2553 = vperm.xlu0 %2552, %v247
    %v2554 = vpop.permute.xlu0 %2553
    %v2556 = vadd.f32 %v2516, %v2526
    %v2557 = vadd.f32 %v2517, %v2530
    %v2558 = vadd.f32 %v2518, %v2534
    %v2559 = vadd.f32 %v2519, %v2538
    %v2560 = vadd.f32 %v2520, %v2542
    %v2561 = vadd.f32 %v2521, %v2546
    %v2562 = vadd.f32 %v2522, %v2550
    %v2563 = vadd.f32 %v2523, %v2554
    %vm2564 = vcmp.gt.f32.partialorder %v2556, 0.0
    %vm2565 = vcmp.gt.f32.partialorder %v2557, 0.0
    %vm2566 = vcmp.gt.f32.partialorder %v2558, 0.0
    %vm2567 = vcmp.gt.f32.partialorder %v2559, 0.0
    %vm2568 = vcmp.gt.f32.partialorder %v2560, 0.0
    %vm2569 = vcmp.gt.f32.partialorder %v2561, 0.0
    %vm2570 = vcmp.gt.f32.partialorder %v2562, 0.0
    %vm2571 = vcmp.gt.f32.partialorder %v2563, 0.0
    %v2572 = vmul.f32 %v2556, 0.01
    %v2573 = vmul.f32 %v2557, 0.01
    %v2574 = vmul.f32 %v2558, 0.01
    %v2575 = vmul.f32 %v2559, 0.01
    %v2576 = vmul.f32 %v2560, 0.01
    %v2577 = vmul.f32 %v2561, 0.01
    %v2578 = vmul.f32 %v2562, 0.01
    %v2579 = vmul.f32 %v2563, 0.01
    %v2580 = vsel %vm2564, %v2556, %v2572
    %v2581 = vsel %vm2565, %v2557, %v2573
    %v2582 = vsel %vm2566, %v2558, %v2574
    %v2583 = vsel %vm2567, %v2559, %v2575
    %v2584 = vsel %vm2568, %v2560, %v2576
    %v2585 = vsel %vm2569, %v2561, %v2577
    %v2586 = vsel %vm2570, %v2562, %v2578
    %v2587 = vsel %vm2571, %v2563, %v2579
    %v2588 = vadd.f32 %v1250, %v2580
    %v2589 = vadd.f32 %v1251, %v2581
    %v2590 = vadd.f32 %v1252, %v2582
    %v2591 = vadd.f32 %v1253, %v2583
    %v2592 = vadd.f32 %v1254, %v2584
    %v2593 = vadd.f32 %v1255, %v2585
    %v2594 = vadd.f32 %v1256, %v2586
    %v2595 = vadd.f32 %v1257, %v2587
    %v2596 = vld [vmem:[%s3 + $0x140] sm:$0x3]
    %v2597 = vpack.c.bf16 %v2589, %v2588
    %v2598 = vpack.c.bf16 %v2591, %v2590
    %v2599 = vpack.c.bf16 %v2593, %v2592
    %v2600 = vpack.c.bf16 %v2595, %v2594
    %v2601 = vld [vmem:[%s4] sm:$0x7]
    %2603 = vset.pattern.permute.xlu0 2
    %2604 = vperm.xlu0 %2603, %v2601
    %v2605 = vpop.permute.xlu0 %2604
    %v2608 = vsel %vm1366, %v2596, 0
    %2610 = vmatprep.subr.bf16.mxu0 0
    %2611 = vmatpush1.bf16.msra.mxu0 %v2597
    %2612 = vmatprep.subr.bf16.mxu0 0
    %2613 = vmatpush1.bf16.msra.mxu0 %v2598
    %2614 = vmatprep.subr.bf16.mxu0 0
    %2615 = vmatpush1.bf16.msra.mxu0 %v2599
    %2616 = vmatprep.subr.bf16.mxu0 0
    %2617 = vmatpush1.bf16.msra.mxu0 %v2600
    %2618 = vmatprep.subr.bf16.mxu0 0
    %2619 = vmatpush1.bf16.msra.mxu0 0
    %2620 = vmatprep.subr.bf16.mxu0 0
    %2621 = vmatpush1.bf16.msra.mxu0 0
    %2622 = vmatprep.subr.bf16.mxu0 0
    %2623 = vmatpush1.bf16.msra.mxu0 0
    %2624 = vmatprep.subr.bf16.mxu0 0
    %2625 = vmatpush1.bf16.msra.mxu0 0
    %2626 = vmatprep.subr.bf16.mxu0 0
    %2627 = vmatpush1.bf16.msra.mxu0 0
    %2628 = vmatprep.subr.bf16.mxu0 0
    %2629 = vmatpush1.bf16.msra.mxu0 0
    %2630 = vmatprep.subr.bf16.mxu0 0
    %2631 = vmatpush1.bf16.msra.mxu0 0
    %2632 = vmatprep.subr.bf16.mxu0 0
    %2633 = vmatpush1.bf16.msra.mxu0 0
    %2634 = vmatprep.subr.bf16.mxu0 0
    %2635 = vmatpush1.bf16.msra.mxu0 0
    %2636 = vmatprep.subr.bf16.mxu0 0
    %2637 = vmatpush1.bf16.msra.mxu0 0
    %2638 = vmatprep.subr.bf16.mxu0 0
    %2639 = vmatpush1.bf16.msra.mxu0 0
    %2640 = vmatprep.subr.bf16.mxu0 0
    %2641 = vmatpush1.bf16.msra.mxu0 0
    %2642 = vmatprep.mubr.bf16.mxu0 0
    %2643 = vmatmul.mubr.bf16.gmra.mrb[0].mxu0 %v2608
    %v2644 = vpop.f32.mrb[0].mxu0
    %v2645 = vadd.f32 %v2605, %v2644
    %v2646 = vpop.f32.mrb[0].mxu0
    %v2647 = vpop.f32.mrb[0].mxu0
    %v2648 = vpop.f32.mrb[0].mxu0
    %2649 = vdwg.mxu0
    %vm2650 = vcmp.gt.f32.partialorder %v2645, 0.0
    %v2651 = vmul.f32 %v2645, 0.01
    %v2652 = vsel %vm2650, %v2645, %v2651
    %v2654 = vrot.slane %v2652, 7
    %2655 = vrot.lane.b32.xlu0 %v2654, 92
    %v2656 = vpop.permute.xlu0 %2655
    %vm2658 = vcmask 1040384
    %v2659 = vsel %vm2658, %v2652, %v2656
    %v2660 = vrot.slane %v2652, 1
    %2661 = vrot.lane.b32.xlu0 %v2660, 36
    %v2662 = vpop.permute.xlu0 %2661
    %vm2664 = vcmask 293888
    %v2665 = vsel %vm2664, %v2652, %v2662
    %2666 = vrot.lane.b32.xlu0 %v2652, 92
    %v2667 = vpop.permute.xlu0 %2666
    %v2670 = vsel %vm2664, %v2667, %v2660
    %v2672 = vrot.slane %v2665, 1
    %v2674 = vsel %vm2658, %v2672, %v2670
    %v2675 = vld [vmem:[%s1] sm:$0x3]
    %v2676 = vld [vmem:[%s4 + $0x40] sm:$0xff]
    %v2677 = vld [vmem:[%s4 + $0x48] sm:$0xff]
    %v2678 = vld [vmem:[%s4 + $0x50] sm:$0xff]
    %v2679 = vld [vmem:[%s4 + $0x58] sm:$0xff]
    %v2680 = vld [vmem:[%s4 + $0x60] sm:$0xf]
    %v2681 = vld [vmem:[%s4 + $0x68] sm:$0x1]
    %2683 = vset.pattern.permute.xlu0 0
    %2684 = vperm.xlu0 %2683, %v2675
    %v2685 = vpop.permute.xlu0 %2684
    %v2687 = vlaneseq
    %v2688 = vshrl.u32 %v2687, 7
    %v2689 = vsub.s32 0, %v2688
    %v2690 = vrot.slane %v2681, %v2689
    %v2691 = vmul.f32 %v2685, %v2690
    %v2693 = vsel %vm2664, %v2659, 0
    %vm2695 = vcmask 1043456
    %v2697 = vsel %vm2695, %v2680, 0
    %2699 = vmatprep.subr.mxu0 0.0
    %2700 = vmatpush1.msra.mxu0 %v2676
    %2701 = vmatprep.subr.mxu0 0.0
    %2702 = vmatpush1.msra.mxu0 %v2677
    %2703 = vmatprep.subr.mxu0 0.0
    %2704 = vmatpush1.msra.mxu0 %v2678
    %2705 = vmatprep.subr.mxu0 0.0
    %2706 = vmatpush1.msra.mxu0 %v2679
    %2707 = vmatprep.subr.mxu0 0.0
    %2708 = vmatpush1.msra.mxu0 %v2697
    %2709 = vmatprep.subr.mxu0 0.0
    %2710 = vmatpush1.msra.mxu0 0.0
    %2711 = vmatprep.subr.mxu0 0.0
    %2712 = vmatpush1.msra.mxu0 0.0
    %2713 = vmatprep.subr.mxu0 0.0
    %2714 = vmatpush1.msra.mxu0 0.0
    %2715 = vmatprep.subr.mxu0 0.0
    %2716 = vmatpush1.msra.mxu0 0.0
    %2717 = vmatprep.subr.mxu0 0.0
    %2718 = vmatpush1.msra.mxu0 0.0
    %2719 = vmatprep.subr.mxu0 0.0
    %2720 = vmatpush1.msra.mxu0 0.0
    %2721 = vmatprep.subr.mxu0 0.0
    %2722 = vmatpush1.msra.mxu0 0.0
    %2723 = vmatprep.subr.mxu0 0.0
    %2724 = vmatpush1.msra.mxu0 0.0
    %2725 = vmatprep.subr.mxu0 0.0
    %2726 = vmatpush1.msra.mxu0 0.0
    %2727 = vmatprep.subr.mxu0 0.0
    %2728 = vmatpush1.msra.mxu0 0.0
    %2729 = vmatprep.subr.mxu0 0.0
    %2730 = vmatpush1.msra.mxu0 0.0
    %2731 = vmatprep.subr.mxu0 0.0
    %2732 = vmatpush1.msra.mxu0 0.0
    %2733 = vmatprep.subr.mxu0 0.0
    %2734 = vmatpush1.msra.mxu0 0.0
    %2735 = vmatprep.subr.mxu0 0.0
    %2736 = vmatpush1.msra.mxu0 0.0
    %2737 = vmatprep.subr.mxu0 0.0
    %2738 = vmatpush1.msra.mxu0 0.0
    %2739 = vmatprep.subr.mxu0 0.0
    %2740 = vmatpush1.msra.mxu0 0.0
    %2741 = vmatprep.subr.mxu0 0.0
    %2742 = vmatpush1.msra.mxu0 0.0
    %2743 = vmatprep.subr.mxu0 0.0
    %2744 = vmatpush1.msra.mxu0 0.0
    %2745 = vmatprep.subr.mxu0 0.0
    %2746 = vmatpush1.msra.mxu0 0.0
    %2747 = vmatprep.subr.mxu0 0.0
    %2748 = vmatpush1.msra.mxu0 0.0
    %2749 = vmatprep.subr.mxu0 0.0
    %2750 = vmatpush1.msra.mxu0 0.0
    %2751 = vmatprep.subr.mxu0 0.0
    %2752 = vmatpush1.msra.mxu0 0.0
    %2753 = vmatprep.subr.mxu0 0.0
    %2754 = vmatpush1.msra.mxu0 0.0
    %2755 = vmatprep.subr.mxu0 0.0
    %2756 = vmatpush1.msra.mxu0 0.0
    %2757 = vmatprep.subr.mxu0 0.0
    %2758 = vmatpush1.msra.mxu0 0.0
    %2759 = vmatprep.subr.mxu0 0.0
    %2760 = vmatpush1.msra.mxu0 0.0
    %2761 = vmatprep.subr.mxu0 0.0
    %2762 = vmatpush1.msra.mxu0 0.0
    %2763 = vmatprep.mubr.f32.mxu0 0.0
    %2764 = vmatmul.mubr.f32.gmra.mrb[0].mxu0 %v2693
    %v2765 = vpop.f32.mrb[0].mxu0
    %v2766 = vadd.f32 %v2691, %v2765
    %v2767 = vpop.f32.mrb[0].mxu0
    %2768 = vdwg.mxu0
    %v2769 = vld [vmem:[%s4 + $0x69] sm:$0x1]
    %v2770 = vlaneseq
    %v2771 = vshrl.u32 %v2770, 7
    %v2772 = vsub.s32 0, %v2771
    %v2773 = vrot.slane %v2769, %v2772
    %v2774 = vadd.f32 %v2766, %v2773
    %vm2775 = vcmp.gt.f32.partialorder %v2774, 0.0
    %v2776 = vmul.f32 %v2774, 0.01
    %v2777 = vsel %vm2775, %v2774, %v2776
    %v2778 = vld [vmem:[%s4] sm:$0xff]
    %v2779 = vld [vmem:[%s4 + $0x8] sm:$0xff]
    %v2780 = vld [vmem:[%s4 + $0x10] sm:$0xf]
    %v2781 = vld [vmem:[%s4] sm:$0x1]
    %v2782 = vlaneseq
    %v2783 = vshrl.u32 %v2782, 7
    %v2784 = vsub.s32 0, %v2783
    %v2785 = vrot.slane %v2781, %v2784
    %2789 = vrot.lane.b32.xlu0 %v2778, 125
    %v2790 = vpop.permute.xlu0 %2789
    %2791 = vrot.lane.b32.xlu0 %v2779, 125
    %v2792 = vpop.permute.xlu0 %2791
    %2793 = vrot.lane.b32.xlu0 %v2780, 125
    %v2794 = vpop.permute.xlu0 %2793
    %2798 = vrot.lane.b32.xlu0 %v2785, 124
    %v2799 = vpop.permute.xlu0 %2798
    %v2802 = vsel %vm170, %v2777, 0
    %v2804 = vsel %vm2695, %v2794, 0
    %2806 = vmatprep.subr.mxu0 0.0
    %2807 = vmatpush1.msra.mxu0 %v2790
    %2808 = vmatprep.subr.mxu0 0.0
    %2809 = vmatpush1.msra.mxu0 %v2792
    %2810 = vmatprep.subr.mxu0 0.0
    %2811 = vmatpush1.msra.mxu0 %v2804
    %2812 = vmatprep.subr.mxu0 0.0
    %2813 = vmatpush1.msra.mxu0 0.0
    %2814 = vmatprep.subr.mxu0 0.0
    %2815 = vmatpush1.msra.mxu0 0.0
    %2816 = vmatprep.subr.mxu0 0.0
    %2817 = vmatpush1.msra.mxu0 0.0
    %2818 = vmatprep.subr.mxu0 0.0
    %2819 = vmatpush1.msra.mxu0 0.0
    %2820 = vmatprep.subr.mxu0 0.0
    %2821 = vmatpush1.msra.mxu0 0.0
    %2822 = vmatprep.subr.mxu0 0.0
    %2823 = vmatpush1.msra.mxu0 0.0
    %2824 = vmatprep.subr.mxu0 0.0
    %2825 = vmatpush1.msra.mxu0 0.0
    %2826 = vmatprep.subr.mxu0 0.0
    %2827 = vmatpush1.msra.mxu0 0.0
    %2828 = vmatprep.subr.mxu0 0.0
    %2829 = vmatpush1.msra.mxu0 0.0
    %2830 = vmatprep.subr.mxu0 0.0
    %2831 = vmatpush1.msra.mxu0 0.0
    %2832 = vmatprep.subr.mxu0 0.0
    %2833 = vmatpush1.msra.mxu0 0.0
    %2834 = vmatprep.subr.mxu0 0.0
    %2835 = vmatpush1.msra.mxu0 0.0
    %2836 = vmatprep.subr.mxu0 0.0
    %2837 = vmatpush1.msra.mxu0 0.0
    %2838 = vmatprep.subr.mxu0 0.0
    %2839 = vmatpush1.msra.mxu0 0.0
    %2840 = vmatprep.subr.mxu0 0.0
    %2841 = vmatpush1.msra.mxu0 0.0
    %2842 = vmatprep.subr.mxu0 0.0
    %2843 = vmatpush1.msra.mxu0 0.0
    %2844 = vmatprep.subr.mxu0 0.0
    %2845 = vmatpush1.msra.mxu0 0.0
    %2846 = vmatprep.subr.mxu0 0.0
    %2847 = vmatpush1.msra.mxu0 0.0
    %2848 = vmatprep.subr.mxu0 0.0
    %2849 = vmatpush1.msra.mxu0 0.0
    %2850 = vmatprep.subr.mxu0 0.0
    %2851 = vmatpush1.msra.mxu0 0.0
    %2852 = vmatprep.subr.mxu0 0.0
    %2853 = vmatpush1.msra.mxu0 0.0
    %2854 = vmatprep.subr.mxu0 0.0
    %2855 = vmatpush1.msra.mxu0 0.0
    %2856 = vmatprep.subr.mxu0 0.0
    %2857 = vmatpush1.msra.mxu0 0.0
    %2858 = vmatprep.subr.mxu0 0.0
    %2859 = vmatpush1.msra.mxu0 0.0
    %2860 = vmatprep.subr.mxu0 0.0
    %2861 = vmatpush1.msra.mxu0 0.0
    %2862 = vmatprep.subr.mxu0 0.0
    %2863 = vmatpush1.msra.mxu0 0.0
    %2864 = vmatprep.subr.mxu0 0.0
    %2865 = vmatpush1.msra.mxu0 0.0
    %2866 = vmatprep.subr.mxu0 0.0
    %2867 = vmatpush1.msra.mxu0 0.0
    %2868 = vmatprep.subr.mxu0 0.0
    %2869 = vmatpush1.msra.mxu0 0.0
    %2870 = vmatprep.mubr.f32.mxu0 0.0
    %2871 = vmatmul.mubr.f32.gmra.mrb[0].mxu0 %v2802
    %v2872 = vpop.f32.mrb[0].mxu0
    %v2873 = vadd.f32 %v2799, %v2872
    %v2874 = vpop.f32.mrb[0].mxu0
    %2875 = vdwg.mxu0
    %vm2876 = vcmask 1024
    %2877 = vst.msk [vmem:[%s6] sm:$0x3] %vm2876, %v2873
    %v2878 = vld [vmem:[%s4 + $0x70] sm:$0xff]
    %v2879 = vld [vmem:[%s4 + $0x78] sm:$0xff]
    %v2880 = vld [vmem:[%s4 + $0x80] sm:$0xff]
    %v2881 = vld [vmem:[%s4 + $0x88] sm:$0xff]
    %v2882 = vld [vmem:[%s4 + $0x90] sm:$0xff]
    %v2883 = vld [vmem:[%s4 + $0x98] sm:$0xff]
    %v2884 = vld [vmem:[%s4 + $0xa0] sm:$0xff]
    %v2885 = vld [vmem:[%s4 + $0xa8] sm:$0xff]
    %v2886 = vld [vmem:[%s4 + $0xb0] sm:$0xff]
    %v2887 = vld [vmem:[%s4 + $0x6a] sm:$0x1]
    %v2888 = vlaneseq
    %v2889 = vshrl.u32 %v2888, 7
    %v2890 = vsub.s32 0, %v2889
    %v2891 = vrot.slane %v2887, %v2890
    %v2892 = vmul.f32 %v2685, %v2891
    %vm2893 = vcmask 588800
    %v2895 = vsel %vm2893, %v2674, 0
    %2897 = vmatprep.subr.mxu0 0.0
    %2898 = vmatpush1.msra.mxu0 %v2878
    %2899 = vmatprep.subr.mxu0 0.0
    %2900 = vmatpush1.msra.mxu0 %v2879
    %2901 = vmatprep.subr.mxu0 0.0
    %2902 = vmatpush1.msra.mxu0 %v2880
    %2903 = vmatprep.subr.mxu0 0.0
    %2904 = vmatpush1.msra.mxu0 %v2881
    %2905 = vmatprep.subr.mxu0 0.0
    %2906 = vmatpush1.msra.mxu0 %v2882
    %2907 = vmatprep.subr.mxu0 0.0
    %2908 = vmatpush1.msra.mxu0 %v2883
    %2909 = vmatprep.subr.mxu0 0.0
    %2910 = vmatpush1.msra.mxu0 %v2884
    %2911 = vmatprep.subr.mxu0 0.0
    %2912 = vmatpush1.msra.mxu0 %v2885
    %2913 = vmatprep.subr.mxu0 0.0
    %2914 = vmatpush1.msra.mxu0 %v2886
    %2915 = vmatprep.subr.mxu0 0.0
    %2916 = vmatpush1.msra.mxu0 0.0
    %2917 = vmatprep.subr.mxu0 0.0
    %2918 = vmatpush1.msra.mxu0 0.0
    %2919 = vmatprep.subr.mxu0 0.0
    %2920 = vmatpush1.msra.mxu0 0.0
    %2921 = vmatprep.subr.mxu0 0.0
    %2922 = vmatpush1.msra.mxu0 0.0
    %2923 = vmatprep.subr.mxu0 0.0
    %2924 = vmatpush1.msra.mxu0 0.0
    %2925 = vmatprep.subr.mxu0 0.0
    %2926 = vmatpush1.msra.mxu0 0.0
    %2927 = vmatprep.subr.mxu0 0.0
    %2928 = vmatpush1.msra.mxu0 0.0
    %2929 = vmatprep.subr.mxu0 0.0
    %2930 = vmatpush1.msra.mxu0 0.0
    %2931 = vmatprep.subr.mxu0 0.0
    %2932 = vmatpush1.msra.mxu0 0.0
    %2933 = vmatprep.subr.mxu0 0.0
    %2934 = vmatpush1.msra.mxu0 0.0
    %2935 = vmatprep.subr.mxu0 0.0
    %2936 = vmatpush1.msra.mxu0 0.0
    %2937 = vmatprep.subr.mxu0 0.0
    %2938 = vmatpush1.msra.mxu0 0.0
    %2939 = vmatprep.subr.mxu0 0.0
    %2940 = vmatpush1.msra.mxu0 0.0
    %2941 = vmatprep.subr.mxu0 0.0
    %2942 = vmatpush1.msra.mxu0 0.0
    %2943 = vmatprep.subr.mxu0 0.0
    %2944 = vmatpush1.msra.mxu0 0.0
    %2945 = vmatprep.subr.mxu0 0.0
    %2946 = vmatpush1.msra.mxu0 0.0
    %2947 = vmatprep.subr.mxu0 0.0
    %2948 = vmatpush1.msra.mxu0 0.0
    %2949 = vmatprep.subr.mxu0 0.0
    %2950 = vmatpush1.msra.mxu0 0.0
    %2951 = vmatprep.subr.mxu0 0.0
    %2952 = vmatpush1.msra.mxu0 0.0
    %2953 = vmatprep.subr.mxu0 0.0
    %2954 = vmatpush1.msra.mxu0 0.0
    %2955 = vmatprep.subr.mxu0 0.0
    %2956 = vmatpush1.msra.mxu0 0.0
    %2957 = vmatprep.subr.mxu0 0.0
    %2958 = vmatpush1.msra.mxu0 0.0
    %2959 = vmatprep.subr.mxu0 0.0
    %2960 = vmatpush1.msra.mxu0 0.0
    %2961 = vmatprep.mubr.f32.mxu0 0.0
    %2962 = vmatmul.mubr.f32.gmra.mrb[0].mxu0 %v2895
    %v2963 = vpop.f32.mrb[0].mxu0
    %v2964 = vadd.f32 %v2892, %v2963
    %v2965 = vpop.f32.mrb[0].mxu0
    %2966 = vdwg.mxu0
    %v2967 = vld [vmem:[%s4 + $0x6b] sm:$0x1]
    %v2968 = vlaneseq
    %v2969 = vshrl.u32 %v2968, 7
    %v2970 = vsub.s32 0, %v2969
    %v2971 = vrot.slane %v2967, %v2970
    %v2972 = vadd.f32 %v2964, %v2971
    %vm2973 = vcmask 123904
    %v2974 = vsel %vm2973, %v2972, -inf
    %2975 = vmax.xlane.f32.xlu0 %v2974
    %v2976 = vpop.xlane.xlu0 %2975
    %v2977 = vsub.f32 %v2972, %v2976
    %v2978 = vmul.f32 %v2977, 1.442695
    %v2979 = vpow.pop %v2978
    %v2980 = vsel %vm2973, %v2979, 0.0
    %2981 = vadd.xlane.f32.xlu0 %v2980
    %v2982 = vpop.xlane.xlu0 %2981
    %v2983 = vrcp.pop %v2982
    %v2984 = vmul.f32 %v2979, %v2983
    %2985 = vst.msk [vmem:[#allocation2] sm:$0x3] %vm2973, %v2984
    // Predicated region
    $region22: #{net_forward.1} parent=1 // pred_check
      _
    $region23: #{net_forward.1} parent=1 // pred_check_branch
      %2987 = sbr.rel (0) target = $region25
    $region24: #{net_forward.1} parent=1 // pred_region
      %s2989 = ssub.s32 32, 32
      %2990 = vsyncadd [#allocation3], %s2989
      %s2992 = sshll.u32 [#allocation2], 4
      %s2993 = int_to_ptr.vmem [resolvable:$true] %s2992
      %2995 = dma.vmem_to_hbm [thread:$0]  %s2993, 32, %s5, [#allocation3]
    $region25: #{net_forward.1} parent=1 // pred_fallthru
      _
    // Predicated region
    $region26: #{net_forward.1} parent=1 // pred_check
      _
    $region27: #{net_forward.1} parent=1 // pred_check_branch
      %2997 = sbr.rel (0) target = $region29
    $region28: #{net_forward.1} parent=1 // pred_region
      _
    $region29: #{net_forward.1} parent=1 // pred_fallthru
      _
    // Predicated region
    $region30: #{net_forward.1} parent=1 // pred_check
      _
    $region31: #{net_forward.1} parent=1 // pred_check_branch
      %2999 = sbr.rel (0) target = $region33
    $region32: #{net_forward.1} parent=1 // pred_region
      %3000 = dma.done [#allocation3], 32
    $region33: #{net_forward.1} parent=1 // pred_fallthru
      _
    // Predicated region
    $region34: #{net_forward.1} parent=1 // pred_check
      _
    $region35: #{net_forward.1} parent=1 // pred_check_branch
      %3002 = sbr.rel (0) target = $region37
    $region36: #{net_forward.1} parent=1 // pred_region
      _
    $region37: #{net_forward.1} parent=1 // pred_fallthru
      _
    %3003 = vsyncpa [#allocation3], 1

</llo_original>
